<compile_context>
chip_gen: v6e
topology: v6e:2x2x1
jax: 0.10.0
libtpu: 0.0.40
codegen_flags: <defaults>
</compile_context>

<pallas_src>
import numpy as np
import jax
import jax.numpy as jnp
from jax.experimental import pallas as pl
from jax.experimental.pallas import tpu as pltpu

BATCH = 2
CONFIG = dict(
    n_labels=12,
    n_feature_maps1=4,
    conv1_size=(4, 3),
    conv1_pool=(2, 2),
    conv1_stride=(1, 1),
    n_feature_maps2=8,
    conv2_size=(3, 3),
    conv2_pool=(2, 2),
    conv2_stride=(1, 1),
    dnn1_size=32,
    dnn2_size=24,
    dropout_prob=0.5,
    width=16,
    height=16,
    tf_variant=False,
)


# ----------------------------------------------------------------------------
# shape helpers (mirror the shape probe done in SpeechModel.__init__)
# ----------------------------------------------------------------------------
def _conv_shape(h, w, k, s):
    return (h - k[0]) // s[0] + 1, (w - k[1]) // s[1] + 1


def _pool_shape(h, w, p):
    return h // p[0], w // p[1]


def _round_up(n, m):
    return ((n + m - 1) // m) * m


# ----------------------------------------------------------------------------
# deterministic synthetic parameter init (PyTorch conventions:
# conv weight (Cout, Cin, KH, KW), linear weight (out, in))
# ----------------------------------------------------------------------------
def init_params(key, cfg):
    def rnd(k, shape, std=0.05):
        return std * jax.random.normal(k, shape, jnp.float32)

    ks = iter(jax.random.split(key, 12))
    c1, c2 = cfg["n_feature_maps1"], cfg["n_feature_maps2"]
    kh1, kw1 = cfg["conv1_size"]
    kh2, kw2 = cfg["conv2_size"]

    h1, w1 = _conv_shape(cfg["height"], cfg["width"], cfg["conv1_size"], cfg["conv1_stride"])
    hp1, wp1 = _pool_shape(h1, w1, cfg["conv1_pool"])
    h2, w2 = _conv_shape(hp1, wp1, cfg["conv2_size"], cfg["conv2_stride"])
    hp2, wp2 = _pool_shape(h2, w2, cfg["conv2_pool"])
    conv_net_size = c2 * hp2 * wp2  # = 32 for this config

    return dict(
        conv1_w=rnd(next(ks), (c1, 1, kh1, kw1)),
        conv1_b=rnd(next(ks), (c1,)),
        conv2_w=rnd(next(ks), (c2, c1, kh2, kw2)),
        conv2_b=rnd(next(ks), (c2,)),
        lin_w=rnd(next(ks), (32, conv_net_size)),
        lin_b=rnd(next(ks), (32,)),
        dnn1_w=rnd(next(ks), (cfg["dnn1_size"], 32)),
        dnn1_b=rnd(next(ks), (cfg["dnn1_size"],)),
        dnn2_w=rnd(next(ks), (cfg["dnn2_size"], cfg["dnn1_size"])),
        dnn2_b=rnd(next(ks), (cfg["dnn2_size"],)),
        out_w=rnd(next(ks), (cfg["n_labels"], cfg["dnn2_size"])),
        out_b=rnd(next(ks), (cfg["n_labels"],)),
    )


# ----------------------------------------------------------------------------
# host-side glue: lower conv (fused with pool-window regrouping) to a
# block-Toeplitz matrix with lane-aligned, pool-grouped output columns.
# ----------------------------------------------------------------------------
def _conv_pool_operand(w, b, cin, hin, win, stride, pool, rows_pad, block_pad):
    """Build M (rows_pad, nblk*block_pad) and bias (1, block_pad).

    Input features are NCHW-flat (cin, hin, win) in the first cin*hin*win rows.
    Output block k = di*pw + dj (width `block_pad`, a multiple of 128) holds the
    NCHW-flat conv outputs at pool-window offset (di, dj); unused columns/rows
    are zero.  The bias is pool-block invariant, so in-kernel we max over the
    blocks first, then add one (1, block_pad) bias and ReLU."""
    w = np.asarray(w, np.float32)
    b = np.asarray(b, np.float32)
    cout, _, kh, kw = w.shape
    sh, sw = stride
    ph, pw = pool
    oh = (hin - kh) // sh + 1
    ow = (win - kw) // sw + 1
    poh, pow_ = oh // ph, ow // pw
    nblk = ph * pw
    assert cout * poh * pow_ <= block_pad and cin * hin * win <= rows_pad
    M = np.zeros((rows_pad, nblk * block_pad), np.float32)
    bias = np.zeros((1, block_pad), np.float32)
    for co in range(cout):
        bias[0, co * poh * pow_:(co + 1) * poh * pow_] = b[co]
    for di in range(ph):
        for dj in range(pw):
            blk = di * pw + dj
            for co in range(cout):
                for pi in range(poh):
                    for pj in range(pow_):
                        col = blk * block_pad + co * poh * pow_ + pi * pow_ + pj
                        i1 = pi * ph + di          # conv-output row kept by the pool
                        j1 = pj * pw + dj          # conv-output col kept by the pool
                        for ci in range(cin):
                            for u in range(kh):
                                for v in range(kw):
                                    row = ci * hin * win + (i1 * sh + u) * win + (j1 * sw + v)
                                    M[row, col] += w[co, ci, u, v]
    return M, bias, nblk


# ----------------------------------------------------------------------------
# the Pallas kernel: full forward pass on a (batch_tile, features) tile
# ----------------------------------------------------------------------------
def _make_kernel(pf1, pf2, nblk1, nblk2):
    def conv_relu_pool(a_bf16, m_ref, b_ref, width, nblk):
        # Toeplitz-conv matmul streamed over the nblk pool-offset column blocks.
        # Each block is a static, 128-lane-aligned slice of m_ref; blocks are
        # folded with a tree of jnp.maximum (VPU) so the max of block k overlaps
        # the MXU pass of block k+1 and the full (TB, nblk*width) pre-pool
        # activation is never materialized.  Bias is block-invariant
        # (max-then-bias == bias-then-max) and ReLU commutes with max.
        def blk(k):
            return jnp.dot(a_bf16, m_ref[:, k * width:(k + 1) * width],
                           preferred_element_type=jnp.float32)

        if nblk == 4:
            h = jnp.maximum(jnp.maximum(blk(0), blk(1)),
                            jnp.maximum(blk(2), blk(3)))
        else:
            h = blk(0)
            for k in range(1, nblk):
                h = jnp.maximum(h, blk(k))
        # dropout: identity (eval mode)
        return jnp.maximum(h + b_ref[...], 0.0)

    def kernel(x_ref, m1_ref, b1_ref, m2_ref, b2_ref,
               w1_ref, c1_ref, w2_ref, c2_ref, out_ref):
        # conv1 + ReLU + maxpool1   (x is already bf16)
        h = conv_relu_pool(x_ref[...], m1_ref, b1_ref, pf1, nblk1)
        # conv2 + ReLU + maxpool2
        h = conv_relu_pool(h.astype(jnp.bfloat16), m2_ref, b2_ref, pf2, nblk2)
        # lin∘dnn1 + ReLU   (folded host-side; dropout identity in eval mode)
        h = jnp.maximum(
            jnp.dot(h.astype(jnp.bfloat16), w1_ref[...],
                    preferred_element_type=jnp.float32) + c1_ref[...], 0.0)
        # dnn2∘output       (folded host-side)
        out = jnp.dot(h.astype(jnp.bfloat16), w2_ref[...],
                      preferred_element_type=jnp.float32) + c2_ref[...]
        out_ref[...] = out.astype(out_ref.dtype)   # lane-dense bf16 writeback

    return kernel


def speech_model_pallas(x, p, cfg, batch_tile=None, return_padded=False):
    B, H, W = x.shape
    c1, c2 = cfg["n_feature_maps1"], cfg["n_feature_maps2"]

    h1, w1 = _conv_shape(H, W, cfg["conv1_size"], cfg["conv1_stride"])
    hp1, wp1 = _pool_shape(h1, w1, cfg["conv1_pool"])
    h2, w2 = _conv_shape(hp1, wp1, cfg["conv2_size"], cfg["conv2_stride"])
    hp2, wp2 = _pool_shape(h2, w2, cfg["conv2_pool"])

    rows1 = _round_up(1 * H * W, 128)           # 256
    pf1 = _round_up(c1 * hp1 * wp1, 128)        # 256 (valid 168)
    pf2 = _round_up(c2 * hp2 * wp2, 128)        # 128 (valid 32)
    f_mid = _round_up(cfg["dnn1_size"], 128)    # 128
    f_out = _round_up(cfg["n_labels"], 128)     # 128 (lane-dense output)

    # conv layers fused with pool-grouping (host-side, numpy).
    M1, b1, nblk1 = _conv_pool_operand(p["conv1_w"], p["conv1_b"], 1, H, W,
                                       cfg["conv1_stride"], cfg["conv1_pool"],
                                       rows1, pf1)
    M2, b2, nblk2 = _conv_pool_operand(p["conv2_w"], p["conv2_b"], c1, hp1, wp1,
                                       cfg["conv2_stride"], cfg["conv2_pool"],
                                       pf1, pf2)

    # fold lin∘dnn1 and dnn2∘output (no nonlinearity inside each pair), f64 host math.
    lw, lb = np.asarray(p["lin_w"], np.float64), np.asarray(p["lin_b"], np.float64)
    d1w, d1b = np.asarray(p["dnn1_w"], np.float64), np.asarray(p["dnn1_b"], np.float64)
    d2w, d2b = np.asarray(p["dnn2_w"], np.float64), np.asarray(p["dnn2_b"], np.float64)
    ow, ob = np.asarray(p["out_w"], np.float64), np.asarray(p["out_b"], np.float64)
    Wf1, bf1 = lw.T @ d1w.T, lb @ d1w.T + d1b       # (32, 32), (32,)
    Wf2, bf2 = d2w.T @ ow.T, d2b @ ow.T + ob        # (32, 12), (12,)

    W1p = np.zeros((pf2, f_mid), np.float32); W1p[:Wf1.shape[0], :Wf1.shape[1]] = Wf1
    c1p = np.zeros((1, f_mid), np.float32);   c1p[0, :bf1.shape[0]] = bf1
    W2p = np.zeros((f_mid, f_out), np.float32); W2p[:Wf2.shape[0], :Wf2.shape[1]] = Wf2
    c2p = np.zeros((1, f_out), np.float32);   c2p[0, :bf2.shape[0]] = bf2

    # bf16 MXU operands (halves weight/x DMA, 1 bf16 MXU pass per dot);
    # biases stay f32 and are added to the f32 accumulators.
    weights = (jnp.asarray(M1, jnp.bfloat16), jnp.asarray(b1, jnp.float32),
               jnp.asarray(M2, jnp.bfloat16), jnp.asarray(b2, jnp.float32),
               jnp.asarray(W1p, jnp.bfloat16), jnp.asarray(c1p, jnp.float32),
               jnp.asarray(W2p, jnp.bfloat16), jnp.asarray(c2p, jnp.float32))

    # batch tiling: large tiles amortize the ~0.35us/step overhead; 512 keeps the
    # f32 intermediates comfortably inside v5e's 16 MiB scoped-VMEM default.  The
    # grid always has >= 2 steps so the "parallel" axis shards across both
    # TensorCores on v7x (no-op on single-TC v5e/v6e).
    if batch_tile is None:
        batch_tile = min(512, max(8, _round_up(pl.cdiv(B, 2), 8)))
    batch_tile = _round_up(batch_tile, 8)
    B_pad = max(_round_up(B, batch_tile), 2 * batch_tile)

    x_flat = jnp.asarray(x, jnp.float32).reshape(B, H * W).astype(jnp.bfloat16)
    x_flat = jnp.pad(x_flat, ((0, B_pad - B), (0, rows1 - H * W)))

    kernel = _make_kernel(pf1, pf2, nblk1, nblk2)
    grid = (B_pad // batch_tile,)
    x_spec = pl.BlockSpec((batch_tile, rows1), lambda i: (i, 0))
    out_spec = pl.BlockSpec((batch_tile, f_out), lambda i: (i, 0))
    out_shape = jax.ShapeDtypeStruct((B_pad, f_out), jnp.bfloat16)

    def build(single_buffer_weights):
        # Weights have constant index_maps, so they stay VMEM-resident across all
        # grid steps; single-buffering them reclaims the pointless second copy.
        wkw = dict(pipeline_mode=pl.Buffered(1)) if single_buffer_weights else {}
        in_specs = [x_spec] + [pl.BlockSpec(w.shape, lambda i: (0, 0), **wkw)
                               for w in weights]
        return pl.pallas_call(
            kernel,
            grid=grid,
            in_specs=in_specs,
            out_specs=out_spec,
            out_shape=out_shape,
            compiler_params=pltpu.CompilerParams(
                dimension_semantics=("parallel",),
                vmem_limit_bytes=32 * 1024 * 1024),
        )

    try:
        out = jax.block_until_ready(build(True)(x_flat, *weights))
    except Exception:
        # pipeline_mode=pl.Buffered(1) rejected by this jax build -> fall back to
        # default double-buffered weights (identical semantics, ~0.9 MiB more VMEM).
        out = jax.block_until_ready(build(False)(x_flat, *weights))

    if return_padded:
        return out  # (B_pad, 128) bf16 lane-dense tile; avoids the slice re-read
    return out[:B, :cfg["n_labels"]].astype(jnp.float32)


# ----------------------------------------------------------------------------
# pure-JAX reference (real convs / reduce_window, f32) for verification
# ----------------------------------------------------------------------------
def reference_forward(x, p, cfg):
    prec = jax.lax.Precision.HIGHEST
    neg_inf = jnp.float32(-jnp.inf)
    y = x[:, None, :, :].astype(jnp.float32)                              # NCHW
    y = jax.lax.conv_general_dilated(y, p["conv1_w"], cfg["conv1_stride"], "VALID",
                                     dimension_numbers=("NCHW", "OIHW", "NCHW"),
                                     precision=prec)
    y = jnp.maximum(y + p["conv1_b"][None, :, None, None], 0.0)
    y = jax.lax.reduce_window(y, neg_inf, jax.lax.max,
                              (1, 1) + tuple(cfg["conv1_pool"]),
                              (1, 1) + tuple(cfg["conv1_pool"]), "VALID")
    y = jax.lax.conv_general_dilated(y, p["conv2_w"], cfg["conv2_stride"], "VALID",
                                     dimension_numbers=("NCHW", "OIHW", "NCHW"),
                                     precision=prec)
    y = jnp.maximum(y + p["conv2_b"][None, :, None, None], 0.0)
    y = jax.lax.reduce_window(y, neg_inf, jax.lax.max,
                              (1, 1) + tuple(cfg["conv2_pool"]),
                              (1, 1) + tuple(cfg["conv2_pool"]), "VALID")
    y = y.reshape(y.shape[0], -1)
    y = jnp.dot(y, p["lin_w"].T, precision=prec) + p["lin_b"]
    y = jnp.maximum(jnp.dot(y, p["dnn1_w"].T, precision=prec) + p["dnn1_b"], 0.0)
    y = jnp.dot(y, p["dnn2_w"].T, precision=prec) + p["dnn2_b"]
    return jnp.dot(y, p["out_w"].T, precision=prec) + p["out_b"]


if __name__ == "__main__":
    key = jax.random.PRNGKey(0)
    kx, kp = jax.random.split(key)
    x = jax.random.normal(kx, (BATCH, CONFIG["height"], CONFIG["width"]), jnp.float32)
    params = init_params(kp, CONFIG)

    out = speech_model_pallas(x, params, CONFIG)
    out = jax.block_until_ready(out)
    assert out.shape == (BATCH, CONFIG["n_labels"])

    ref = reference_forward(x, params, CONFIG)
    # bf16 MXU operands vs f32 HIGHEST reference -> loosened tolerance.
    np.testing.assert_allclose(np.asarray(out), np.asarray(ref), rtol=5e-2, atol=1e-3)
    print("KERNEL_OK")
</pallas_src>

<mosaic_0001>
module attributes {stable_mosaic.version = 11 : i64} {
  func.func @kernel(%arg0: i32, %arg1: memref<8x256xbf16, #tpu.memory_space<vmem>>, %arg2: memref<256x1024xbf16, #tpu.memory_space<vmem>>, %arg3: memref<1x256xf32, #tpu.memory_space<vmem>>, %arg4: memref<256x512xbf16, #tpu.memory_space<vmem>>, %arg5: memref<1x128xf32, #tpu.memory_space<vmem>>, %arg6: memref<128x128xbf16, #tpu.memory_space<vmem>>, %arg7: memref<1x128xf32, #tpu.memory_space<vmem>>, %arg8: memref<128x128xbf16, #tpu.memory_space<vmem>>, %arg9: memref<1x128xf32, #tpu.memory_space<vmem>>, %arg10: memref<8x128xbf16, #tpu.memory_space<vmem>>) attributes {dimension_semantics = [#tpu.dimension_semantics<parallel>], iteration_bounds = array<i64: 2>, scalar_prefetch = 0 : i64, scratch_operands = 0 : i64, tpu.core_type = #tpu.core_type<tc>, window_params = [{transform_indices = @transform_0, window_bounds = array<i64: 8, 256>}, {pipeline_mode = #tpu.pipeline_mode<synchronous>, transform_indices = @transform_1, window_bounds = array<i64: 256, 1024>}, {pipeline_mode = #tpu.pipeline_mode<synchronous>, transform_indices = @transform_2, window_bounds = array<i64: 1, 256>}, {pipeline_mode = #tpu.pipeline_mode<synchronous>, transform_indices = @transform_3, window_bounds = array<i64: 256, 512>}, {pipeline_mode = #tpu.pipeline_mode<synchronous>, transform_indices = @transform_4, window_bounds = array<i64: 1, 128>}, {pipeline_mode = #tpu.pipeline_mode<synchronous>, transform_indices = @transform_5, window_bounds = array<i64: 128, 128>}, {pipeline_mode = #tpu.pipeline_mode<synchronous>, transform_indices = @transform_6, window_bounds = array<i64: 1, 128>}, {pipeline_mode = #tpu.pipeline_mode<synchronous>, transform_indices = @transform_7, window_bounds = array<i64: 128, 128>}, {pipeline_mode = #tpu.pipeline_mode<synchronous>, transform_indices = @transform_8, window_bounds = array<i64: 1, 128>}, {transform_indices = @transform_9, window_bounds = array<i64: 8, 128>}]} {
    %c0 = arith.constant 0 : index
    %c0_0 = arith.constant 0 : index
    %0 = vector.load %arg1[%c0, %c0_0] : memref<8x256xbf16, #tpu.memory_space<vmem>>, vector<8x256xbf16>
    %c0_1 = arith.constant 0 : index
    %c0_2 = arith.constant 0 : index
    %1 = vector.load %arg2[%c0_1, %c0_2] : memref<256x1024xbf16, #tpu.memory_space<vmem>>, vector<256x256xbf16>
    %cst = arith.constant dense<0.000000e+00> : vector<8x256xf32>
    %2 = tpu.matmul %0, %1, %cst {dimension_numbers = #tpu.dot_dimension_numbers<[1], [0], [0], [1], [0, 0, 1, 1], [], []>} : vector<8x256xbf16>, vector<256x256xbf16>, vector<8x256xf32> -> vector<8x256xf32>
    %c0_3 = arith.constant 0 : index
    %c256 = arith.constant 256 : index
    %3 = vector.load %arg2[%c0_3, %c256] : memref<256x1024xbf16, #tpu.memory_space<vmem>>, vector<256x256xbf16>
    %cst_4 = arith.constant dense<0.000000e+00> : vector<8x256xf32>
    %4 = tpu.matmul %0, %3, %cst_4 {dimension_numbers = #tpu.dot_dimension_numbers<[1], [0], [0], [1], [0, 0, 1, 1], [], []>} : vector<8x256xbf16>, vector<256x256xbf16>, vector<8x256xf32> -> vector<8x256xf32>
    %5 = arith.maximumf %2, %4 : vector<8x256xf32>
    %c0_5 = arith.constant 0 : index
    %c512 = arith.constant 512 : index
    %6 = vector.load %arg2[%c0_5, %c512] : memref<256x1024xbf16, #tpu.memory_space<vmem>>, vector<256x256xbf16>
    %cst_6 = arith.constant dense<0.000000e+00> : vector<8x256xf32>
    %7 = tpu.matmul %0, %6, %cst_6 {dimension_numbers = #tpu.dot_dimension_numbers<[1], [0], [0], [1], [0, 0, 1, 1], [], []>} : vector<8x256xbf16>, vector<256x256xbf16>, vector<8x256xf32> -> vector<8x256xf32>
    %c0_7 = arith.constant 0 : index
    %c768 = arith.constant 768 : index
    %8 = vector.load %arg2[%c0_7, %c768] : memref<256x1024xbf16, #tpu.memory_space<vmem>>, vector<256x256xbf16>
    %cst_8 = arith.constant dense<0.000000e+00> : vector<8x256xf32>
    %9 = tpu.matmul %0, %8, %cst_8 {dimension_numbers = #tpu.dot_dimension_numbers<[1], [0], [0], [1], [0, 0, 1, 1], [], []>} : vector<8x256xbf16>, vector<256x256xbf16>, vector<8x256xf32> -> vector<8x256xf32>
    %10 = arith.maximumf %7, %9 : vector<8x256xf32>
    %11 = arith.maximumf %5, %10 : vector<8x256xf32>
    %c0_9 = arith.constant 0 : index
    %c0_10 = arith.constant 0 : index
    %12 = vector.load %arg3[%c0_9, %c0_10] : memref<1x256xf32, #tpu.memory_space<vmem>>, vector<1x256xf32>
    %13 = vector.broadcast %12 : vector<1x256xf32> to vector<8x256xf32>
    %14 = arith.addf %11, %13 : vector<8x256xf32>
    %cst_11 = arith.constant 0.000000e+00 : f32
    %15 = vector.broadcast %cst_11 : f32 to vector<8x256xf32>
    %16 = arith.maximumf %14, %15 : vector<8x256xf32>
    %17 = arith.truncf %16 : vector<8x256xf32> to vector<8x256xbf16>
    %c0_12 = arith.constant 0 : index
    %c0_13 = arith.constant 0 : index
    %18 = vector.load %arg4[%c0_12, %c0_13] : memref<256x512xbf16, #tpu.memory_space<vmem>>, vector<256x128xbf16>
    %cst_14 = arith.constant dense<0.000000e+00> : vector<8x128xf32>
    %19 = tpu.matmul %17, %18, %cst_14 {dimension_numbers = #tpu.dot_dimension_numbers<[1], [0], [0], [1], [0, 0, 1, 1], [], []>} : vector<8x256xbf16>, vector<256x128xbf16>, vector<8x128xf32> -> vector<8x128xf32>
    %c0_15 = arith.constant 0 : index
    %c128 = arith.constant 128 : index
    %20 = vector.load %arg4[%c0_15, %c128] : memref<256x512xbf16, #tpu.memory_space<vmem>>, vector<256x128xbf16>
    %cst_16 = arith.constant dense<0.000000e+00> : vector<8x128xf32>
    %21 = tpu.matmul %17, %20, %cst_16 {dimension_numbers = #tpu.dot_dimension_numbers<[1], [0], [0], [1], [0, 0, 1, 1], [], []>} : vector<8x256xbf16>, vector<256x128xbf16>, vector<8x128xf32> -> vector<8x128xf32>
    %22 = arith.maximumf %19, %21 : vector<8x128xf32>
    %c0_17 = arith.constant 0 : index
    %c256_18 = arith.constant 256 : index
    %23 = vector.load %arg4[%c0_17, %c256_18] : memref<256x512xbf16, #tpu.memory_space<vmem>>, vector<256x128xbf16>
    %cst_19 = arith.constant dense<0.000000e+00> : vector<8x128xf32>
    %24 = tpu.matmul %17, %23, %cst_19 {dimension_numbers = #tpu.dot_dimension_numbers<[1], [0], [0], [1], [0, 0, 1, 1], [], []>} : vector<8x256xbf16>, vector<256x128xbf16>, vector<8x128xf32> -> vector<8x128xf32>
    %c0_20 = arith.constant 0 : index
    %c384 = arith.constant 384 : index
    %25 = vector.load %arg4[%c0_20, %c384] : memref<256x512xbf16, #tpu.memory_space<vmem>>, vector<256x128xbf16>
    %cst_21 = arith.constant dense<0.000000e+00> : vector<8x128xf32>
    %26 = tpu.matmul %17, %25, %cst_21 {dimension_numbers = #tpu.dot_dimension_numbers<[1], [0], [0], [1], [0, 0, 1, 1], [], []>} : vector<8x256xbf16>, vector<256x128xbf16>, vector<8x128xf32> -> vector<8x128xf32>
    %27 = arith.maximumf %24, %26 : vector<8x128xf32>
    %28 = arith.maximumf %22, %27 : vector<8x128xf32>
    %c0_22 = arith.constant 0 : index
    %c0_23 = arith.constant 0 : index
    %29 = vector.load %arg5[%c0_22, %c0_23] : memref<1x128xf32, #tpu.memory_space<vmem>>, vector<1x128xf32>
    %30 = vector.broadcast %29 : vector<1x128xf32> to vector<8x128xf32>
    %31 = arith.addf %28, %30 : vector<8x128xf32>
    %cst_24 = arith.constant 0.000000e+00 : f32
    %32 = vector.broadcast %cst_24 : f32 to vector<8x128xf32>
    %33 = arith.maximumf %31, %32 : vector<8x128xf32>
    %34 = arith.truncf %33 : vector<8x128xf32> to vector<8x128xbf16>
    %c0_25 = arith.constant 0 : index
    %c0_26 = arith.constant 0 : index
    %35 = vector.load %arg6[%c0_25, %c0_26] : memref<128x128xbf16, #tpu.memory_space<vmem>>, vector<128x128xbf16>
    %cst_27 = arith.constant dense<0.000000e+00> : vector<8x128xf32>
    %36 = tpu.matmul %34, %35, %cst_27 {dimension_numbers = #tpu.dot_dimension_numbers<[1], [0], [0], [1], [0, 0, 1, 1], [], []>} : vector<8x128xbf16>, vector<128x128xbf16>, vector<8x128xf32> -> vector<8x128xf32>
    %c0_28 = arith.constant 0 : index
    %c0_29 = arith.constant 0 : index
    %37 = vector.load %arg7[%c0_28, %c0_29] : memref<1x128xf32, #tpu.memory_space<vmem>>, vector<1x128xf32>
    %38 = vector.broadcast %37 : vector<1x128xf32> to vector<8x128xf32>
    %39 = arith.addf %36, %38 : vector<8x128xf32>
    %cst_30 = arith.constant 0.000000e+00 : f32
    %40 = vector.broadcast %cst_30 : f32 to vector<8x128xf32>
    %41 = arith.maximumf %39, %40 : vector<8x128xf32>
    %42 = arith.truncf %41 : vector<8x128xf32> to vector<8x128xbf16>
    %c0_31 = arith.constant 0 : index
    %c0_32 = arith.constant 0 : index
    %43 = vector.load %arg8[%c0_31, %c0_32] : memref<128x128xbf16, #tpu.memory_space<vmem>>, vector<128x128xbf16>
    %cst_33 = arith.constant dense<0.000000e+00> : vector<8x128xf32>
    %44 = tpu.matmul %42, %43, %cst_33 {dimension_numbers = #tpu.dot_dimension_numbers<[1], [0], [0], [1], [0, 0, 1, 1], [], []>} : vector<8x128xbf16>, vector<128x128xbf16>, vector<8x128xf32> -> vector<8x128xf32>
    %c0_34 = arith.constant 0 : index
    %c0_35 = arith.constant 0 : index
    %45 = vector.load %arg9[%c0_34, %c0_35] : memref<1x128xf32, #tpu.memory_space<vmem>>, vector<1x128xf32>
    %46 = vector.broadcast %45 : vector<1x128xf32> to vector<8x128xf32>
    %47 = arith.addf %44, %46 : vector<8x128xf32>
    %48 = arith.truncf %47 : vector<8x128xf32> to vector<8x128xbf16>
    %c0_36 = arith.constant 0 : index
    %c0_37 = arith.constant 0 : index
    %49 = vector.load %arg10[%c0_36, %c0_37] : memref<8x128xbf16, #tpu.memory_space<vmem>>, vector<8x128xbf16>
    tpu.vector_store %arg10[%c0_36, %c0_37], %48 {strides = array<i32>} : memref<8x128xbf16, #tpu.memory_space<vmem>>, vector<8x128xbf16>,
    return
  }
  func.func @transform_0(%arg0: i32) -> (i32, i32) {
    %c0_i32 = arith.constant 0 : i32
    %c0_i32_0 = arith.constant 0 : i32
    return %arg0, %c0_i32 : i32, i32
  }
  func.func @transform_1(%arg0: i32) -> (i32, i32) {
    %c0_i32 = arith.constant 0 : i32
    %c0_i32_0 = arith.constant 0 : i32
    %c0_i32_1 = arith.constant 0 : i32
    return %c0_i32, %c0_i32_0 : i32, i32
  }
  func.func @transform_2(%arg0: i32) -> (i32, i32) {
    %c0_i32 = arith.constant 0 : i32
    %c0_i32_0 = arith.constant 0 : i32
    %c0_i32_1 = arith.constant 0 : i32
    return %c0_i32, %c0_i32_0 : i32, i32
  }
  func.func @transform_3(%arg0: i32) -> (i32, i32) {
    %c0_i32 = arith.constant 0 : i32
    %c0_i32_0 = arith.constant 0 : i32
    %c0_i32_1 = arith.constant 0 : i32
    return %c0_i32, %c0_i32_0 : i32, i32
  }
  func.func @transform_4(%arg0: i32) -> (i32, i32) {
    %c0_i32 = arith.constant 0 : i32
    %c0_i32_0 = arith.constant 0 : i32
    %c0_i32_1 = arith.constant 0 : i32
    return %c0_i32, %c0_i32_0 : i32, i32
  }
  func.func @transform_5(%arg0: i32) -> (i32, i32) {
    %c0_i32 = arith.constant 0 : i32
    %c0_i32_0 = arith.constant 0 : i32
    %c0_i32_1 = arith.constant 0 : i32
    return %c0_i32, %c0_i32_0 : i32, i32
  }
  func.func @transform_6(%arg0: i32) -> (i32, i32) {
    %c0_i32 = arith.constant 0 : i32
    %c0_i32_0 = arith.constant 0 : i32
    %c0_i32_1 = arith.constant 0 : i32
    return %c0_i32, %c0_i32_0 : i32, i32
  }
  func.func @transform_7(%arg0: i32) -> (i32, i32) {
    %c0_i32 = arith.constant 0 : i32
    %c0_i32_0 = arith.constant 0 : i32
    %c0_i32_1 = arith.constant 0 : i32
    return %c0_i32, %c0_i32_0 : i32, i32
  }
  func.func @transform_8(%arg0: i32) -> (i32, i32) {
    %c0_i32 = arith.constant 0 : i32
    %c0_i32_0 = arith.constant 0 : i32
    %c0_i32_1 = arith.constant 0 : i32
    return %c0_i32, %c0_i32_0 : i32, i32
  }
  func.func @transform_9(%arg0: i32) -> (i32, i32) {
    %c0_i32 = arith.constant 0 : i32
    %c0_i32_0 = arith.constant 0 : i32
    return %arg0, %c0_i32 : i32, i32
  }
}

module attributes {stable_mosaic.version = 11 : i64} {
  func.func @kernel(%arg0: i32, %arg1: memref<8x256xbf16, #tpu.memory_space<vmem>>, %arg2: memref<256x1024xbf16, #tpu.memory_space<vmem>>, %arg3: memref<1x256xf32, #tpu.memory_space<vmem>>, %arg4: memref<256x512xbf16, #tpu.memory_space<vmem>>, %arg5: memref<1x128xf32, #tpu.memory_space<vmem>>, %arg6: memref<128x128xbf16, #tpu.memory_space<vmem>>, %arg7: memref<1x128xf32, #tpu.memory_space<vmem>>, %arg8: memref<128x128xbf16, #tpu.memory_space<vmem>>, %arg9: memref<1x128xf32, #tpu.memory_space<vmem>>, %arg10: memref<8x128xbf16, #tpu.memory_space<vmem>>) attributes {dimension_semantics = [#tpu.dimension_semantics<parallel>], iteration_bounds = array<i64: 2>, scalar_prefetch = 0 : i64, scratch_operands = 0 : i64, tpu.core_type = #tpu.core_type<tc>, window_params = [{transform_indices = @transform_0, window_bounds = array<i64: 8, 256>}, {pipeline_mode = #tpu.pipeline_mode<synchronous>, transform_indices = @transform_1, window_bounds = array<i64: 256, 1024>}, {pipeline_mode = #tpu.pipeline_mode<synchronous>, transform_indices = @transform_2, window_bounds = array<i64: 1, 256>}, {pipeline_mode = #tpu.pipeline_mode<synchronous>, transform_indices = @transform_3, window_bounds = array<i64: 256, 512>}, {pipeline_mode = #tpu.pipeline_mode<synchronous>, transform_indices = @transform_4, window_bounds = array<i64: 1, 128>}, {pipeline_mode = #tpu.pipeline_mode<synchronous>, transform_indices = @transform_5, window_bounds = array<i64: 128, 128>}, {pipeline_mode = #tpu.pipeline_mode<synchronous>, transform_indices = @transform_6, window_bounds = array<i64: 1, 128>}, {pipeline_mode = #tpu.pipeline_mode<synchronous>, transform_indices = @transform_7, window_bounds = array<i64: 128, 128>}, {pipeline_mode = #tpu.pipeline_mode<synchronous>, transform_indices = @transform_8, window_bounds = array<i64: 1, 128>}, {transform_indices = @transform_9, window_bounds = array<i64: 8, 128>}]} {
    %c0 = arith.constant 0 : index
    %c0_0 = arith.constant 0 : index
    %0 = vector.load %arg1[%c0, %c0_0] : memref<8x256xbf16, #tpu.memory_space<vmem>>, vector<8x256xbf16>
    %c0_1 = arith.constant 0 : index
    %c0_2 = arith.constant 0 : index
    %1 = vector.load %arg2[%c0_1, %c0_2] : memref<256x1024xbf16, #tpu.memory_space<vmem>>, vector<256x256xbf16>
    %cst = arith.constant dense<0.000000e+00> : vector<8x256xf32>
    %2 = tpu.matmul %0, %1, %cst {dimension_numbers = #tpu.dot_dimension_numbers<[1], [0], [0], [1], [0, 0, 1, 1], [], []>} : vector<8x256xbf16>, vector<256x256xbf16>, vector<8x256xf32> -> vector<8x256xf32>
    %c0_3 = arith.constant 0 : index
    %c256 = arith.constant 256 : index
    %3 = vector.load %arg2[%c0_3, %c256] : memref<256x1024xbf16, #tpu.memory_space<vmem>>, vector<256x256xbf16>
    %cst_4 = arith.constant dense<0.000000e+00> : vector<8x256xf32>
    %4 = tpu.matmul %0, %3, %cst_4 {dimension_numbers = #tpu.dot_dimension_numbers<[1], [0], [0], [1], [0, 0, 1, 1], [], []>} : vector<8x256xbf16>, vector<256x256xbf16>, vector<8x256xf32> -> vector<8x256xf32>
    %5 = arith.maximumf %2, %4 : vector<8x256xf32>
    %c0_5 = arith.constant 0 : index
    %c512 = arith.constant 512 : index
    %6 = vector.load %arg2[%c0_5, %c512] : memref<256x1024xbf16, #tpu.memory_space<vmem>>, vector<256x256xbf16>
    %cst_6 = arith.constant dense<0.000000e+00> : vector<8x256xf32>
    %7 = tpu.matmul %0, %6, %cst_6 {dimension_numbers = #tpu.dot_dimension_numbers<[1], [0], [0], [1], [0, 0, 1, 1], [], []>} : vector<8x256xbf16>, vector<256x256xbf16>, vector<8x256xf32> -> vector<8x256xf32>
    %c0_7 = arith.constant 0 : index
    %c768 = arith.constant 768 : index
    %8 = vector.load %arg2[%c0_7, %c768] : memref<256x1024xbf16, #tpu.memory_space<vmem>>, vector<256x256xbf16>
    %cst_8 = arith.constant dense<0.000000e+00> : vector<8x256xf32>
    %9 = tpu.matmul %0, %8, %cst_8 {dimension_numbers = #tpu.dot_dimension_numbers<[1], [0], [0], [1], [0, 0, 1, 1], [], []>} : vector<8x256xbf16>, vector<256x256xbf16>, vector<8x256xf32> -> vector<8x256xf32>
    %10 = arith.maximumf %7, %9 : vector<8x256xf32>
    %11 = arith.maximumf %5, %10 : vector<8x256xf32>
    %c0_9 = arith.constant 0 : index
    %c0_10 = arith.constant 0 : index
    %12 = vector.load %arg3[%c0_9, %c0_10] : memref<1x256xf32, #tpu.memory_space<vmem>>, vector<1x256xf32>
    %13 = vector.broadcast %12 : vector<1x256xf32> to vector<8x256xf32>
    %14 = arith.addf %11, %13 : vector<8x256xf32>
    %cst_11 = arith.constant 0.000000e+00 : f32
    %15 = vector.broadcast %cst_11 : f32 to vector<8x256xf32>
    %16 = arith.maximumf %14, %15 : vector<8x256xf32>
    %17 = arith.truncf %16 : vector<8x256xf32> to vector<8x256xbf16>
    %c0_12 = arith.constant 0 : index
    %c0_13 = arith.constant 0 : index
    %18 = vector.load %arg4[%c0_12, %c0_13] : memref<256x512xbf16, #tpu.memory_space<vmem>>, vector<256x128xbf16>
    %cst_14 = arith.constant dense<0.000000e+00> : vector<8x128xf32>
    %19 = tpu.matmul %17, %18, %cst_14 {dimension_numbers = #tpu.dot_dimension_numbers<[1], [0], [0], [1], [0, 0, 1, 1], [], []>} : vector<8x256xbf16>, vector<256x128xbf16>, vector<8x128xf32> -> vector<8x128xf32>
    %c0_15 = arith.constant 0 : index
    %c128 = arith.constant 128 : index
    %20 = vector.load %arg4[%c0_15, %c128] : memref<256x512xbf16, #tpu.memory_space<vmem>>, vector<256x128xbf16>
    %cst_16 = arith.constant dense<0.000000e+00> : vector<8x128xf32>
    %21 = tpu.matmul %17, %20, %cst_16 {dimension_numbers = #tpu.dot_dimension_numbers<[1], [0], [0], [1], [0, 0, 1, 1], [], []>} : vector<8x256xbf16>, vector<256x128xbf16>, vector<8x128xf32> -> vector<8x128xf32>
    %22 = arith.maximumf %19, %21 : vector<8x128xf32>
    %c0_17 = arith.constant 0 : index
    %c256_18 = arith.constant 256 : index
    %23 = vector.load %arg4[%c0_17, %c256_18] : memref<256x512xbf16, #tpu.memory_space<vmem>>, vector<256x128xbf16>
    %cst_19 = arith.constant dense<0.000000e+00> : vector<8x128xf32>
    %24 = tpu.matmul %17, %23, %cst_19 {dimension_numbers = #tpu.dot_dimension_numbers<[1], [0], [0], [1], [0, 0, 1, 1], [], []>} : vector<8x256xbf16>, vector<256x128xbf16>, vector<8x128xf32> -> vector<8x128xf32>
    %c0_20 = arith.constant 0 : index
    %c384 = arith.constant 384 : index
    %25 = vector.load %arg4[%c0_20, %c384] : memref<256x512xbf16, #tpu.memory_space<vmem>>, vector<256x128xbf16>
    %cst_21 = arith.constant dense<0.000000e+00> : vector<8x128xf32>
    %26 = tpu.matmul %17, %25, %cst_21 {dimension_numbers = #tpu.dot_dimension_numbers<[1], [0], [0], [1], [0, 0, 1, 1], [], []>} : vector<8x256xbf16>, vector<256x128xbf16>, vector<8x128xf32> -> vector<8x128xf32>
    %27 = arith.maximumf %24, %26 : vector<8x128xf32>
    %28 = arith.maximumf %22, %27 : vector<8x128xf32>
    %c0_22 = arith.constant 0 : index
    %c0_23 = arith.constant 0 : index
    %29 = vector.load %arg5[%c0_22, %c0_23] : memref<1x128xf32, #tpu.memory_space<vmem>>, vector<1x128xf32>
    %30 = vector.broadcast %29 : vector<1x128xf32> to vector<8x128xf32>
    %31 = arith.addf %28, %30 : vector<8x128xf32>
    %cst_24 = arith.constant 0.000000e+00 : f32
    %32 = vector.broadcast %cst_24 : f32 to vector<8x128xf32>
    %33 = arith.maximumf %31, %32 : vector<8x128xf32>
    %34 = arith.truncf %33 : vector<8x128xf32> to vector<8x128xbf16>
    %c0_25 = arith.constant 0 : index
    %c0_26 = arith.constant 0 : index
    %35 = vector.load %arg6[%c0_25, %c0_26] : memref<128x128xbf16, #tpu.memory_space<vmem>>, vector<128x128xbf16>
    %cst_27 = arith.constant dense<0.000000e+00> : vector<8x128xf32>
    %36 = tpu.matmul %34, %35, %cst_27 {dimension_numbers = #tpu.dot_dimension_numbers<[1], [0], [0], [1], [0, 0, 1, 1], [], []>} : vector<8x128xbf16>, vector<128x128xbf16>, vector<8x128xf32> -> vector<8x128xf32>
    %c0_28 = arith.constant 0 : index
    %c0_29 = arith.constant 0 : index
    %37 = vector.load %arg7[%c0_28, %c0_29] : memref<1x128xf32, #tpu.memory_space<vmem>>, vector<1x128xf32>
    %38 = vector.broadcast %37 : vector<1x128xf32> to vector<8x128xf32>
    %39 = arith.addf %36, %38 : vector<8x128xf32>
    %cst_30 = arith.constant 0.000000e+00 : f32
    %40 = vector.broadcast %cst_30 : f32 to vector<8x128xf32>
    %41 = arith.maximumf %39, %40 : vector<8x128xf32>
    %42 = arith.truncf %41 : vector<8x128xf32> to vector<8x128xbf16>
    %c0_31 = arith.constant 0 : index
    %c0_32 = arith.constant 0 : index
    %43 = vector.load %arg8[%c0_31, %c0_32] : memref<128x128xbf16, #tpu.memory_space<vmem>>, vector<128x128xbf16>
    %cst_33 = arith.constant dense<0.000000e+00> : vector<8x128xf32>
    %44 = tpu.matmul %42, %43, %cst_33 {dimension_numbers = #tpu.dot_dimension_numbers<[1], [0], [0], [1], [0, 0, 1, 1], [], []>} : vector<8x128xbf16>, vector<128x128xbf16>, vector<8x128xf32> -> vector<8x128xf32>
    %c0_34 = arith.constant 0 : index
    %c0_35 = arith.constant 0 : index
    %45 = vector.load %arg9[%c0_34, %c0_35] : memref<1x128xf32, #tpu.memory_space<vmem>>, vector<1x128xf32>
    %46 = vector.broadcast %45 : vector<1x128xf32> to vector<8x128xf32>
    %47 = arith.addf %44, %46 : vector<8x128xf32>
    %48 = arith.truncf %47 : vector<8x128xf32> to vector<8x128xbf16>
    %c0_36 = arith.constant 0 : index
    %c0_37 = arith.constant 0 : index
    %49 = vector.load %arg10[%c0_36, %c0_37] : memref<8x128xbf16, #tpu.memory_space<vmem>>, vector<8x128xbf16>
    tpu.vector_store %arg10[%c0_36, %c0_37], %48 {strides = array<i32>} : memref<8x128xbf16, #tpu.memory_space<vmem>>, vector<8x128xbf16>,
    return
  }
  func.func @transform_0(%arg0: i32) -> (i32, i32) {
    %c0_i32 = arith.constant 0 : i32
    %c0_i32_0 = arith.constant 0 : i32
    return %arg0, %c0_i32 : i32, i32
  }
  func.func @transform_1(%arg0: i32) -> (i32, i32) {
    %c0_i32 = arith.constant 0 : i32
    %c0_i32_0 = arith.constant 0 : i32
    %c0_i32_1 = arith.constant 0 : i32
    return %c0_i32, %c0_i32_0 : i32, i32
  }
  func.func @transform_2(%arg0: i32) -> (i32, i32) {
    %c0_i32 = arith.constant 0 : i32
    %c0_i32_0 = arith.constant 0 : i32
    %c0_i32_1 = arith.constant 0 : i32
    return %c0_i32, %c0_i32_0 : i32, i32
  }
  func.func @transform_3(%arg0: i32) -> (i32, i32) {
    %c0_i32 = arith.constant 0 : i32
    %c0_i32_0 = arith.constant 0 : i32
    %c0_i32_1 = arith.constant 0 : i32
    return %c0_i32, %c0_i32_0 : i32, i32
  }
  func.func @transform_4(%arg0: i32) -> (i32, i32) {
    %c0_i32 = arith.constant 0 : i32
    %c0_i32_0 = arith.constant 0 : i32
    %c0_i32_1 = arith.constant 0 : i32
    return %c0_i32, %c0_i32_0 : i32, i32
  }
  func.func @transform_5(%arg0: i32) -> (i32, i32) {
    %c0_i32 = arith.constant 0 : i32
    %c0_i32_0 = arith.constant 0 : i32
    %c0_i32_1 = arith.constant 0 : i32
    return %c0_i32, %c0_i32_0 : i32, i32
  }
  func.func @transform_6(%arg0: i32) -> (i32, i32) {
    %c0_i32 = arith.constant 0 : i32
    %c0_i32_0 = arith.constant 0 : i32
    %c0_i32_1 = arith.constant 0 : i32
    return %c0_i32, %c0_i32_0 : i32, i32
  }
  func.func @transform_7(%arg0: i32) -> (i32, i32) {
    %c0_i32 = arith.constant 0 : i32
    %c0_i32_0 = arith.constant 0 : i32
    %c0_i32_1 = arith.constant 0 : i32
    return %c0_i32, %c0_i32_0 : i32, i32
  }
  func.func @transform_8(%arg0: i32) -> (i32, i32) {
    %c0_i32 = arith.constant 0 : i32
    %c0_i32_0 = arith.constant 0 : i32
    %c0_i32_1 = arith.constant 0 : i32
    return %c0_i32, %c0_i32_0 : i32, i32
  }
  func.func @transform_9(%arg0: i32) -> (i32, i32) {
    %c0_i32 = arith.constant 0 : i32
    %c0_i32_0 = arith.constant 0 : i32
    return %arg0, %c0_i32 : i32, i32
  }
}

</mosaic_0001>

<llo_original>
// kernel: tpu_custom_call.1
$region0: #{tpu_custom_call.1}
  #allocation0 [shape = 'u32[]', space=smem, size = 0x4, offset = 0x4, fixed_abs, tag = 'smem constant byte address 0x4 - core index']
  #allocation1 [shape = 'u32[144,128]{1,0:T(1,128)}', space=vmem, size = 0x12000, scoped, tag = 'internal scratch']
  %s0 = inlined_call_operand.hbm [shape: bf16[16,256], index: 0, kind: input, shape index: {}]
  %s1 = inlined_call_operand.hbm [shape: bf16[256,1024], index: 1, kind: input, shape index: {}]
  %s2 = inlined_call_operand.vmem [shape: f32[1,256], index: 2, kind: input, shape index: {}]
  %s3 = inlined_call_operand.hbm [shape: bf16[256,512], index: 3, kind: input, shape index: {}]
  %s4 = inlined_call_operand.vmem [shape: f32[1,128], index: 4, kind: input, shape index: {}]
  %s5 = inlined_call_operand.hbm [shape: bf16[128,128], index: 5, kind: input, shape index: {}]
  %s6 = inlined_call_operand.vmem [shape: f32[1,128], index: 6, kind: input, shape index: {}]
  %s7 = inlined_call_operand.hbm [shape: bf16[128,128], index: 7, kind: input, shape index: {}]
  %s8 = inlined_call_operand.vmem [shape: f32[1,128], index: 8, kind: input, shape index: {}]
  %s9 = inlined_call_operand.hbm [shape: bf16[16,128], index: 9, kind: output, shape index: {}]
  %s10 = sld [smem:[#allocation0]]
  $region89: #{tpu_custom_call.1} parent=0
    _
  %s12 = ssub.s32 1, %s10
  %s13 = scalar_select 0, %s12, %s10
  $region1: #{tpu_custom_call.1} parent=0
    #allocation2 [shape = 'u8[8192]{0}', space=vmem, size = 0x2000, scoped, tag = 'input window, operand 0']
    #allocation3 [shape = 's32[2]{0}', space=sflag, size = 0x8, scoped, tag = 'scoped memory for tpu_custom_call.1']
    #allocation4 [shape = 's32[2]{0}', space=sflag, size = 0x8, scoped, tag = 'scoped memory for tpu_custom_call.1']
    #allocation5 [shape = 'u8[524288]{0}', space=vmem, size = 0x80000, scoped, tag = 'input window, operand 1, single buffered']
    #allocation6 [shape = 's32[1]{0}', space=sflag, size = 0x4, scoped, tag = 'scoped memory for tpu_custom_call.1']
    #allocation7 [shape = 'u8[262144]{0}', space=vmem, size = 0x40000, scoped, tag = 'input window, operand 3, single buffered']
    #allocation8 [shape = 'u8[32768]{0}', space=vmem, size = 0x8000, scoped, tag = 'input window, operand 5, single buffered']
    #allocation9 [shape = 's32[1]{0}', space=sflag, size = 0x4, scoped, tag = 'scoped memory for tpu_custom_call.1']
    #allocation10 [shape = 'u8[32768]{0}', space=vmem, size = 0x8000, scoped, tag = 'input window, operand 7, single buffered']
    #allocation11 [shape = 'u8[4096]{0}', space=vmem, size = 0x1000, scoped, tag = 'output window, operand 0']
    %14 = vsyncpa [#allocation3], 0
    %s15 = scalar_lea.sflag [#allocation3], 1
    %16 = vsyncpa %s15, 0
    %17 = vsyncpa [#allocation6], 0
    %18 = vsyncpa [#allocation9], 0
    %19 = vsyncpa [#allocation4], 0
    %s20 = scalar_lea.sflag [#allocation4], 1
    %21 = vsyncpa %s20, 0
    loop: start=0, step=1, limit=4
    $region2: #{tpu_custom_call.1} parent=1 // loop_pre_header
      _
    $region3: #{tpu_custom_call.1} parent=1 // loop_header
      %s23 = sphi 0, %s27
      %p24 = scmp.ge.s32.totalorder %s23, 4
      %s33 = sphi 0, %s35
      %s36 = sphi 0, %s33
      %s37 = sphi 0, %s36
      %s53 = sphi 0, %s37
      %s57 = sphi 0, %s57
      %s59 = sphi 0, %s57
      %s60 = sphi 0, %s59
      %s74 = sphi 0, %s60
      %s78 = sphi 0, %s78
      %s80 = sphi 0, %s78
      %s81 = sphi 0, %s80
      %s95 = sphi 0, %s81
      %s99 = sphi 0, %s99
      %s101 = sphi 0, %s99
      %s102 = sphi 0, %s101
      %s116 = sphi 0, %s102
      %s120 = sphi 0, %s120
      %s122 = sphi 0, %s120
      %s123 = sphi 0, %s122
      %s137 = sphi 0, %s123
      %s141 = sphi 0, %s141
      %s143 = sphi 0, %s141
      %s144 = sphi 0, %s143
      %s158 = sphi 0, %s144
      %s162 = sphi 0, %s162
      %s164 = sphi 0, %s162
      %s165 = sphi 0, %s164
      %s179 = sphi 0, %s165
      %s183 = sphi 0, %s183
      %s185 = sphi 0, %s183
      %s186 = sphi 0, %s185
      %s200 = sphi 0, %s186
      %s204 = sphi 0, %s204
      %s206 = sphi 0, %s204
      %s207 = sphi 0, %s206
      %s221 = sphi 0, %s207
      %s227 = sphi 0, %s229
      %s230 = sphi 0, %s227
      %s231 = sphi 0, %s230
      %s247 = sphi 0, %s231
    $region4: #{tpu_custom_call.1} parent=1 // loop_header_branch
      %26 = sbr.rel (%p24) target = $region8
    $region5: #{tpu_custom_call.1} parent=1 // loop_body
      %s28 = ssub.s32 %s23, 1
      %s29 = ssub.s32 %s23, 2
      %s30 = sadd.s32 %s23, 1
      %s31 = ssub.s32 %s23, %s30
      %p32 = scmp.eq.s32.totalorder %s31, 0
      %s34 = sadd.s32 %s33, 1
      %s35 = scalar_select %p32, %s33, %s34
      %p38 = pneg %p32
      %p39 = scmp.eq.s32.totalorder %s23, 1
      %p40 = por %p38, %p39
      %p41 = scmp.ne.s32.totalorder %s33, %s36
      %p42 = scmp.eq.s32.totalorder %s23, 0
      %p43 = por %p41, %p42
      %p44 = scmp.ne.s32.totalorder %s33, %s36
      %p45 = scmp.eq.s32.totalorder %s28, 1
      %p46 = por %p44, %p45
      %p47 = scmp.ne.s32.totalorder %s36, %s37
      %p48 = scmp.eq.s32.totalorder %s28, 0
      %p49 = por %p47, %p48
      %p50 = scmp.ne.s32.totalorder %s36, %s37
      %p51 = scmp.eq.s32.totalorder %s29, 1
      %p52 = por %p50, %p51
      %p54 = scmp.ne.s32.totalorder %s37, %s53
      %p55 = scmp.eq.s32.totalorder %s29, 0
      %p56 = por %p54, %p55
      %s58 = sadd.s32 %s57, 1
      %p61 = scmp.eq.s32.totalorder %s23, 1
      %p62 = scmp.ne.s32.totalorder %s57, %s59
      %p63 = scmp.eq.s32.totalorder %s23, 0
      %p64 = por %p62, %p63
      %p65 = scmp.ne.s32.totalorder %s57, %s59
      %p66 = scmp.eq.s32.totalorder %s28, 1
      %p67 = por %p65, %p66
      %p68 = scmp.ne.s32.totalorder %s59, %s60
      %p69 = scmp.eq.s32.totalorder %s28, 0
      %p70 = por %p68, %p69
      %p71 = scmp.ne.s32.totalorder %s59, %s60
      %p72 = scmp.eq.s32.totalorder %s29, 1
      %p73 = por %p71, %p72
      %p75 = scmp.ne.s32.totalorder %s60, %s74
      %p76 = scmp.eq.s32.totalorder %s29, 0
      %p77 = por %p75, %p76
      %s79 = sadd.s32 %s78, 1
      %p82 = scmp.eq.s32.totalorder %s23, 1
      %p83 = scmp.ne.s32.totalorder %s78, %s80
      %p84 = scmp.eq.s32.totalorder %s23, 0
      %p85 = por %p83, %p84
      %p86 = scmp.ne.s32.totalorder %s78, %s80
      %p87 = scmp.eq.s32.totalorder %s28, 1
      %p88 = por %p86, %p87
      %p89 = scmp.ne.s32.totalorder %s80, %s81
      %p90 = scmp.eq.s32.totalorder %s28, 0
      %p91 = por %p89, %p90
      %p92 = scmp.ne.s32.totalorder %s80, %s81
      %p93 = scmp.eq.s32.totalorder %s29, 1
      %p94 = por %p92, %p93
      %p96 = scmp.ne.s32.totalorder %s81, %s95
      %p97 = scmp.eq.s32.totalorder %s29, 0
      %p98 = por %p96, %p97
      %s100 = sadd.s32 %s99, 1
      %p103 = scmp.eq.s32.totalorder %s23, 1
      %p104 = scmp.ne.s32.totalorder %s99, %s101
      %p105 = scmp.eq.s32.totalorder %s23, 0
      %p106 = por %p104, %p105
      %p107 = scmp.ne.s32.totalorder %s99, %s101
      %p108 = scmp.eq.s32.totalorder %s28, 1
      %p109 = por %p107, %p108
      %p110 = scmp.ne.s32.totalorder %s101, %s102
      %p111 = scmp.eq.s32.totalorder %s28, 0
      %p112 = por %p110, %p111
      %p113 = scmp.ne.s32.totalorder %s101, %s102
      %p114 = scmp.eq.s32.totalorder %s29, 1
      %p115 = por %p113, %p114
      %p117 = scmp.ne.s32.totalorder %s102, %s116
      %p118 = scmp.eq.s32.totalorder %s29, 0
      %p119 = por %p117, %p118
      %s121 = sadd.s32 %s120, 1
      %p124 = scmp.eq.s32.totalorder %s23, 1
      %p125 = scmp.ne.s32.totalorder %s120, %s122
      %p126 = scmp.eq.s32.totalorder %s23, 0
      %p127 = por %p125, %p126
      %p128 = scmp.ne.s32.totalorder %s120, %s122
      %p129 = scmp.eq.s32.totalorder %s28, 1
      %p130 = por %p128, %p129
      %p131 = scmp.ne.s32.totalorder %s122, %s123
      %p132 = scmp.eq.s32.totalorder %s28, 0
      %p133 = por %p131, %p132
      %p134 = scmp.ne.s32.totalorder %s122, %s123
      %p135 = scmp.eq.s32.totalorder %s29, 1
      %p136 = por %p134, %p135
      %p138 = scmp.ne.s32.totalorder %s123, %s137
      %p139 = scmp.eq.s32.totalorder %s29, 0
      %p140 = por %p138, %p139
      %s142 = sadd.s32 %s141, 1
      %p145 = scmp.eq.s32.totalorder %s23, 1
      %p146 = scmp.ne.s32.totalorder %s141, %s143
      %p147 = scmp.eq.s32.totalorder %s23, 0
      %p148 = por %p146, %p147
      %p149 = scmp.ne.s32.totalorder %s141, %s143
      %p150 = scmp.eq.s32.totalorder %s28, 1
      %p151 = por %p149, %p150
      %p152 = scmp.ne.s32.totalorder %s143, %s144
      %p153 = scmp.eq.s32.totalorder %s28, 0
      %p154 = por %p152, %p153
      %p155 = scmp.ne.s32.totalorder %s143, %s144
      %p156 = scmp.eq.s32.totalorder %s29, 1
      %p157 = por %p155, %p156
      %p159 = scmp.ne.s32.totalorder %s144, %s158
      %p160 = scmp.eq.s32.totalorder %s29, 0
      %p161 = por %p159, %p160
      %s163 = sadd.s32 %s162, 1
      %p166 = scmp.eq.s32.totalorder %s23, 1
      %p167 = scmp.ne.s32.totalorder %s162, %s164
      %p168 = scmp.eq.s32.totalorder %s23, 0
      %p169 = por %p167, %p168
      %p170 = scmp.ne.s32.totalorder %s162, %s164
      %p171 = scmp.eq.s32.totalorder %s28, 1
      %p172 = por %p170, %p171
      %p173 = scmp.ne.s32.totalorder %s164, %s165
      %p174 = scmp.eq.s32.totalorder %s28, 0
      %p175 = por %p173, %p174
      %p176 = scmp.ne.s32.totalorder %s164, %s165
      %p177 = scmp.eq.s32.totalorder %s29, 1
      %p178 = por %p176, %p177
      %p180 = scmp.ne.s32.totalorder %s165, %s179
      %p181 = scmp.eq.s32.totalorder %s29, 0
      %p182 = por %p180, %p181
      %s184 = sadd.s32 %s183, 1
      %p187 = scmp.eq.s32.totalorder %s23, 1
      %p188 = scmp.ne.s32.totalorder %s183, %s185
      %p189 = scmp.eq.s32.totalorder %s23, 0
      %p190 = por %p188, %p189
      %p191 = scmp.ne.s32.totalorder %s183, %s185
      %p192 = scmp.eq.s32.totalorder %s28, 1
      %p193 = por %p191, %p192
      %p194 = scmp.ne.s32.totalorder %s185, %s186
      %p195 = scmp.eq.s32.totalorder %s28, 0
      %p196 = por %p194, %p195
      %p197 = scmp.ne.s32.totalorder %s185, %s186
      %p198 = scmp.eq.s32.totalorder %s29, 1
      %p199 = por %p197, %p198
      %p201 = scmp.ne.s32.totalorder %s186, %s200
      %p202 = scmp.eq.s32.totalorder %s29, 0
      %p203 = por %p201, %p202
      %s205 = sadd.s32 %s204, 1
      %p208 = scmp.eq.s32.totalorder %s23, 1
      %p209 = scmp.ne.s32.totalorder %s204, %s206
      %p210 = scmp.eq.s32.totalorder %s23, 0
      %p211 = por %p209, %p210
      %p212 = scmp.ne.s32.totalorder %s204, %s206
      %p213 = scmp.eq.s32.totalorder %s28, 1
      %p214 = por %p212, %p213
      %p215 = scmp.ne.s32.totalorder %s206, %s207
      %p216 = scmp.eq.s32.totalorder %s28, 0
      %p217 = por %p215, %p216
      %p218 = scmp.ne.s32.totalorder %s206, %s207
      %p219 = scmp.eq.s32.totalorder %s29, 1
      %p220 = por %p218, %p219
      %p222 = scmp.ne.s32.totalorder %s207, %s221
      %p223 = scmp.eq.s32.totalorder %s29, 0
      %p224 = por %p222, %p223
      %s225 = ssub.s32 %s23, %s30
      %p226 = scmp.eq.s32.totalorder %s225, 0
      %s228 = sadd.s32 %s227, 1
      %s229 = scalar_select %p226, %s227, %s228
      %p232 = pneg %p226
      %p233 = scmp.eq.s32.totalorder %s23, 1
      %p234 = por %p232, %p233
      %p235 = scmp.ne.s32.totalorder %s227, %s230
      %p236 = scmp.eq.s32.totalorder %s23, 0
      %p237 = por %p235, %p236
      %p238 = scmp.ne.s32.totalorder %s227, %s230
      %p239 = scmp.eq.s32.totalorder %s28, 1
      %p240 = por %p238, %p239
      %p241 = scmp.ne.s32.totalorder %s230, %s231
      %p242 = scmp.eq.s32.totalorder %s28, 0
      %p243 = por %p241, %p242
      %p244 = scmp.ne.s32.totalorder %s230, %s231
      %p245 = scmp.eq.s32.totalorder %s29, 1
      %p246 = por %p244, %p245
      %p248 = scmp.ne.s32.totalorder %s231, %s247
      %p249 = scmp.eq.s32.totalorder %s29, 0
      %p250 = por %p248, %p249
      %p251 = scmp.le.s32.totalorder 1, %s23
      %p252 = scmp.lt.s32.totalorder %s23, 3
      %p253 = pnand %p251, %p252
      %p254 = pneg %p253
      // Predicated region
      $region9: #{tpu_custom_call.1} parent=5 // pred_check
        _
      $region10: #{tpu_custom_call.1} parent=5 // pred_check_branch
        %256 = sbr.rel (%p253) target = $region12
      $region11: #{tpu_custom_call.1} parent=5 // pred_region
        %s257 = ssub.s32 %s23, 1
        // Predicated region
        $region13: #{tpu_custom_call.1} parent=11 // pred_check
          %p258 = pneg %p70
        $region14: #{tpu_custom_call.1} parent=11 // pred_check_branch
          %260 = sbr.rel (%p258) target = $region16
        $region15: #{tpu_custom_call.1} parent=11 // pred_region
          %s262 = ssub.s32 16384, 16384
          %263 = vsyncadd [#allocation6], %s262
          %s264 = sshll.u32 [#allocation5], 4
          %s265 = int_to_ptr.vmem [resolvable:$true] %s264
          %270 = dma.hbm_to_vmem [thread:$0]  %s1, 16384, %s265, [#allocation6], 512, 512, 32
        $region16: #{tpu_custom_call.1} parent=11 // pred_fallthru
          _
        // Predicated region
        $region17: #{tpu_custom_call.1} parent=11 // pred_check
          %p271 = pneg %p91
        $region18: #{tpu_custom_call.1} parent=11 // pred_check_branch
          %273 = sbr.rel (%p271) target = $region20
        $region19: #{tpu_custom_call.1} parent=11 // pred_region
          _
        $region20: #{tpu_custom_call.1} parent=11 // pred_fallthru
          _
        // Predicated region
        $region21: #{tpu_custom_call.1} parent=11 // pred_check
          %p274 = pneg %p112
        $region22: #{tpu_custom_call.1} parent=11 // pred_check_branch
          %276 = sbr.rel (%p274) target = $region24
        $region23: #{tpu_custom_call.1} parent=11 // pred_region
          %s278 = ssub.s32 8192, 8192
          %279 = vsyncadd [#allocation6], %s278
          %s280 = sshll.u32 [#allocation7], 4
          %s281 = int_to_ptr.vmem [resolvable:$true] %s280
          %286 = dma.hbm_to_vmem [thread:$0]  %s3, 8192, %s281, [#allocation6], 256, 256, 16
        $region24: #{tpu_custom_call.1} parent=11 // pred_fallthru
          _
        // Predicated region
        $region25: #{tpu_custom_call.1} parent=11 // pred_check
          %p287 = pneg %p133
        $region26: #{tpu_custom_call.1} parent=11 // pred_check_branch
          %289 = sbr.rel (%p287) target = $region28
        $region27: #{tpu_custom_call.1} parent=11 // pred_region
          _
        $region28: #{tpu_custom_call.1} parent=11 // pred_fallthru
          _
        // Predicated region
        $region29: #{tpu_custom_call.1} parent=11 // pred_check
          %p290 = pneg %p154
        $region30: #{tpu_custom_call.1} parent=11 // pred_check_branch
          %292 = sbr.rel (%p290) target = $region32
        $region31: #{tpu_custom_call.1} parent=11 // pred_region
          %s294 = ssub.s32 1024, 1024
          %295 = vsyncadd [#allocation9], %s294
          %s296 = sshll.u32 [#allocation8], 4
          %s297 = int_to_ptr.vmem [resolvable:$true] %s296
          %302 = dma.hbm_to_vmem [thread:$0]  %s5, 1024, %s297, [#allocation9], 64, 64, 4
        $region32: #{tpu_custom_call.1} parent=11 // pred_fallthru
          _
        // Predicated region
        $region33: #{tpu_custom_call.1} parent=11 // pred_check
          %p303 = pneg %p175
        $region34: #{tpu_custom_call.1} parent=11 // pred_check_branch
          %305 = sbr.rel (%p303) target = $region36
        $region35: #{tpu_custom_call.1} parent=11 // pred_region
          _
        $region36: #{tpu_custom_call.1} parent=11 // pred_fallthru
          _
        // Predicated region
        $region37: #{tpu_custom_call.1} parent=11 // pred_check
          %p306 = pneg %p196
        $region38: #{tpu_custom_call.1} parent=11 // pred_check_branch
          %308 = sbr.rel (%p306) target = $region40
        $region39: #{tpu_custom_call.1} parent=11 // pred_region
          %s310 = ssub.s32 1024, 1024
          %311 = vsyncadd [#allocation9], %s310
          %s312 = sshll.u32 [#allocation10], 4
          %s313 = int_to_ptr.vmem [resolvable:$true] %s312
          %318 = dma.hbm_to_vmem [thread:$0]  %s7, 1024, %s313, [#allocation9], 64, 64, 4
        $region40: #{tpu_custom_call.1} parent=11 // pred_fallthru
          _
        // Predicated region
        $region41: #{tpu_custom_call.1} parent=11 // pred_check
          %p319 = pneg %p217
        $region42: #{tpu_custom_call.1} parent=11 // pred_check_branch
          %321 = sbr.rel (%p319) target = $region44
        $region43: #{tpu_custom_call.1} parent=11 // pred_region
          _
        $region44: #{tpu_custom_call.1} parent=11 // pred_fallthru
          _
      $region12: #{tpu_custom_call.1} parent=5 // pred_fallthru
        _
      %p322 = scmp.lt.s32.totalorder %s23, 2
      // Predicated region
      $region45: #{tpu_custom_call.1} parent=5 // pred_check
        %p323 = pneg %p322
      $region46: #{tpu_custom_call.1} parent=5 // pred_check_branch
        %325 = sbr.rel (%p323) target = $region48
      $region47: #{tpu_custom_call.1} parent=5 // pred_region
        // Predicated region
        $region49: #{tpu_custom_call.1} parent=47 // pred_check
          %p326 = pneg %p43
        $region50: #{tpu_custom_call.1} parent=47 // pred_check_branch
          %328 = sbr.rel (%p326) target = $region52
        $region51: #{tpu_custom_call.1} parent=47 // pred_region
          %s329 = sand.u32 %s33, 1
          %s330 = scalar_lea.sflag [#allocation3], %s329
          %s331 = sand.u32 %s33, 1
          %s332 = smul.addr %s331, 8
          %s333 = scalar_lea.vmem [#allocation2], %s332
          %s335 = ssub.s32 128, 128
          %336 = vsyncadd %s330, %s335
          %s337 = smul.addr %s23, 2
          %s338 = smul.addr %s337, 64
          %s339 = scalar_lea.hbm %s0, %s338
          %s341 = sshll.u32 %s333, 4
          %s342 = int_to_ptr.vmem [resolvable:$true] %s341
          %344 = dma.hbm_to_vmem [thread:$0]  %s339, 128, %s342, %s330
        $region52: #{tpu_custom_call.1} parent=47 // pred_fallthru
          _
      $region48: #{tpu_custom_call.1} parent=5 // pred_fallthru
        _
      %p345 = scmp.le.s32.totalorder 1, %s23
      %p346 = scmp.lt.s32.totalorder %s23, 3
      %p347 = pnand %p345, %p346
      %p348 = pneg %p347
      // Predicated region
      $region53: #{tpu_custom_call.1} parent=5 // pred_check
        _
      $region54: #{tpu_custom_call.1} parent=5 // pred_check_branch
        %350 = sbr.rel (%p347) target = $region56
      $region55: #{tpu_custom_call.1} parent=5 // pred_region
        %s351 = ssub.s32 %s23, 1
        %s352 = sand.u32 %s36, 1
        %s353 = scalar_lea.sflag [#allocation3], %s352
        %s354 = sand.u32 %s36, 1
        %s355 = smul.addr %s354, 8
        %s356 = scalar_lea.vmem [#allocation2], %s355
        // Predicated region
        $region57: #{tpu_custom_call.1} parent=55 // pred_check
          %p357 = pneg %p49
        $region58: #{tpu_custom_call.1} parent=55 // pred_check_branch
          %359 = sbr.rel (%p357) target = $region60
        $region59: #{tpu_custom_call.1} parent=55 // pred_region
          %360 = dma.done %s353, 128
        $region60: #{tpu_custom_call.1} parent=55 // pred_fallthru
          _
        // Predicated region
        $region61: #{tpu_custom_call.1} parent=55 // pred_check
          %p361 = pneg %p70
        $region62: #{tpu_custom_call.1} parent=55 // pred_check_branch
          %363 = sbr.rel (%p361) target = $region64
        $region63: #{tpu_custom_call.1} parent=55 // pred_region
          %364 = dma.done [#allocation6], 16384
        $region64: #{tpu_custom_call.1} parent=55 // pred_fallthru
          _
        // Predicated region
        $region65: #{tpu_custom_call.1} parent=55 // pred_check
          %p365 = pneg %p112
        $region66: #{tpu_custom_call.1} parent=55 // pred_check_branch
          %367 = sbr.rel (%p365) target = $region68
        $region67: #{tpu_custom_call.1} parent=55 // pred_region
          %368 = dma.done [#allocation6], 8192
        $region68: #{tpu_custom_call.1} parent=55 // pred_fallthru
          _
        // Predicated region
        $region69: #{tpu_custom_call.1} parent=55 // pred_check
          %p369 = pneg %p154
        $region70: #{tpu_custom_call.1} parent=55 // pred_check_branch
          %371 = sbr.rel (%p369) target = $region72
        $region71: #{tpu_custom_call.1} parent=55 // pred_region
          %372 = dma.done [#allocation9], 1024
        $region72: #{tpu_custom_call.1} parent=55 // pred_fallthru
          _
        // Predicated region
        $region73: #{tpu_custom_call.1} parent=55 // pred_check
          %p373 = pneg %p196
        $region74: #{tpu_custom_call.1} parent=55 // pred_check_branch
          %375 = sbr.rel (%p373) target = $region76
        $region75: #{tpu_custom_call.1} parent=55 // pred_region
          %376 = dma.done [#allocation9], 1024
        $region76: #{tpu_custom_call.1} parent=55 // pred_fallthru
          _
        %s377 = sand.u32 %s36, 1
        %s378 = scalar_lea.sflag [#allocation3], %s377
        %s379 = sand.u32 %s36, 1
        %s380 = smul.addr %s379, 8
        %s381 = scalar_lea.vmem [#allocation2], %s380
        %p382 = pneg %p49
        %p383 = pneg %p46
        %p384 = pneg %p70
        %p385 = pneg %p67
        %p386 = pneg %p91
        %p387 = pneg %p88
        %p388 = pneg %p112
        %p389 = pneg %p109
        %p390 = pneg %p133
        %p391 = pneg %p130
        %p392 = pneg %p154
        %p393 = pneg %p151
        %p394 = pneg %p175
        %p395 = pneg %p172
        %p396 = pneg %p196
        %p397 = pneg %p193
        %p398 = pneg %p217
        %p399 = pneg %p214
        %p400 = pneg %p243
        %p401 = pneg %p240
        %s402 = sand.u32 %s230, 1
        %s403 = scalar_lea.sflag [#allocation4], %s402
        %s404 = sand.u32 %s230, 1
        %s405 = smul.addr %s404, 4
        %s406 = scalar_lea.vmem [#allocation11], %s405
        %v408 = vld [vmem:[%s356] sm:$0xff]
        %v409 = vld [vmem:[#allocation5] sm:$0xff]
        %v410 = vld [vmem:[#allocation5 + $0x20] sm:$0xff]
        %v411 = vld [vmem:[#allocation5 + $0x40] sm:$0xff]
        %v412 = vld [vmem:[#allocation5 + $0x60] sm:$0xff]
        %v413 = vld [vmem:[#allocation5 + $0x80] sm:$0xff]
        %v414 = vld [vmem:[#allocation5 + $0xa0] sm:$0xff]
        %v415 = vld [vmem:[#allocation5 + $0xc0] sm:$0xff]
        %v416 = vld [vmem:[#allocation5 + $0xe0] sm:$0xff]
        %v417 = vld [vmem:[#allocation5 + $0x100] sm:$0xff]
        %v418 = vld [vmem:[#allocation5 + $0x120] sm:$0xff]
        %v419 = vld [vmem:[#allocation5 + $0x140] sm:$0xff]
        %v420 = vld [vmem:[#allocation5 + $0x160] sm:$0xff]
        %v421 = vld [vmem:[#allocation5 + $0x180] sm:$0xff]
        %v422 = vld [vmem:[#allocation5 + $0x1a0] sm:$0xff]
        %v423 = vld [vmem:[#allocation5 + $0x1c0] sm:$0xff]
        %v424 = vld [vmem:[#allocation5 + $0x1e0] sm:$0xff]
        %v425 = vld [vmem:[#allocation5 + $0x200] sm:$0xff]
        %v426 = vld [vmem:[#allocation5 + $0x220] sm:$0xff]
        %v427 = vld [vmem:[#allocation5 + $0x240] sm:$0xff]
        %v428 = vld [vmem:[#allocation5 + $0x260] sm:$0xff]
        %v429 = vld [vmem:[#allocation5 + $0x280] sm:$0xff]
        %v430 = vld [vmem:[#allocation5 + $0x2a0] sm:$0xff]
        %v431 = vld [vmem:[#allocation5 + $0x2c0] sm:$0xff]
        %v432 = vld [vmem:[#allocation5 + $0x2e0] sm:$0xff]
        %v433 = vld [vmem:[#allocation5 + $0x300] sm:$0xff]
        %v434 = vld [vmem:[#allocation5 + $0x320] sm:$0xff]
        %v435 = vld [vmem:[#allocation5 + $0x340] sm:$0xff]
        %v436 = vld [vmem:[#allocation5 + $0x360] sm:$0xff]
        %v437 = vld [vmem:[#allocation5 + $0x380] sm:$0xff]
        %v438 = vld [vmem:[#allocation5 + $0x3a0] sm:$0xff]
        %v439 = vld [vmem:[#allocation5 + $0x3c0] sm:$0xff]
        %v440 = vld [vmem:[#allocation5 + $0x3e0] sm:$0xff]
        %v442 = vunpack.c.l.b16 %v408
        %v443 = vunpack.c.h.b16 %v408
        %v444 = vpack.c.b16 %v442, %v442
        %v445 = vpack.c.b16 %v443, %v443
        %v480 = vunpack.c.l.b16 %v409
        %v481 = vunpack.c.h.b16 %v409
        %v482 = vunpack.c.l.b16 %v410
        %v483 = vunpack.c.h.b16 %v410
        %v484 = vunpack.c.l.b16 %v411
        %v485 = vunpack.c.h.b16 %v411
        %v486 = vunpack.c.l.b16 %v412
        %v487 = vunpack.c.h.b16 %v412
        %v488 = vunpack.c.l.b16 %v413
        %v489 = vunpack.c.h.b16 %v413
        %v490 = vunpack.c.l.b16 %v414
        %v491 = vunpack.c.h.b16 %v414
        %v492 = vunpack.c.l.b16 %v415
        %v493 = vunpack.c.h.b16 %v415
        %v494 = vunpack.c.l.b16 %v416
        %v495 = vunpack.c.h.b16 %v416
        %v496 = vunpack.c.l.b16 %v417
        %v497 = vunpack.c.h.b16 %v417
        %v498 = vunpack.c.l.b16 %v418
        %v499 = vunpack.c.h.b16 %v418
        %v500 = vunpack.c.l.b16 %v419
        %v501 = vunpack.c.h.b16 %v419
        %v502 = vunpack.c.l.b16 %v420
        %v503 = vunpack.c.h.b16 %v420
        %v504 = vunpack.c.l.b16 %v421
        %v505 = vunpack.c.h.b16 %v421
        %v506 = vunpack.c.l.b16 %v422
        %v507 = vunpack.c.h.b16 %v422
        %v508 = vunpack.c.l.b16 %v423
        %v509 = vunpack.c.h.b16 %v423
        %v510 = vunpack.c.l.b16 %v424
        %v511 = vunpack.c.h.b16 %v424
        %v512 = vunpack.c.l.b16 %v425
        %v513 = vunpack.c.h.b16 %v425
        %v514 = vunpack.c.l.b16 %v426
        %v515 = vunpack.c.h.b16 %v426
        %v516 = vunpack.c.l.b16 %v427
        %v517 = vunpack.c.h.b16 %v427
        %v518 = vunpack.c.l.b16 %v428
        %v519 = vunpack.c.h.b16 %v428
        %v520 = vunpack.c.l.b16 %v429
        %v521 = vunpack.c.h.b16 %v429
        %v522 = vunpack.c.l.b16 %v430
        %v523 = vunpack.c.h.b16 %v430
        %v524 = vunpack.c.l.b16 %v431
        %v525 = vunpack.c.h.b16 %v431
        %v526 = vunpack.c.l.b16 %v432
        %v527 = vunpack.c.h.b16 %v432
        %v528 = vunpack.c.l.b16 %v433
        %v529 = vunpack.c.h.b16 %v433
        %v530 = vunpack.c.l.b16 %v434
        %v531 = vunpack.c.h.b16 %v434
        %v532 = vunpack.c.l.b16 %v435
        %v533 = vunpack.c.h.b16 %v435
        %v534 = vunpack.c.l.b16 %v436
        %v535 = vunpack.c.h.b16 %v436
        %v536 = vunpack.c.l.b16 %v437
        %v537 = vunpack.c.h.b16 %v437
        %v538 = vunpack.c.l.b16 %v438
        %v539 = vunpack.c.h.b16 %v438
        %v540 = vunpack.c.l.b16 %v439
        %v541 = vunpack.c.h.b16 %v439
        %v542 = vunpack.c.l.b16 %v440
        %v543 = vunpack.c.h.b16 %v440
        %v544 = vpack.c.b16 %v482, %v480
        %v545 = vpack.c.b16 %v483, %v481
        %v546 = vpack.c.b16 %v486, %v484
        %v547 = vpack.c.b16 %v487, %v485
        %v548 = vpack.c.b16 %v490, %v488
        %v549 = vpack.c.b16 %v491, %v489
        %v550 = vpack.c.b16 %v494, %v492
        %v551 = vpack.c.b16 %v495, %v493
        %v552 = vpack.c.b16 %v498, %v496
        %v553 = vpack.c.b16 %v499, %v497
        %v554 = vpack.c.b16 %v502, %v500
        %v555 = vpack.c.b16 %v503, %v501
        %v556 = vpack.c.b16 %v506, %v504
        %v557 = vpack.c.b16 %v507, %v505
        %v558 = vpack.c.b16 %v510, %v508
        %v559 = vpack.c.b16 %v511, %v509
        %v560 = vpack.c.b16 %v514, %v512
        %v561 = vpack.c.b16 %v515, %v513
        %v562 = vpack.c.b16 %v518, %v516
        %v563 = vpack.c.b16 %v519, %v517
        %v564 = vpack.c.b16 %v522, %v520
        %v565 = vpack.c.b16 %v523, %v521
        %v566 = vpack.c.b16 %v526, %v524
        %v567 = vpack.c.b16 %v527, %v525
        %v568 = vpack.c.b16 %v530, %v528
        %v569 = vpack.c.b16 %v531, %v529
        %v570 = vpack.c.b16 %v534, %v532
        %v571 = vpack.c.b16 %v535, %v533
        %v572 = vpack.c.b16 %v538, %v536
        %v573 = vpack.c.b16 %v539, %v537
        %v574 = vpack.c.b16 %v542, %v540
        %v575 = vpack.c.b16 %v543, %v541
        %608 = vmatprep.subr.bf16.mxu0 %v559
        %609 = vmatpush1.bf16.msra.mxu0 %v558
        %610 = vmatprep.subr.bf16.mxu0 %v557
        %611 = vmatpush1.bf16.msra.mxu0 %v556
        %612 = vmatprep.subr.bf16.mxu0 %v555
        %613 = vmatpush1.bf16.msra.mxu0 %v554
        %614 = vmatprep.subr.bf16.mxu0 %v553
        %615 = vmatpush1.bf16.msra.mxu0 %v552
        %616 = vmatprep.subr.bf16.mxu0 %v551
        %617 = vmatpush1.bf16.msra.mxu0 %v550
        %618 = vmatprep.subr.bf16.mxu0 %v549
        %619 = vmatpush1.bf16.msra.mxu0 %v548
        %620 = vmatprep.subr.bf16.mxu0 %v547
        %621 = vmatpush1.bf16.msra.mxu0 %v546
        %622 = vmatprep.subr.bf16.mxu0 %v545
        %623 = vmatpush1.bf16.msra.mxu0 %v544
        %624 = vmatprep.subr.bf16.mxu0 %v575
        %625 = vmatpush2.bf16.msra.mxu0 %v574
        %626 = vmatprep.subr.bf16.mxu0 %v573
        %627 = vmatpush2.bf16.msra.mxu0 %v572
        %628 = vmatprep.subr.bf16.mxu0 %v571
        %629 = vmatpush2.bf16.msra.mxu0 %v570
        %630 = vmatprep.subr.bf16.mxu0 %v569
        %631 = vmatpush2.bf16.msra.mxu0 %v568
        %632 = vmatprep.subr.bf16.mxu0 %v567
        %633 = vmatpush2.bf16.msra.mxu0 %v566
        %634 = vmatprep.subr.bf16.mxu0 %v565
        %635 = vmatpush2.bf16.msra.mxu0 %v564
        %636 = vmatprep.subr.bf16.mxu0 %v563
        %637 = vmatpush2.bf16.msra.mxu0 %v562
        %638 = vmatprep.subr.bf16.mxu0 %v561
        %639 = vmatpush2.bf16.msra.mxu0 %v560
        %640 = vmatprep.mubr.bf16.mxu0 %v445
        %641 = vmatmul.mubr.bf16.gmra.mxu0 %v444
        %v642 = vpop.f32.mrf.mxu0
        %v643 = vadd.f32 0.0, %v642
        %v644 = vpop.f32.mrf.mxu0
        %v645 = vadd.f32 0.0, %v644
        %v646 = vpop.f32.mrf.mxu0
        %v647 = vpop.f32.mrf.mxu0
        %648 = vdwg.mxu0
        %v649 = vld [vmem:[#allocation5 + $0x8] sm:$0xff]
        %v650 = vld [vmem:[#allocation5 + $0x28] sm:$0xff]
        %v651 = vld [vmem:[#allocation5 + $0x48] sm:$0xff]
        %v652 = vld [vmem:[#allocation5 + $0x68] sm:$0xff]
        %v653 = vld [vmem:[#allocation5 + $0x88] sm:$0xff]
        %v654 = vld [vmem:[#allocation5 + $0xa8] sm:$0xff]
        %v655 = vld [vmem:[#allocation5 + $0xc8] sm:$0xff]
        %v656 = vld [vmem:[#allocation5 + $0xe8] sm:$0xff]
        %v657 = vld [vmem:[#allocation5 + $0x108] sm:$0xff]
        %v658 = vld [vmem:[#allocation5 + $0x128] sm:$0xff]
        %v659 = vld [vmem:[#allocation5 + $0x148] sm:$0xff]
        %v660 = vld [vmem:[#allocation5 + $0x168] sm:$0xff]
        %v661 = vld [vmem:[#allocation5 + $0x188] sm:$0xff]
        %v662 = vld [vmem:[#allocation5 + $0x1a8] sm:$0xff]
        %v663 = vld [vmem:[#allocation5 + $0x1c8] sm:$0xff]
        %v664 = vld [vmem:[#allocation5 + $0x1e8] sm:$0xff]
        %v665 = vld [vmem:[#allocation5 + $0x208] sm:$0xff]
        %v666 = vld [vmem:[#allocation5 + $0x228] sm:$0xff]
        %v667 = vld [vmem:[#allocation5 + $0x248] sm:$0xff]
        %v668 = vld [vmem:[#allocation5 + $0x268] sm:$0xff]
        %v669 = vld [vmem:[#allocation5 + $0x288] sm:$0xff]
        %v670 = vld [vmem:[#allocation5 + $0x2a8] sm:$0xff]
        %v671 = vld [vmem:[#allocation5 + $0x2c8] sm:$0xff]
        %v672 = vld [vmem:[#allocation5 + $0x2e8] sm:$0xff]
        %v673 = vld [vmem:[#allocation5 + $0x308] sm:$0xff]
        %v674 = vld [vmem:[#allocation5 + $0x328] sm:$0xff]
        %v675 = vld [vmem:[#allocation5 + $0x348] sm:$0xff]
        %v676 = vld [vmem:[#allocation5 + $0x368] sm:$0xff]
        %v677 = vld [vmem:[#allocation5 + $0x388] sm:$0xff]
        %v678 = vld [vmem:[#allocation5 + $0x3a8] sm:$0xff]
        %v679 = vld [vmem:[#allocation5 + $0x3c8] sm:$0xff]
        %v680 = vld [vmem:[#allocation5 + $0x3e8] sm:$0xff]
        %v713 = vunpack.c.l.b16 %v649
        %v714 = vunpack.c.h.b16 %v649
        %v715 = vunpack.c.l.b16 %v650
        %v716 = vunpack.c.h.b16 %v650
        %v717 = vunpack.c.l.b16 %v651
        %v718 = vunpack.c.h.b16 %v651
        %v719 = vunpack.c.l.b16 %v652
        %v720 = vunpack.c.h.b16 %v652
        %v721 = vunpack.c.l.b16 %v653
        %v722 = vunpack.c.h.b16 %v653
        %v723 = vunpack.c.l.b16 %v654
        %v724 = vunpack.c.h.b16 %v654
        %v725 = vunpack.c.l.b16 %v655
        %v726 = vunpack.c.h.b16 %v655
        %v727 = vunpack.c.l.b16 %v656
        %v728 = vunpack.c.h.b16 %v656
        %v729 = vunpack.c.l.b16 %v657
        %v730 = vunpack.c.h.b16 %v657
        %v731 = vunpack.c.l.b16 %v658
        %v732 = vunpack.c.h.b16 %v658
        %v733 = vunpack.c.l.b16 %v659
        %v734 = vunpack.c.h.b16 %v659
        %v735 = vunpack.c.l.b16 %v660
        %v736 = vunpack.c.h.b16 %v660
        %v737 = vunpack.c.l.b16 %v661
        %v738 = vunpack.c.h.b16 %v661
        %v739 = vunpack.c.l.b16 %v662
        %v740 = vunpack.c.h.b16 %v662
        %v741 = vunpack.c.l.b16 %v663
        %v742 = vunpack.c.h.b16 %v663
        %v743 = vunpack.c.l.b16 %v664
        %v744 = vunpack.c.h.b16 %v664
        %v745 = vunpack.c.l.b16 %v665
        %v746 = vunpack.c.h.b16 %v665
        %v747 = vunpack.c.l.b16 %v666
        %v748 = vunpack.c.h.b16 %v666
        %v749 = vunpack.c.l.b16 %v667
        %v750 = vunpack.c.h.b16 %v667
        %v751 = vunpack.c.l.b16 %v668
        %v752 = vunpack.c.h.b16 %v668
        %v753 = vunpack.c.l.b16 %v669
        %v754 = vunpack.c.h.b16 %v669
        %v755 = vunpack.c.l.b16 %v670
        %v756 = vunpack.c.h.b16 %v670
        %v757 = vunpack.c.l.b16 %v671
        %v758 = vunpack.c.h.b16 %v671
        %v759 = vunpack.c.l.b16 %v672
        %v760 = vunpack.c.h.b16 %v672
        %v761 = vunpack.c.l.b16 %v673
        %v762 = vunpack.c.h.b16 %v673
        %v763 = vunpack.c.l.b16 %v674
        %v764 = vunpack.c.h.b16 %v674
        %v765 = vunpack.c.l.b16 %v675
        %v766 = vunpack.c.h.b16 %v675
        %v767 = vunpack.c.l.b16 %v676
        %v768 = vunpack.c.h.b16 %v676
        %v769 = vunpack.c.l.b16 %v677
        %v770 = vunpack.c.h.b16 %v677
        %v771 = vunpack.c.l.b16 %v678
        %v772 = vunpack.c.h.b16 %v678
        %v773 = vunpack.c.l.b16 %v679
        %v774 = vunpack.c.h.b16 %v679
        %v775 = vunpack.c.l.b16 %v680
        %v776 = vunpack.c.h.b16 %v680
        %v777 = vpack.c.b16 %v715, %v713
        %v778 = vpack.c.b16 %v716, %v714
        %v779 = vpack.c.b16 %v719, %v717
        %v780 = vpack.c.b16 %v720, %v718
        %v781 = vpack.c.b16 %v723, %v721
        %v782 = vpack.c.b16 %v724, %v722
        %v783 = vpack.c.b16 %v727, %v725
        %v784 = vpack.c.b16 %v728, %v726
        %v785 = vpack.c.b16 %v731, %v729
        %v786 = vpack.c.b16 %v732, %v730
        %v787 = vpack.c.b16 %v735, %v733
        %v788 = vpack.c.b16 %v736, %v734
        %v789 = vpack.c.b16 %v739, %v737
        %v790 = vpack.c.b16 %v740, %v738
        %v791 = vpack.c.b16 %v743, %v741
        %v792 = vpack.c.b16 %v744, %v742
        %v793 = vpack.c.b16 %v747, %v745
        %v794 = vpack.c.b16 %v748, %v746
        %v795 = vpack.c.b16 %v751, %v749
        %v796 = vpack.c.b16 %v752, %v750
        %v797 = vpack.c.b16 %v755, %v753
        %v798 = vpack.c.b16 %v756, %v754
        %v799 = vpack.c.b16 %v759, %v757
        %v800 = vpack.c.b16 %v760, %v758
        %v801 = vpack.c.b16 %v763, %v761
        %v802 = vpack.c.b16 %v764, %v762
        %v803 = vpack.c.b16 %v767, %v765
        %v804 = vpack.c.b16 %v768, %v766
        %v805 = vpack.c.b16 %v771, %v769
        %v806 = vpack.c.b16 %v772, %v770
        %v807 = vpack.c.b16 %v775, %v773
        %v808 = vpack.c.b16 %v776, %v774
        %841 = vmatprep.subr.bf16.mxu0 %v792
        %842 = vmatpush1.bf16.msra.mxu0 %v791
        %843 = vmatprep.subr.bf16.mxu0 %v790
        %844 = vmatpush1.bf16.msra.mxu0 %v789
        %845 = vmatprep.subr.bf16.mxu0 %v788
        %846 = vmatpush1.bf16.msra.mxu0 %v787
        %847 = vmatprep.subr.bf16.mxu0 %v786
        %848 = vmatpush1.bf16.msra.mxu0 %v785
        %849 = vmatprep.subr.bf16.mxu0 %v784
        %850 = vmatpush1.bf16.msra.mxu0 %v783
        %851 = vmatprep.subr.bf16.mxu0 %v782
        %852 = vmatpush1.bf16.msra.mxu0 %v781
        %853 = vmatprep.subr.bf16.mxu0 %v780
        %854 = vmatpush1.bf16.msra.mxu0 %v779
        %855 = vmatprep.subr.bf16.mxu0 %v778
        %856 = vmatpush1.bf16.msra.mxu0 %v777
        %857 = vmatprep.subr.bf16.mxu0 %v808
        %858 = vmatpush2.bf16.msra.mxu0 %v807
        %859 = vmatprep.subr.bf16.mxu0 %v806
        %860 = vmatpush2.bf16.msra.mxu0 %v805
        %861 = vmatprep.subr.bf16.mxu0 %v804
        %862 = vmatpush2.bf16.msra.mxu0 %v803
        %863 = vmatprep.subr.bf16.mxu0 %v802
        %864 = vmatpush2.bf16.msra.mxu0 %v801
        %865 = vmatprep.subr.bf16.mxu0 %v800
        %866 = vmatpush2.bf16.msra.mxu0 %v799
        %867 = vmatprep.subr.bf16.mxu0 %v798
        %868 = vmatpush2.bf16.msra.mxu0 %v797
        %869 = vmatprep.subr.bf16.mxu0 %v796
        %870 = vmatpush2.bf16.msra.mxu0 %v795
        %871 = vmatprep.subr.bf16.mxu0 %v794
        %872 = vmatpush2.bf16.msra.mxu0 %v793
        %873 = vmatprep.mubr.bf16.mxu0 %v445
        %874 = vmatmul.mubr.bf16.gmra.mxu0 %v444
        %v875 = vpop.f32.mrf.mxu0
        %v876 = vadd.f32 0.0, %v875
        %v877 = vpop.f32.mrf.mxu0
        %v878 = vadd.f32 0.0, %v877
        %v879 = vpop.f32.mrf.mxu0
        %v880 = vpop.f32.mrf.mxu0
        %881 = vdwg.mxu0
        %v882 = vmax.f32 %v643, %v876
        %v883 = vmax.f32 %v645, %v878
        %v884 = vld [vmem:[#allocation5 + $0x10] sm:$0xff]
        %v885 = vld [vmem:[#allocation5 + $0x30] sm:$0xff]
        %v886 = vld [vmem:[#allocation5 + $0x50] sm:$0xff]
        %v887 = vld [vmem:[#allocation5 + $0x70] sm:$0xff]
        %v888 = vld [vmem:[#allocation5 + $0x90] sm:$0xff]
        %v889 = vld [vmem:[#allocation5 + $0xb0] sm:$0xff]
        %v890 = vld [vmem:[#allocation5 + $0xd0] sm:$0xff]
        %v891 = vld [vmem:[#allocation5 + $0xf0] sm:$0xff]
        %v892 = vld [vmem:[#allocation5 + $0x110] sm:$0xff]
        %v893 = vld [vmem:[#allocation5 + $0x130] sm:$0xff]
        %v894 = vld [vmem:[#allocation5 + $0x150] sm:$0xff]
        %v895 = vld [vmem:[#allocation5 + $0x170] sm:$0xff]
        %v896 = vld [vmem:[#allocation5 + $0x190] sm:$0xff]
        %v897 = vld [vmem:[#allocation5 + $0x1b0] sm:$0xff]
        %v898 = vld [vmem:[#allocation5 + $0x1d0] sm:$0xff]
        %v899 = vld [vmem:[#allocation5 + $0x1f0] sm:$0xff]
        %v900 = vld [vmem:[#allocation5 + $0x210] sm:$0xff]
        %v901 = vld [vmem:[#allocation5 + $0x230] sm:$0xff]
        %v902 = vld [vmem:[#allocation5 + $0x250] sm:$0xff]
        %v903 = vld [vmem:[#allocation5 + $0x270] sm:$0xff]
        %v904 = vld [vmem:[#allocation5 + $0x290] sm:$0xff]
        %v905 = vld [vmem:[#allocation5 + $0x2b0] sm:$0xff]
        %v906 = vld [vmem:[#allocation5 + $0x2d0] sm:$0xff]
        %v907 = vld [vmem:[#allocation5 + $0x2f0] sm:$0xff]
        %v908 = vld [vmem:[#allocation5 + $0x310] sm:$0xff]
        %v909 = vld [vmem:[#allocation5 + $0x330] sm:$0xff]
        %v910 = vld [vmem:[#allocation5 + $0x350] sm:$0xff]
        %v911 = vld [vmem:[#allocation5 + $0x370] sm:$0xff]
        %v912 = vld [vmem:[#allocation5 + $0x390] sm:$0xff]
        %v913 = vld [vmem:[#allocation5 + $0x3b0] sm:$0xff]
        %v914 = vld [vmem:[#allocation5 + $0x3d0] sm:$0xff]
        %v915 = vld [vmem:[#allocation5 + $0x3f0] sm:$0xff]
        %v948 = vunpack.c.l.b16 %v884
        %v949 = vunpack.c.h.b16 %v884
        %v950 = vunpack.c.l.b16 %v885
        %v951 = vunpack.c.h.b16 %v885
        %v952 = vunpack.c.l.b16 %v886
        %v953 = vunpack.c.h.b16 %v886
        %v954 = vunpack.c.l.b16 %v887
        %v955 = vunpack.c.h.b16 %v887
        %v956 = vunpack.c.l.b16 %v888
        %v957 = vunpack.c.h.b16 %v888
        %v958 = vunpack.c.l.b16 %v889
        %v959 = vunpack.c.h.b16 %v889
        %v960 = vunpack.c.l.b16 %v890
        %v961 = vunpack.c.h.b16 %v890
        %v962 = vunpack.c.l.b16 %v891
        %v963 = vunpack.c.h.b16 %v891
        %v964 = vunpack.c.l.b16 %v892
        %v965 = vunpack.c.h.b16 %v892
        %v966 = vunpack.c.l.b16 %v893
        %v967 = vunpack.c.h.b16 %v893
        %v968 = vunpack.c.l.b16 %v894
        %v969 = vunpack.c.h.b16 %v894
        %v970 = vunpack.c.l.b16 %v895
        %v971 = vunpack.c.h.b16 %v895
        %v972 = vunpack.c.l.b16 %v896
        %v973 = vunpack.c.h.b16 %v896
        %v974 = vunpack.c.l.b16 %v897
        %v975 = vunpack.c.h.b16 %v897
        %v976 = vunpack.c.l.b16 %v898
        %v977 = vunpack.c.h.b16 %v898
        %v978 = vunpack.c.l.b16 %v899
        %v979 = vunpack.c.h.b16 %v899
        %v980 = vunpack.c.l.b16 %v900
        %v981 = vunpack.c.h.b16 %v900
        %v982 = vunpack.c.l.b16 %v901
        %v983 = vunpack.c.h.b16 %v901
        %v984 = vunpack.c.l.b16 %v902
        %v985 = vunpack.c.h.b16 %v902
        %v986 = vunpack.c.l.b16 %v903
        %v987 = vunpack.c.h.b16 %v903
        %v988 = vunpack.c.l.b16 %v904
        %v989 = vunpack.c.h.b16 %v904
        %v990 = vunpack.c.l.b16 %v905
        %v991 = vunpack.c.h.b16 %v905
        %v992 = vunpack.c.l.b16 %v906
        %v993 = vunpack.c.h.b16 %v906
        %v994 = vunpack.c.l.b16 %v907
        %v995 = vunpack.c.h.b16 %v907
        %v996 = vunpack.c.l.b16 %v908
        %v997 = vunpack.c.h.b16 %v908
        %v998 = vunpack.c.l.b16 %v909
        %v999 = vunpack.c.h.b16 %v909
        %v1000 = vunpack.c.l.b16 %v910
        %v1001 = vunpack.c.h.b16 %v910
        %v1002 = vunpack.c.l.b16 %v911
        %v1003 = vunpack.c.h.b16 %v911
        %v1004 = vunpack.c.l.b16 %v912
        %v1005 = vunpack.c.h.b16 %v912
        %v1006 = vunpack.c.l.b16 %v913
        %v1007 = vunpack.c.h.b16 %v913
        %v1008 = vunpack.c.l.b16 %v914
        %v1009 = vunpack.c.h.b16 %v914
        %v1010 = vunpack.c.l.b16 %v915
        %v1011 = vunpack.c.h.b16 %v915
        %v1012 = vpack.c.b16 %v950, %v948
        %v1013 = vpack.c.b16 %v951, %v949
        %v1014 = vpack.c.b16 %v954, %v952
        %v1015 = vpack.c.b16 %v955, %v953
        %v1016 = vpack.c.b16 %v958, %v956
        %v1017 = vpack.c.b16 %v959, %v957
        %v1018 = vpack.c.b16 %v962, %v960
        %v1019 = vpack.c.b16 %v963, %v961
        %v1020 = vpack.c.b16 %v966, %v964
        %v1021 = vpack.c.b16 %v967, %v965
        %v1022 = vpack.c.b16 %v970, %v968
        %v1023 = vpack.c.b16 %v971, %v969
        %v1024 = vpack.c.b16 %v974, %v972
        %v1025 = vpack.c.b16 %v975, %v973
        %v1026 = vpack.c.b16 %v978, %v976
        %v1027 = vpack.c.b16 %v979, %v977
        %v1028 = vpack.c.b16 %v982, %v980
        %v1029 = vpack.c.b16 %v983, %v981
        %v1030 = vpack.c.b16 %v986, %v984
        %v1031 = vpack.c.b16 %v987, %v985
        %v1032 = vpack.c.b16 %v990, %v988
        %v1033 = vpack.c.b16 %v991, %v989
        %v1034 = vpack.c.b16 %v994, %v992
        %v1035 = vpack.c.b16 %v995, %v993
        %v1036 = vpack.c.b16 %v998, %v996
        %v1037 = vpack.c.b16 %v999, %v997
        %v1038 = vpack.c.b16 %v1002, %v1000
        %v1039 = vpack.c.b16 %v1003, %v1001
        %v1040 = vpack.c.b16 %v1006, %v1004
        %v1041 = vpack.c.b16 %v1007, %v1005
        %v1042 = vpack.c.b16 %v1010, %v1008
        %v1043 = vpack.c.b16 %v1011, %v1009
        %1076 = vmatprep.subr.bf16.mxu0 %v1027
        %1077 = vmatpush1.bf16.msra.mxu0 %v1026
        %1078 = vmatprep.subr.bf16.mxu0 %v1025
        %1079 = vmatpush1.bf16.msra.mxu0 %v1024
        %1080 = vmatprep.subr.bf16.mxu0 %v1023
        %1081 = vmatpush1.bf16.msra.mxu0 %v1022
        %1082 = vmatprep.subr.bf16.mxu0 %v1021
        %1083 = vmatpush1.bf16.msra.mxu0 %v1020
        %1084 = vmatprep.subr.bf16.mxu0 %v1019
        %1085 = vmatpush1.bf16.msra.mxu0 %v1018
        %1086 = vmatprep.subr.bf16.mxu0 %v1017
        %1087 = vmatpush1.bf16.msra.mxu0 %v1016
        %1088 = vmatprep.subr.bf16.mxu0 %v1015
        %1089 = vmatpush1.bf16.msra.mxu0 %v1014
        %1090 = vmatprep.subr.bf16.mxu0 %v1013
        %1091 = vmatpush1.bf16.msra.mxu0 %v1012
        %1092 = vmatprep.subr.bf16.mxu0 %v1043
        %1093 = vmatpush2.bf16.msra.mxu0 %v1042
        %1094 = vmatprep.subr.bf16.mxu0 %v1041
        %1095 = vmatpush2.bf16.msra.mxu0 %v1040
        %1096 = vmatprep.subr.bf16.mxu0 %v1039
        %1097 = vmatpush2.bf16.msra.mxu0 %v1038
        %1098 = vmatprep.subr.bf16.mxu0 %v1037
        %1099 = vmatpush2.bf16.msra.mxu0 %v1036
        %1100 = vmatprep.subr.bf16.mxu0 %v1035
        %1101 = vmatpush2.bf16.msra.mxu0 %v1034
        %1102 = vmatprep.subr.bf16.mxu0 %v1033
        %1103 = vmatpush2.bf16.msra.mxu0 %v1032
        %1104 = vmatprep.subr.bf16.mxu0 %v1031
        %1105 = vmatpush2.bf16.msra.mxu0 %v1030
        %1106 = vmatprep.subr.bf16.mxu0 %v1029
        %1107 = vmatpush2.bf16.msra.mxu0 %v1028
        %1108 = vmatprep.mubr.bf16.mxu0 %v445
        %1109 = vmatmul.mubr.bf16.gmra.mxu0 %v444
        %v1110 = vpop.f32.mrf.mxu0
        %v1111 = vadd.f32 0.0, %v1110
        %v1112 = vpop.f32.mrf.mxu0
        %v1113 = vadd.f32 0.0, %v1112
        %v1114 = vpop.f32.mrf.mxu0
        %v1115 = vpop.f32.mrf.mxu0
        %1116 = vdwg.mxu0
        %v1117 = vld [vmem:[#allocation5 + $0x18] sm:$0xff]
        %v1118 = vld [vmem:[#allocation5 + $0x38] sm:$0xff]
        %v1119 = vld [vmem:[#allocation5 + $0x58] sm:$0xff]
        %v1120 = vld [vmem:[#allocation5 + $0x78] sm:$0xff]
        %v1121 = vld [vmem:[#allocation5 + $0x98] sm:$0xff]
        %v1122 = vld [vmem:[#allocation5 + $0xb8] sm:$0xff]
        %v1123 = vld [vmem:[#allocation5 + $0xd8] sm:$0xff]
        %v1124 = vld [vmem:[#allocation5 + $0xf8] sm:$0xff]
        %v1125 = vld [vmem:[#allocation5 + $0x118] sm:$0xff]
        %v1126 = vld [vmem:[#allocation5 + $0x138] sm:$0xff]
        %v1127 = vld [vmem:[#allocation5 + $0x158] sm:$0xff]
        %v1128 = vld [vmem:[#allocation5 + $0x178] sm:$0xff]
        %v1129 = vld [vmem:[#allocation5 + $0x198] sm:$0xff]
        %v1130 = vld [vmem:[#allocation5 + $0x1b8] sm:$0xff]
        %v1131 = vld [vmem:[#allocation5 + $0x1d8] sm:$0xff]
        %v1132 = vld [vmem:[#allocation5 + $0x1f8] sm:$0xff]
        %v1133 = vld [vmem:[#allocation5 + $0x218] sm:$0xff]
        %v1134 = vld [vmem:[#allocation5 + $0x238] sm:$0xff]
        %v1135 = vld [vmem:[#allocation5 + $0x258] sm:$0xff]
        %v1136 = vld [vmem:[#allocation5 + $0x278] sm:$0xff]
        %v1137 = vld [vmem:[#allocation5 + $0x298] sm:$0xff]
        %v1138 = vld [vmem:[#allocation5 + $0x2b8] sm:$0xff]
        %v1139 = vld [vmem:[#allocation5 + $0x2d8] sm:$0xff]
        %v1140 = vld [vmem:[#allocation5 + $0x2f8] sm:$0xff]
        %v1141 = vld [vmem:[#allocation5 + $0x318] sm:$0xff]
        %v1142 = vld [vmem:[#allocation5 + $0x338] sm:$0xff]
        %v1143 = vld [vmem:[#allocation5 + $0x358] sm:$0xff]
        %v1144 = vld [vmem:[#allocation5 + $0x378] sm:$0xff]
        %v1145 = vld [vmem:[#allocation5 + $0x398] sm:$0xff]
        %v1146 = vld [vmem:[#allocation5 + $0x3b8] sm:$0xff]
        %v1147 = vld [vmem:[#allocation5 + $0x3d8] sm:$0xff]
        %v1148 = vld [vmem:[#allocation5 + $0x3f8] sm:$0xff]
        %v1181 = vunpack.c.l.b16 %v1117
        %v1182 = vunpack.c.h.b16 %v1117
        %v1183 = vunpack.c.l.b16 %v1118
        %v1184 = vunpack.c.h.b16 %v1118
        %v1185 = vunpack.c.l.b16 %v1119
        %v1186 = vunpack.c.h.b16 %v1119
        %v1187 = vunpack.c.l.b16 %v1120
        %v1188 = vunpack.c.h.b16 %v1120
        %v1189 = vunpack.c.l.b16 %v1121
        %v1190 = vunpack.c.h.b16 %v1121
        %v1191 = vunpack.c.l.b16 %v1122
        %v1192 = vunpack.c.h.b16 %v1122
        %v1193 = vunpack.c.l.b16 %v1123
        %v1194 = vunpack.c.h.b16 %v1123
        %v1195 = vunpack.c.l.b16 %v1124
        %v1196 = vunpack.c.h.b16 %v1124
        %v1197 = vunpack.c.l.b16 %v1125
        %v1198 = vunpack.c.h.b16 %v1125
        %v1199 = vunpack.c.l.b16 %v1126
        %v1200 = vunpack.c.h.b16 %v1126
        %v1201 = vunpack.c.l.b16 %v1127
        %v1202 = vunpack.c.h.b16 %v1127
        %v1203 = vunpack.c.l.b16 %v1128
        %v1204 = vunpack.c.h.b16 %v1128
        %v1205 = vunpack.c.l.b16 %v1129
        %v1206 = vunpack.c.h.b16 %v1129
        %v1207 = vunpack.c.l.b16 %v1130
        %v1208 = vunpack.c.h.b16 %v1130
        %v1209 = vunpack.c.l.b16 %v1131
        %v1210 = vunpack.c.h.b16 %v1131
        %v1211 = vunpack.c.l.b16 %v1132
        %v1212 = vunpack.c.h.b16 %v1132
        %v1213 = vunpack.c.l.b16 %v1133
        %v1214 = vunpack.c.h.b16 %v1133
        %v1215 = vunpack.c.l.b16 %v1134
        %v1216 = vunpack.c.h.b16 %v1134
        %v1217 = vunpack.c.l.b16 %v1135
        %v1218 = vunpack.c.h.b16 %v1135
        %v1219 = vunpack.c.l.b16 %v1136
        %v1220 = vunpack.c.h.b16 %v1136
        %v1221 = vunpack.c.l.b16 %v1137
        %v1222 = vunpack.c.h.b16 %v1137
        %v1223 = vunpack.c.l.b16 %v1138
        %v1224 = vunpack.c.h.b16 %v1138
        %v1225 = vunpack.c.l.b16 %v1139
        %v1226 = vunpack.c.h.b16 %v1139
        %v1227 = vunpack.c.l.b16 %v1140
        %v1228 = vunpack.c.h.b16 %v1140
        %v1229 = vunpack.c.l.b16 %v1141
        %v1230 = vunpack.c.h.b16 %v1141
        %v1231 = vunpack.c.l.b16 %v1142
        %v1232 = vunpack.c.h.b16 %v1142
        %v1233 = vunpack.c.l.b16 %v1143
        %v1234 = vunpack.c.h.b16 %v1143
        %v1235 = vunpack.c.l.b16 %v1144
        %v1236 = vunpack.c.h.b16 %v1144
        %v1237 = vunpack.c.l.b16 %v1145
        %v1238 = vunpack.c.h.b16 %v1145
        %v1239 = vunpack.c.l.b16 %v1146
        %v1240 = vunpack.c.h.b16 %v1146
        %v1241 = vunpack.c.l.b16 %v1147
        %v1242 = vunpack.c.h.b16 %v1147
        %v1243 = vunpack.c.l.b16 %v1148
        %v1244 = vunpack.c.h.b16 %v1148
        %v1245 = vpack.c.b16 %v1183, %v1181
        %v1246 = vpack.c.b16 %v1184, %v1182
        %v1247 = vpack.c.b16 %v1187, %v1185
        %v1248 = vpack.c.b16 %v1188, %v1186
        %v1249 = vpack.c.b16 %v1191, %v1189
        %v1250 = vpack.c.b16 %v1192, %v1190
        %v1251 = vpack.c.b16 %v1195, %v1193
        %v1252 = vpack.c.b16 %v1196, %v1194
        %v1253 = vpack.c.b16 %v1199, %v1197
        %v1254 = vpack.c.b16 %v1200, %v1198
        %v1255 = vpack.c.b16 %v1203, %v1201
        %v1256 = vpack.c.b16 %v1204, %v1202
        %v1257 = vpack.c.b16 %v1207, %v1205
        %v1258 = vpack.c.b16 %v1208, %v1206
        %v1259 = vpack.c.b16 %v1211, %v1209
        %v1260 = vpack.c.b16 %v1212, %v1210
        %v1261 = vpack.c.b16 %v1215, %v1213
        %v1262 = vpack.c.b16 %v1216, %v1214
        %v1263 = vpack.c.b16 %v1219, %v1217
        %v1264 = vpack.c.b16 %v1220, %v1218
        %v1265 = vpack.c.b16 %v1223, %v1221
        %v1266 = vpack.c.b16 %v1224, %v1222
        %v1267 = vpack.c.b16 %v1227, %v1225
        %v1268 = vpack.c.b16 %v1228, %v1226
        %v1269 = vpack.c.b16 %v1231, %v1229
        %v1270 = vpack.c.b16 %v1232, %v1230
        %v1271 = vpack.c.b16 %v1235, %v1233
        %v1272 = vpack.c.b16 %v1236, %v1234
        %v1273 = vpack.c.b16 %v1239, %v1237
        %v1274 = vpack.c.b16 %v1240, %v1238
        %v1275 = vpack.c.b16 %v1243, %v1241
        %v1276 = vpack.c.b16 %v1244, %v1242
        %1309 = vmatprep.subr.bf16.mxu0 %v1260
        %1310 = vmatpush1.bf16.msra.mxu0 %v1259
        %1311 = vmatprep.subr.bf16.mxu0 %v1258
        %1312 = vmatpush1.bf16.msra.mxu0 %v1257
        %1313 = vmatprep.subr.bf16.mxu0 %v1256
        %1314 = vmatpush1.bf16.msra.mxu0 %v1255
        %1315 = vmatprep.subr.bf16.mxu0 %v1254
        %1316 = vmatpush1.bf16.msra.mxu0 %v1253
        %1317 = vmatprep.subr.bf16.mxu0 %v1252
        %1318 = vmatpush1.bf16.msra.mxu0 %v1251
        %1319 = vmatprep.subr.bf16.mxu0 %v1250
        %1320 = vmatpush1.bf16.msra.mxu0 %v1249
        %1321 = vmatprep.subr.bf16.mxu0 %v1248
        %1322 = vmatpush1.bf16.msra.mxu0 %v1247
        %1323 = vmatprep.subr.bf16.mxu0 %v1246
        %1324 = vmatpush1.bf16.msra.mxu0 %v1245
        %1325 = vmatprep.subr.bf16.mxu0 %v1276
        %1326 = vmatpush2.bf16.msra.mxu0 %v1275
        %1327 = vmatprep.subr.bf16.mxu0 %v1274
        %1328 = vmatpush2.bf16.msra.mxu0 %v1273
        %1329 = vmatprep.subr.bf16.mxu0 %v1272
        %1330 = vmatpush2.bf16.msra.mxu0 %v1271
        %1331 = vmatprep.subr.bf16.mxu0 %v1270
        %1332 = vmatpush2.bf16.msra.mxu0 %v1269
        %1333 = vmatprep.subr.bf16.mxu0 %v1268
        %1334 = vmatpush2.bf16.msra.mxu0 %v1267
        %1335 = vmatprep.subr.bf16.mxu0 %v1266
        %1336 = vmatpush2.bf16.msra.mxu0 %v1265
        %1337 = vmatprep.subr.bf16.mxu0 %v1264
        %1338 = vmatpush2.bf16.msra.mxu0 %v1263
        %1339 = vmatprep.subr.bf16.mxu0 %v1262
        %1340 = vmatpush2.bf16.msra.mxu0 %v1261
        %1341 = vmatprep.mubr.bf16.mxu0 %v445
        %1342 = vmatmul.mubr.bf16.gmra.mxu0 %v444
        %v1343 = vpop.f32.mrf.mxu0
        %v1344 = vadd.f32 0.0, %v1343
        %v1345 = vpop.f32.mrf.mxu0
        %v1346 = vadd.f32 0.0, %v1345
        %v1347 = vpop.f32.mrf.mxu0
        %v1348 = vpop.f32.mrf.mxu0
        %1349 = vdwg.mxu0
        %v1350 = vmax.f32 %v1111, %v1344
        %v1351 = vmax.f32 %v1113, %v1346
        %v1352 = vmax.f32 %v882, %v1350
        %v1353 = vmax.f32 %v883, %v1351
        %v1354 = vld [vmem:[%s2] sm:$0x3]
        %v1356 = vlaneseq
        %v1357 = vshrl.u32 %v1356, 7
        %v1358 = vsub.s32 0, %v1357
        %v1359 = vrot.slane %v1354, %v1358
        %v1360 = vlaneseq
        %v1361 = vshrl.u32 %v1360, 7
        %v1362 = vsub.s32 1, %v1361
        %v1363 = vrot.slane %v1354, %v1362
        %v1366 = vadd.f32 %v1352, %v1359
        %v1367 = vadd.f32 %v1353, %v1363
        %v1368 = vmax.f32 %v1366, 0.0
        %v1369 = vmax.f32 %v1367, 0.0
        %v1370 = vpack.c.bf16 %v1368, %v1368
        %v1371 = vpack.c.bf16 %v1369, %v1369
        %v1372 = vld [vmem:[#allocation7] sm:$0xf]
        %v1373 = vld [vmem:[#allocation7 + $0x10] sm:$0xf]
        %v1374 = vld [vmem:[#allocation7 + $0x20] sm:$0xf]
        %v1375 = vld [vmem:[#allocation7 + $0x30] sm:$0xf]
        %v1376 = vld [vmem:[#allocation7 + $0x40] sm:$0xf]
        %v1377 = vld [vmem:[#allocation7 + $0x50] sm:$0xf]
        %v1378 = vld [vmem:[#allocation7 + $0x60] sm:$0xf]
        %v1379 = vld [vmem:[#allocation7 + $0x70] sm:$0xf]
        %v1380 = vld [vmem:[#allocation7 + $0x80] sm:$0xf]
        %v1381 = vld [vmem:[#allocation7 + $0x90] sm:$0xf]
        %v1382 = vld [vmem:[#allocation7 + $0xa0] sm:$0xf]
        %v1383 = vld [vmem:[#allocation7 + $0xb0] sm:$0xf]
        %v1384 = vld [vmem:[#allocation7 + $0xc0] sm:$0xf]
        %v1385 = vld [vmem:[#allocation7 + $0xd0] sm:$0xf]
        %v1386 = vld [vmem:[#allocation7 + $0xe0] sm:$0xf]
        %v1387 = vld [vmem:[#allocation7 + $0xf0] sm:$0xf]
        %v1388 = vld [vmem:[#allocation7 + $0x100] sm:$0xf]
        %v1389 = vld [vmem:[#allocation7 + $0x110] sm:$0xf]
        %v1390 = vld [vmem:[#allocation7 + $0x120] sm:$0xf]
        %v1391 = vld [vmem:[#allocation7 + $0x130] sm:$0xf]
        %v1392 = vld [vmem:[#allocation7 + $0x140] sm:$0xf]
        %v1393 = vld [vmem:[#allocation7 + $0x150] sm:$0xf]
        %v1394 = vld [vmem:[#allocation7 + $0x160] sm:$0xf]
        %v1395 = vld [vmem:[#allocation7 + $0x170] sm:$0xf]
        %v1396 = vld [vmem:[#allocation7 + $0x180] sm:$0xf]
        %v1397 = vld [vmem:[#allocation7 + $0x190] sm:$0xf]
        %v1398 = vld [vmem:[#allocation7 + $0x1a0] sm:$0xf]
        %v1399 = vld [vmem:[#allocation7 + $0x1b0] sm:$0xf]
        %v1400 = vld [vmem:[#allocation7 + $0x1c0] sm:$0xf]
        %v1401 = vld [vmem:[#allocation7 + $0x1d0] sm:$0xf]
        %v1402 = vld [vmem:[#allocation7 + $0x1e0] sm:$0xf]
        %v1403 = vld [vmem:[#allocation7 + $0x1f0] sm:$0xf]
        %v1436 = vunpack.c.l.b16 %v1372
        %v1437 = vunpack.c.l.b16 %v1373
        %v1438 = vunpack.c.l.b16 %v1374
        %v1439 = vunpack.c.l.b16 %v1375
        %v1440 = vunpack.c.l.b16 %v1376
        %v1441 = vunpack.c.l.b16 %v1377
        %v1442 = vunpack.c.l.b16 %v1378
        %v1443 = vunpack.c.l.b16 %v1379
        %v1444 = vunpack.c.l.b16 %v1380
        %v1445 = vunpack.c.l.b16 %v1381
        %v1446 = vunpack.c.l.b16 %v1382
        %v1447 = vunpack.c.l.b16 %v1383
        %v1448 = vunpack.c.l.b16 %v1384
        %v1449 = vunpack.c.l.b16 %v1385
        %v1450 = vunpack.c.l.b16 %v1386
        %v1451 = vunpack.c.l.b16 %v1387
        %v1452 = vunpack.c.l.b16 %v1388
        %v1453 = vunpack.c.l.b16 %v1389
        %v1454 = vunpack.c.l.b16 %v1390
        %v1455 = vunpack.c.l.b16 %v1391
        %v1456 = vunpack.c.l.b16 %v1392
        %v1457 = vunpack.c.l.b16 %v1393
        %v1458 = vunpack.c.l.b16 %v1394
        %v1459 = vunpack.c.l.b16 %v1395
        %v1460 = vunpack.c.l.b16 %v1396
        %v1461 = vunpack.c.l.b16 %v1397
        %v1462 = vunpack.c.l.b16 %v1398
        %v1463 = vunpack.c.l.b16 %v1399
        %v1464 = vunpack.c.l.b16 %v1400
        %v1465 = vunpack.c.l.b16 %v1401
        %v1466 = vunpack.c.l.b16 %v1402
        %v1467 = vunpack.c.l.b16 %v1403
        %v1468 = vpack.c.b16 %v1437, %v1436
        %v1469 = vpack.c.b16 %v1439, %v1438
        %v1470 = vpack.c.b16 %v1441, %v1440
        %v1471 = vpack.c.b16 %v1443, %v1442
        %v1472 = vpack.c.b16 %v1445, %v1444
        %v1473 = vpack.c.b16 %v1447, %v1446
        %v1474 = vpack.c.b16 %v1449, %v1448
        %v1475 = vpack.c.b16 %v1451, %v1450
        %v1476 = vpack.c.b16 %v1453, %v1452
        %v1477 = vpack.c.b16 %v1455, %v1454
        %v1478 = vpack.c.b16 %v1457, %v1456
        %v1479 = vpack.c.b16 %v1459, %v1458
        %v1480 = vpack.c.b16 %v1461, %v1460
        %v1481 = vpack.c.b16 %v1463, %v1462
        %v1482 = vpack.c.b16 %v1465, %v1464
        %v1483 = vpack.c.b16 %v1467, %v1466
        %1500 = vmatprep.subr.bf16.mxu0 0
        %1501 = vmatpush1.bf16.msra.mxu0 %v1475
        %1502 = vmatprep.subr.bf16.mxu0 0
        %1503 = vmatpush1.bf16.msra.mxu0 %v1474
        %1504 = vmatprep.subr.bf16.mxu0 0
        %1505 = vmatpush1.bf16.msra.mxu0 %v1473
        %1506 = vmatprep.subr.bf16.mxu0 0
        %1507 = vmatpush1.bf16.msra.mxu0 %v1472
        %1508 = vmatprep.subr.bf16.mxu0 0
        %1509 = vmatpush1.bf16.msra.mxu0 %v1471
        %1510 = vmatprep.subr.bf16.mxu0 0
        %1511 = vmatpush1.bf16.msra.mxu0 %v1470
        %1512 = vmatprep.subr.bf16.mxu0 0
        %1513 = vmatpush1.bf16.msra.mxu0 %v1469
        %1514 = vmatprep.subr.bf16.mxu0 0
        %1515 = vmatpush1.bf16.msra.mxu0 %v1468
        %1516 = vmatprep.subr.bf16.mxu0 0
        %1517 = vmatpush2.bf16.msra.mxu0 %v1483
        %1518 = vmatprep.subr.bf16.mxu0 0
        %1519 = vmatpush2.bf16.msra.mxu0 %v1482
        %1520 = vmatprep.subr.bf16.mxu0 0
        %1521 = vmatpush2.bf16.msra.mxu0 %v1481
        %1522 = vmatprep.subr.bf16.mxu0 0
        %1523 = vmatpush2.bf16.msra.mxu0 %v1480
        %1524 = vmatprep.subr.bf16.mxu0 0
        %1525 = vmatpush2.bf16.msra.mxu0 %v1479
        %1526 = vmatprep.subr.bf16.mxu0 0
        %1527 = vmatpush2.bf16.msra.mxu0 %v1478
        %1528 = vmatprep.subr.bf16.mxu0 0
        %1529 = vmatpush2.bf16.msra.mxu0 %v1477
        %1530 = vmatprep.subr.bf16.mxu0 0
        %1531 = vmatpush2.bf16.msra.mxu0 %v1476
        %1532 = vmatprep.mubr.bf16.mxu0 %v1371
        %1533 = vmatmul.mubr.bf16.gmra.mxu0 %v1370
        %v1534 = vpop.f32.mrf.mxu0
        %v1535 = vadd.f32 0.0, %v1534
        %v1536 = vpop.f32.mrf.mxu0
        %v1537 = vpop.f32.mrf.mxu0
        %v1538 = vpop.f32.mrf.mxu0
        %1539 = vdwg.mxu0
        %v1540 = vld [vmem:[#allocation7 + $0x4] sm:$0xf]
        %v1541 = vld [vmem:[#allocation7 + $0x14] sm:$0xf]
        %v1542 = vld [vmem:[#allocation7 + $0x24] sm:$0xf]
        %v1543 = vld [vmem:[#allocation7 + $0x34] sm:$0xf]
        %v1544 = vld [vmem:[#allocation7 + $0x44] sm:$0xf]
        %v1545 = vld [vmem:[#allocation7 + $0x54] sm:$0xf]
        %v1546 = vld [vmem:[#allocation7 + $0x64] sm:$0xf]
        %v1547 = vld [vmem:[#allocation7 + $0x74] sm:$0xf]
        %v1548 = vld [vmem:[#allocation7 + $0x84] sm:$0xf]
        %v1549 = vld [vmem:[#allocation7 + $0x94] sm:$0xf]
        %v1550 = vld [vmem:[#allocation7 + $0xa4] sm:$0xf]
        %v1551 = vld [vmem:[#allocation7 + $0xb4] sm:$0xf]
        %v1552 = vld [vmem:[#allocation7 + $0xc4] sm:$0xf]
        %v1553 = vld [vmem:[#allocation7 + $0xd4] sm:$0xf]
        %v1554 = vld [vmem:[#allocation7 + $0xe4] sm:$0xf]
        %v1555 = vld [vmem:[#allocation7 + $0xf4] sm:$0xf]
        %v1556 = vld [vmem:[#allocation7 + $0x104] sm:$0xf]
        %v1557 = vld [vmem:[#allocation7 + $0x114] sm:$0xf]
        %v1558 = vld [vmem:[#allocation7 + $0x124] sm:$0xf]
        %v1559 = vld [vmem:[#allocation7 + $0x134] sm:$0xf]
        %v1560 = vld [vmem:[#allocation7 + $0x144] sm:$0xf]
        %v1561 = vld [vmem:[#allocation7 + $0x154] sm:$0xf]
        %v1562 = vld [vmem:[#allocation7 + $0x164] sm:$0xf]
        %v1563 = vld [vmem:[#allocation7 + $0x174] sm:$0xf]
        %v1564 = vld [vmem:[#allocation7 + $0x184] sm:$0xf]
        %v1565 = vld [vmem:[#allocation7 + $0x194] sm:$0xf]
        %v1566 = vld [vmem:[#allocation7 + $0x1a4] sm:$0xf]
        %v1567 = vld [vmem:[#allocation7 + $0x1b4] sm:$0xf]
        %v1568 = vld [vmem:[#allocation7 + $0x1c4] sm:$0xf]
        %v1569 = vld [vmem:[#allocation7 + $0x1d4] sm:$0xf]
        %v1570 = vld [vmem:[#allocation7 + $0x1e4] sm:$0xf]
        %v1571 = vld [vmem:[#allocation7 + $0x1f4] sm:$0xf]
        %v1604 = vunpack.c.l.b16 %v1540
        %v1605 = vunpack.c.l.b16 %v1541
        %v1606 = vunpack.c.l.b16 %v1542
        %v1607 = vunpack.c.l.b16 %v1543
        %v1608 = vunpack.c.l.b16 %v1544
        %v1609 = vunpack.c.l.b16 %v1545
        %v1610 = vunpack.c.l.b16 %v1546
        %v1611 = vunpack.c.l.b16 %v1547
        %v1612 = vunpack.c.l.b16 %v1548
        %v1613 = vunpack.c.l.b16 %v1549
        %v1614 = vunpack.c.l.b16 %v1550
        %v1615 = vunpack.c.l.b16 %v1551
        %v1616 = vunpack.c.l.b16 %v1552
        %v1617 = vunpack.c.l.b16 %v1553
        %v1618 = vunpack.c.l.b16 %v1554
        %v1619 = vunpack.c.l.b16 %v1555
        %v1620 = vunpack.c.l.b16 %v1556
        %v1621 = vunpack.c.l.b16 %v1557
        %v1622 = vunpack.c.l.b16 %v1558
        %v1623 = vunpack.c.l.b16 %v1559
        %v1624 = vunpack.c.l.b16 %v1560
        %v1625 = vunpack.c.l.b16 %v1561
        %v1626 = vunpack.c.l.b16 %v1562
        %v1627 = vunpack.c.l.b16 %v1563
        %v1628 = vunpack.c.l.b16 %v1564
        %v1629 = vunpack.c.l.b16 %v1565
        %v1630 = vunpack.c.l.b16 %v1566
        %v1631 = vunpack.c.l.b16 %v1567
        %v1632 = vunpack.c.l.b16 %v1568
        %v1633 = vunpack.c.l.b16 %v1569
        %v1634 = vunpack.c.l.b16 %v1570
        %v1635 = vunpack.c.l.b16 %v1571
        %v1636 = vpack.c.b16 %v1605, %v1604
        %v1637 = vpack.c.b16 %v1607, %v1606
        %v1638 = vpack.c.b16 %v1609, %v1608
        %v1639 = vpack.c.b16 %v1611, %v1610
        %v1640 = vpack.c.b16 %v1613, %v1612
        %v1641 = vpack.c.b16 %v1615, %v1614
        %v1642 = vpack.c.b16 %v1617, %v1616
        %v1643 = vpack.c.b16 %v1619, %v1618
        %v1644 = vpack.c.b16 %v1621, %v1620
        %v1645 = vpack.c.b16 %v1623, %v1622
        %v1646 = vpack.c.b16 %v1625, %v1624
        %v1647 = vpack.c.b16 %v1627, %v1626
        %v1648 = vpack.c.b16 %v1629, %v1628
        %v1649 = vpack.c.b16 %v1631, %v1630
        %v1650 = vpack.c.b16 %v1633, %v1632
        %v1651 = vpack.c.b16 %v1635, %v1634
        %1668 = vmatprep.subr.bf16.mxu0 0
        %1669 = vmatpush1.bf16.msra.mxu0 %v1643
        %1670 = vmatprep.subr.bf16.mxu0 0
        %1671 = vmatpush1.bf16.msra.mxu0 %v1642
        %1672 = vmatprep.subr.bf16.mxu0 0
        %1673 = vmatpush1.bf16.msra.mxu0 %v1641
        %1674 = vmatprep.subr.bf16.mxu0 0
        %1675 = vmatpush1.bf16.msra.mxu0 %v1640
        %1676 = vmatprep.subr.bf16.mxu0 0
        %1677 = vmatpush1.bf16.msra.mxu0 %v1639
        %1678 = vmatprep.subr.bf16.mxu0 0
        %1679 = vmatpush1.bf16.msra.mxu0 %v1638
        %1680 = vmatprep.subr.bf16.mxu0 0
        %1681 = vmatpush1.bf16.msra.mxu0 %v1637
        %1682 = vmatprep.subr.bf16.mxu0 0
        %1683 = vmatpush1.bf16.msra.mxu0 %v1636
        %1684 = vmatprep.subr.bf16.mxu0 0
        %1685 = vmatpush2.bf16.msra.mxu0 %v1651
        %1686 = vmatprep.subr.bf16.mxu0 0
        %1687 = vmatpush2.bf16.msra.mxu0 %v1650
        %1688 = vmatprep.subr.bf16.mxu0 0
        %1689 = vmatpush2.bf16.msra.mxu0 %v1649
        %1690 = vmatprep.subr.bf16.mxu0 0
        %1691 = vmatpush2.bf16.msra.mxu0 %v1648
        %1692 = vmatprep.subr.bf16.mxu0 0
        %1693 = vmatpush2.bf16.msra.mxu0 %v1647
        %1694 = vmatprep.subr.bf16.mxu0 0
        %1695 = vmatpush2.bf16.msra.mxu0 %v1646
        %1696 = vmatprep.subr.bf16.mxu0 0
        %1697 = vmatpush2.bf16.msra.mxu0 %v1645
        %1698 = vmatprep.subr.bf16.mxu0 0
        %1699 = vmatpush2.bf16.msra.mxu0 %v1644
        %1700 = vmatprep.mubr.bf16.mxu0 %v1371
        %1701 = vmatmul.mubr.bf16.gmra.mxu0 %v1370
        %v1702 = vpop.f32.mrf.mxu0
        %v1703 = vadd.f32 0.0, %v1702
        %v1704 = vpop.f32.mrf.mxu0
        %v1705 = vpop.f32.mrf.mxu0
        %v1706 = vpop.f32.mrf.mxu0
        %1707 = vdwg.mxu0
        %v1708 = vmax.f32 %v1535, %v1703
        %v1709 = vld [vmem:[#allocation7 + $0x8] sm:$0xf]
        %v1710 = vld [vmem:[#allocation7 + $0x18] sm:$0xf]
        %v1711 = vld [vmem:[#allocation7 + $0x28] sm:$0xf]
        %v1712 = vld [vmem:[#allocation7 + $0x38] sm:$0xf]
        %v1713 = vld [vmem:[#allocation7 + $0x48] sm:$0xf]
        %v1714 = vld [vmem:[#allocation7 + $0x58] sm:$0xf]
        %v1715 = vld [vmem:[#allocation7 + $0x68] sm:$0xf]
        %v1716 = vld [vmem:[#allocation7 + $0x78] sm:$0xf]
        %v1717 = vld [vmem:[#allocation7 + $0x88] sm:$0xf]
        %v1718 = vld [vmem:[#allocation7 + $0x98] sm:$0xf]
        %v1719 = vld [vmem:[#allocation7 + $0xa8] sm:$0xf]
        %v1720 = vld [vmem:[#allocation7 + $0xb8] sm:$0xf]
        %v1721 = vld [vmem:[#allocation7 + $0xc8] sm:$0xf]
        %v1722 = vld [vmem:[#allocation7 + $0xd8] sm:$0xf]
        %v1723 = vld [vmem:[#allocation7 + $0xe8] sm:$0xf]
        %v1724 = vld [vmem:[#allocation7 + $0xf8] sm:$0xf]
        %v1725 = vld [vmem:[#allocation7 + $0x108] sm:$0xf]
        %v1726 = vld [vmem:[#allocation7 + $0x118] sm:$0xf]
        %v1727 = vld [vmem:[#allocation7 + $0x128] sm:$0xf]
        %v1728 = vld [vmem:[#allocation7 + $0x138] sm:$0xf]
        %v1729 = vld [vmem:[#allocation7 + $0x148] sm:$0xf]
        %v1730 = vld [vmem:[#allocation7 + $0x158] sm:$0xf]
        %v1731 = vld [vmem:[#allocation7 + $0x168] sm:$0xf]
        %v1732 = vld [vmem:[#allocation7 + $0x178] sm:$0xf]
        %v1733 = vld [vmem:[#allocation7 + $0x188] sm:$0xf]
        %v1734 = vld [vmem:[#allocation7 + $0x198] sm:$0xf]
        %v1735 = vld [vmem:[#allocation7 + $0x1a8] sm:$0xf]
        %v1736 = vld [vmem:[#allocation7 + $0x1b8] sm:$0xf]
        %v1737 = vld [vmem:[#allocation7 + $0x1c8] sm:$0xf]
        %v1738 = vld [vmem:[#allocation7 + $0x1d8] sm:$0xf]
        %v1739 = vld [vmem:[#allocation7 + $0x1e8] sm:$0xf]
        %v1740 = vld [vmem:[#allocation7 + $0x1f8] sm:$0xf]
        %v1773 = vunpack.c.l.b16 %v1709
        %v1774 = vunpack.c.l.b16 %v1710
        %v1775 = vunpack.c.l.b16 %v1711
        %v1776 = vunpack.c.l.b16 %v1712
        %v1777 = vunpack.c.l.b16 %v1713
        %v1778 = vunpack.c.l.b16 %v1714
        %v1779 = vunpack.c.l.b16 %v1715
        %v1780 = vunpack.c.l.b16 %v1716
        %v1781 = vunpack.c.l.b16 %v1717
        %v1782 = vunpack.c.l.b16 %v1718
        %v1783 = vunpack.c.l.b16 %v1719
        %v1784 = vunpack.c.l.b16 %v1720
        %v1785 = vunpack.c.l.b16 %v1721
        %v1786 = vunpack.c.l.b16 %v1722
        %v1787 = vunpack.c.l.b16 %v1723
        %v1788 = vunpack.c.l.b16 %v1724
        %v1789 = vunpack.c.l.b16 %v1725
        %v1790 = vunpack.c.l.b16 %v1726
        %v1791 = vunpack.c.l.b16 %v1727
        %v1792 = vunpack.c.l.b16 %v1728
        %v1793 = vunpack.c.l.b16 %v1729
        %v1794 = vunpack.c.l.b16 %v1730
        %v1795 = vunpack.c.l.b16 %v1731
        %v1796 = vunpack.c.l.b16 %v1732
        %v1797 = vunpack.c.l.b16 %v1733
        %v1798 = vunpack.c.l.b16 %v1734
        %v1799 = vunpack.c.l.b16 %v1735
        %v1800 = vunpack.c.l.b16 %v1736
        %v1801 = vunpack.c.l.b16 %v1737
        %v1802 = vunpack.c.l.b16 %v1738
        %v1803 = vunpack.c.l.b16 %v1739
        %v1804 = vunpack.c.l.b16 %v1740
        %v1805 = vpack.c.b16 %v1774, %v1773
        %v1806 = vpack.c.b16 %v1776, %v1775
        %v1807 = vpack.c.b16 %v1778, %v1777
        %v1808 = vpack.c.b16 %v1780, %v1779
        %v1809 = vpack.c.b16 %v1782, %v1781
        %v1810 = vpack.c.b16 %v1784, %v1783
        %v1811 = vpack.c.b16 %v1786, %v1785
        %v1812 = vpack.c.b16 %v1788, %v1787
        %v1813 = vpack.c.b16 %v1790, %v1789
        %v1814 = vpack.c.b16 %v1792, %v1791
        %v1815 = vpack.c.b16 %v1794, %v1793
        %v1816 = vpack.c.b16 %v1796, %v1795
        %v1817 = vpack.c.b16 %v1798, %v1797
        %v1818 = vpack.c.b16 %v1800, %v1799
        %v1819 = vpack.c.b16 %v1802, %v1801
        %v1820 = vpack.c.b16 %v1804, %v1803
        %1837 = vmatprep.subr.bf16.mxu0 0
        %1838 = vmatpush1.bf16.msra.mxu0 %v1812
        %1839 = vmatprep.subr.bf16.mxu0 0
        %1840 = vmatpush1.bf16.msra.mxu0 %v1811
        %1841 = vmatprep.subr.bf16.mxu0 0
        %1842 = vmatpush1.bf16.msra.mxu0 %v1810
        %1843 = vmatprep.subr.bf16.mxu0 0
        %1844 = vmatpush1.bf16.msra.mxu0 %v1809
        %1845 = vmatprep.subr.bf16.mxu0 0
        %1846 = vmatpush1.bf16.msra.mxu0 %v1808
        %1847 = vmatprep.subr.bf16.mxu0 0
        %1848 = vmatpush1.bf16.msra.mxu0 %v1807
        %1849 = vmatprep.subr.bf16.mxu0 0
        %1850 = vmatpush1.bf16.msra.mxu0 %v1806
        %1851 = vmatprep.subr.bf16.mxu0 0
        %1852 = vmatpush1.bf16.msra.mxu0 %v1805
        %1853 = vmatprep.subr.bf16.mxu0 0
        %1854 = vmatpush2.bf16.msra.mxu0 %v1820
        %1855 = vmatprep.subr.bf16.mxu0 0
        %1856 = vmatpush2.bf16.msra.mxu0 %v1819
        %1857 = vmatprep.subr.bf16.mxu0 0
        %1858 = vmatpush2.bf16.msra.mxu0 %v1818
        %1859 = vmatprep.subr.bf16.mxu0 0
        %1860 = vmatpush2.bf16.msra.mxu0 %v1817
        %1861 = vmatprep.subr.bf16.mxu0 0
        %1862 = vmatpush2.bf16.msra.mxu0 %v1816
        %1863 = vmatprep.subr.bf16.mxu0 0
        %1864 = vmatpush2.bf16.msra.mxu0 %v1815
        %1865 = vmatprep.subr.bf16.mxu0 0
        %1866 = vmatpush2.bf16.msra.mxu0 %v1814
        %1867 = vmatprep.subr.bf16.mxu0 0
        %1868 = vmatpush2.bf16.msra.mxu0 %v1813
        %1869 = vmatprep.mubr.bf16.mxu0 %v1371
        %1870 = vmatmul.mubr.bf16.gmra.mxu0 %v1370
        %v1871 = vpop.f32.mrf.mxu0
        %v1872 = vadd.f32 0.0, %v1871
        %v1873 = vpop.f32.mrf.mxu0
        %v1874 = vpop.f32.mrf.mxu0
        %v1875 = vpop.f32.mrf.mxu0
        %1876 = vdwg.mxu0
        %v1877 = vld [vmem:[#allocation7 + $0xc] sm:$0xf]
        %v1878 = vld [vmem:[#allocation7 + $0x1c] sm:$0xf]
        %v1879 = vld [vmem:[#allocation7 + $0x2c] sm:$0xf]
        %v1880 = vld [vmem:[#allocation7 + $0x3c] sm:$0xf]
        %v1881 = vld [vmem:[#allocation7 + $0x4c] sm:$0xf]
        %v1882 = vld [vmem:[#allocation7 + $0x5c] sm:$0xf]
        %v1883 = vld [vmem:[#allocation7 + $0x6c] sm:$0xf]
        %v1884 = vld [vmem:[#allocation7 + $0x7c] sm:$0xf]
        %v1885 = vld [vmem:[#allocation7 + $0x8c] sm:$0xf]
        %v1886 = vld [vmem:[#allocation7 + $0x9c] sm:$0xf]
        %v1887 = vld [vmem:[#allocation7 + $0xac] sm:$0xf]
        %v1888 = vld [vmem:[#allocation7 + $0xbc] sm:$0xf]
        %v1889 = vld [vmem:[#allocation7 + $0xcc] sm:$0xf]
        %v1890 = vld [vmem:[#allocation7 + $0xdc] sm:$0xf]
        %v1891 = vld [vmem:[#allocation7 + $0xec] sm:$0xf]
        %v1892 = vld [vmem:[#allocation7 + $0xfc] sm:$0xf]
        %v1893 = vld [vmem:[#allocation7 + $0x10c] sm:$0xf]
        %v1894 = vld [vmem:[#allocation7 + $0x11c] sm:$0xf]
        %v1895 = vld [vmem:[#allocation7 + $0x12c] sm:$0xf]
        %v1896 = vld [vmem:[#allocation7 + $0x13c] sm:$0xf]
        %v1897 = vld [vmem:[#allocation7 + $0x14c] sm:$0xf]
        %v1898 = vld [vmem:[#allocation7 + $0x15c] sm:$0xf]
        %v1899 = vld [vmem:[#allocation7 + $0x16c] sm:$0xf]
        %v1900 = vld [vmem:[#allocation7 + $0x17c] sm:$0xf]
        %v1901 = vld [vmem:[#allocation7 + $0x18c] sm:$0xf]
        %v1902 = vld [vmem:[#allocation7 + $0x19c] sm:$0xf]
        %v1903 = vld [vmem:[#allocation7 + $0x1ac] sm:$0xf]
        %v1904 = vld [vmem:[#allocation7 + $0x1bc] sm:$0xf]
        %v1905 = vld [vmem:[#allocation7 + $0x1cc] sm:$0xf]
        %v1906 = vld [vmem:[#allocation7 + $0x1dc] sm:$0xf]
        %v1907 = vld [vmem:[#allocation7 + $0x1ec] sm:$0xf]
        %v1908 = vld [vmem:[#allocation7 + $0x1fc] sm:$0xf]
        %v1941 = vunpack.c.l.b16 %v1877
        %v1942 = vunpack.c.l.b16 %v1878
        %v1943 = vunpack.c.l.b16 %v1879
        %v1944 = vunpack.c.l.b16 %v1880
        %v1945 = vunpack.c.l.b16 %v1881
        %v1946 = vunpack.c.l.b16 %v1882
        %v1947 = vunpack.c.l.b16 %v1883
        %v1948 = vunpack.c.l.b16 %v1884
        %v1949 = vunpack.c.l.b16 %v1885
        %v1950 = vunpack.c.l.b16 %v1886
        %v1951 = vunpack.c.l.b16 %v1887
        %v1952 = vunpack.c.l.b16 %v1888
        %v1953 = vunpack.c.l.b16 %v1889
        %v1954 = vunpack.c.l.b16 %v1890
        %v1955 = vunpack.c.l.b16 %v1891
        %v1956 = vunpack.c.l.b16 %v1892
        %v1957 = vunpack.c.l.b16 %v1893
        %v1958 = vunpack.c.l.b16 %v1894
        %v1959 = vunpack.c.l.b16 %v1895
        %v1960 = vunpack.c.l.b16 %v1896
        %v1961 = vunpack.c.l.b16 %v1897
        %v1962 = vunpack.c.l.b16 %v1898
        %v1963 = vunpack.c.l.b16 %v1899
        %v1964 = vunpack.c.l.b16 %v1900
        %v1965 = vunpack.c.l.b16 %v1901
        %v1966 = vunpack.c.l.b16 %v1902
        %v1967 = vunpack.c.l.b16 %v1903
        %v1968 = vunpack.c.l.b16 %v1904
        %v1969 = vunpack.c.l.b16 %v1905
        %v1970 = vunpack.c.l.b16 %v1906
        %v1971 = vunpack.c.l.b16 %v1907
        %v1972 = vunpack.c.l.b16 %v1908
        %v1973 = vpack.c.b16 %v1942, %v1941
        %v1974 = vpack.c.b16 %v1944, %v1943
        %v1975 = vpack.c.b16 %v1946, %v1945
        %v1976 = vpack.c.b16 %v1948, %v1947
        %v1977 = vpack.c.b16 %v1950, %v1949
        %v1978 = vpack.c.b16 %v1952, %v1951
        %v1979 = vpack.c.b16 %v1954, %v1953
        %v1980 = vpack.c.b16 %v1956, %v1955
        %v1981 = vpack.c.b16 %v1958, %v1957
        %v1982 = vpack.c.b16 %v1960, %v1959
        %v1983 = vpack.c.b16 %v1962, %v1961
        %v1984 = vpack.c.b16 %v1964, %v1963
        %v1985 = vpack.c.b16 %v1966, %v1965
        %v1986 = vpack.c.b16 %v1968, %v1967
        %v1987 = vpack.c.b16 %v1970, %v1969
        %v1988 = vpack.c.b16 %v1972, %v1971
        %2005 = vmatprep.subr.bf16.mxu0 0
        %2006 = vmatpush1.bf16.msra.mxu0 %v1980
        %2007 = vmatprep.subr.bf16.mxu0 0
        %2008 = vmatpush1.bf16.msra.mxu0 %v1979
        %2009 = vmatprep.subr.bf16.mxu0 0
        %2010 = vmatpush1.bf16.msra.mxu0 %v1978
        %2011 = vmatprep.subr.bf16.mxu0 0
        %2012 = vmatpush1.bf16.msra.mxu0 %v1977
        %2013 = vmatprep.subr.bf16.mxu0 0
        %2014 = vmatpush1.bf16.msra.mxu0 %v1976
        %2015 = vmatprep.subr.bf16.mxu0 0
        %2016 = vmatpush1.bf16.msra.mxu0 %v1975
        %2017 = vmatprep.subr.bf16.mxu0 0
        %2018 = vmatpush1.bf16.msra.mxu0 %v1974
        %2019 = vmatprep.subr.bf16.mxu0 0
        %2020 = vmatpush1.bf16.msra.mxu0 %v1973
        %2021 = vmatprep.subr.bf16.mxu0 0
        %2022 = vmatpush2.bf16.msra.mxu0 %v1988
        %2023 = vmatprep.subr.bf16.mxu0 0
        %2024 = vmatpush2.bf16.msra.mxu0 %v1987
        %2025 = vmatprep.subr.bf16.mxu0 0
        %2026 = vmatpush2.bf16.msra.mxu0 %v1986
        %2027 = vmatprep.subr.bf16.mxu0 0
        %2028 = vmatpush2.bf16.msra.mxu0 %v1985
        %2029 = vmatprep.subr.bf16.mxu0 0
        %2030 = vmatpush2.bf16.msra.mxu0 %v1984
        %2031 = vmatprep.subr.bf16.mxu0 0
        %2032 = vmatpush2.bf16.msra.mxu0 %v1983
        %2033 = vmatprep.subr.bf16.mxu0 0
        %2034 = vmatpush2.bf16.msra.mxu0 %v1982
        %2035 = vmatprep.subr.bf16.mxu0 0
        %2036 = vmatpush2.bf16.msra.mxu0 %v1981
        %2037 = vmatprep.mubr.bf16.mxu0 %v1371
        %2038 = vmatmul.mubr.bf16.gmra.mxu0 %v1370
        %v2039 = vpop.f32.mrf.mxu0
        %v2040 = vadd.f32 0.0, %v2039
        %v2041 = vpop.f32.mrf.mxu0
        %v2042 = vpop.f32.mrf.mxu0
        %v2043 = vpop.f32.mrf.mxu0
        %2044 = vdwg.mxu0
        %v2045 = vmax.f32 %v1872, %v2040
        %v2046 = vmax.f32 %v1708, %v2045
        %v2047 = vld [vmem:[%s4] sm:$0x1]
        %v2049 = vlaneseq
        %v2050 = vshrl.u32 %v2049, 7
        %v2051 = vsub.s32 0, %v2050
        %v2052 = vrot.slane %v2047, %v2051
        %v2054 = vadd.f32 %v2046, %v2052
        %v2055 = vmax.f32 %v2054, 0.0
        %v2056 = vpack.c.bf16 %v2055, %v2055
        %v2057 = vld [vmem:[#allocation8] sm:$0xf]
        %v2058 = vld [vmem:[#allocation8 + $0x4] sm:$0xf]
        %v2059 = vld [vmem:[#allocation8 + $0x8] sm:$0xf]
        %v2060 = vld [vmem:[#allocation8 + $0xc] sm:$0xf]
        %v2061 = vld [vmem:[#allocation8 + $0x10] sm:$0xf]
        %v2062 = vld [vmem:[#allocation8 + $0x14] sm:$0xf]
        %v2063 = vld [vmem:[#allocation8 + $0x18] sm:$0xf]
        %v2064 = vld [vmem:[#allocation8 + $0x1c] sm:$0xf]
        %v2065 = vld [vmem:[#allocation8 + $0x20] sm:$0xf]
        %v2066 = vld [vmem:[#allocation8 + $0x24] sm:$0xf]
        %v2067 = vld [vmem:[#allocation8 + $0x28] sm:$0xf]
        %v2068 = vld [vmem:[#allocation8 + $0x2c] sm:$0xf]
        %v2069 = vld [vmem:[#allocation8 + $0x30] sm:$0xf]
        %v2070 = vld [vmem:[#allocation8 + $0x34] sm:$0xf]
        %v2071 = vld [vmem:[#allocation8 + $0x38] sm:$0xf]
        %v2072 = vld [vmem:[#allocation8 + $0x3c] sm:$0xf]
        %v2073 = vld [vmem:[%s6] sm:$0x1]
        %v2075 = vlaneseq
        %v2076 = vshrl.u32 %v2075, 7
        %v2077 = vsub.s32 0, %v2076
        %v2078 = vrot.slane %v2073, %v2077
        %v2096 = vunpack.c.l.b16 %v2057
        %v2097 = vunpack.c.l.b16 %v2058
        %v2098 = vunpack.c.l.b16 %v2059
        %v2099 = vunpack.c.l.b16 %v2060
        %v2100 = vunpack.c.l.b16 %v2061
        %v2101 = vunpack.c.l.b16 %v2062
        %v2102 = vunpack.c.l.b16 %v2063
        %v2103 = vunpack.c.l.b16 %v2064
        %v2104 = vunpack.c.l.b16 %v2065
        %v2105 = vunpack.c.l.b16 %v2066
        %v2106 = vunpack.c.l.b16 %v2067
        %v2107 = vunpack.c.l.b16 %v2068
        %v2108 = vunpack.c.l.b16 %v2069
        %v2109 = vunpack.c.l.b16 %v2070
        %v2110 = vunpack.c.l.b16 %v2071
        %v2111 = vunpack.c.l.b16 %v2072
        %v2112 = vpack.c.b16 %v2097, %v2096
        %v2113 = vpack.c.b16 %v2099, %v2098
        %v2114 = vpack.c.b16 %v2101, %v2100
        %v2115 = vpack.c.b16 %v2103, %v2102
        %v2116 = vpack.c.b16 %v2105, %v2104
        %v2117 = vpack.c.b16 %v2107, %v2106
        %v2118 = vpack.c.b16 %v2109, %v2108
        %v2119 = vpack.c.b16 %v2111, %v2110
        %2128 = vmatprep.subr.bf16.mxu0 0
        %2129 = vmatpush1.bf16.msra.mxu0 %v2119
        %2130 = vmatprep.subr.bf16.mxu0 0
        %2131 = vmatpush1.bf16.msra.mxu0 %v2118
        %2132 = vmatprep.subr.bf16.mxu0 0
        %2133 = vmatpush1.bf16.msra.mxu0 %v2117
        %2134 = vmatprep.subr.bf16.mxu0 0
        %2135 = vmatpush1.bf16.msra.mxu0 %v2116
        %2136 = vmatprep.subr.bf16.mxu0 0
        %2137 = vmatpush1.bf16.msra.mxu0 %v2115
        %2138 = vmatprep.subr.bf16.mxu0 0
        %2139 = vmatpush1.bf16.msra.mxu0 %v2114
        %2140 = vmatprep.subr.bf16.mxu0 0
        %2141 = vmatpush1.bf16.msra.mxu0 %v2113
        %2142 = vmatprep.subr.bf16.mxu0 0
        %2143 = vmatpush1.bf16.msra.mxu0 %v2112
        %2144 = vmatprep.subr.bf16.mxu0 0
        %2145 = vmatpush2.bf16.msra.mxu0 0
        %2146 = vmatprep.subr.bf16.mxu0 0
        %2147 = vmatpush2.bf16.msra.mxu0 0
        %2148 = vmatprep.subr.bf16.mxu0 0
        %2149 = vmatpush2.bf16.msra.mxu0 0
        %2150 = vmatprep.subr.bf16.mxu0 0
        %2151 = vmatpush2.bf16.msra.mxu0 0
        %2152 = vmatprep.subr.bf16.mxu0 0
        %2153 = vmatpush2.bf16.msra.mxu0 0
        %2154 = vmatprep.subr.bf16.mxu0 0
        %2155 = vmatpush2.bf16.msra.mxu0 0
        %2156 = vmatprep.subr.bf16.mxu0 0
        %2157 = vmatpush2.bf16.msra.mxu0 0
        %2158 = vmatprep.subr.bf16.mxu0 0
        %2159 = vmatpush2.bf16.msra.mxu0 0
        %2160 = vmatprep.mubr.bf16.mxu0 0
        %2161 = vmatmul.mubr.bf16.gmra.mxu0 %v2056
        %v2162 = vpop.f32.mrf.mxu0
        %v2163 = vadd.f32 %v2078, %v2162
        %v2164 = vpop.f32.mrf.mxu0
        %v2165 = vpop.f32.mrf.mxu0
        %v2166 = vpop.f32.mrf.mxu0
        %2167 = vdwg.mxu0
        %v2168 = vmax.f32 %v2163, 0.0
        %v2169 = vpack.c.bf16 %v2168, %v2168
        %v2170 = vld [vmem:[#allocation10] sm:$0xf]
        %v2171 = vld [vmem:[#allocation10 + $0x4] sm:$0xf]
        %v2172 = vld [vmem:[#allocation10 + $0x8] sm:$0xf]
        %v2173 = vld [vmem:[#allocation10 + $0xc] sm:$0xf]
        %v2174 = vld [vmem:[#allocation10 + $0x10] sm:$0xf]
        %v2175 = vld [vmem:[#allocation10 + $0x14] sm:$0xf]
        %v2176 = vld [vmem:[#allocation10 + $0x18] sm:$0xf]
        %v2177 = vld [vmem:[#allocation10 + $0x1c] sm:$0xf]
        %v2178 = vld [vmem:[#allocation10 + $0x20] sm:$0xf]
        %v2179 = vld [vmem:[#allocation10 + $0x24] sm:$0xf]
        %v2180 = vld [vmem:[#allocation10 + $0x28] sm:$0xf]
        %v2181 = vld [vmem:[#allocation10 + $0x2c] sm:$0xf]
        %v2182 = vld [vmem:[#allocation10 + $0x30] sm:$0xf]
        %v2183 = vld [vmem:[#allocation10 + $0x34] sm:$0xf]
        %v2184 = vld [vmem:[#allocation10 + $0x38] sm:$0xf]
        %v2185 = vld [vmem:[#allocation10 + $0x3c] sm:$0xf]
        %v2186 = vld [vmem:[%s8] sm:$0x1]
        %v2188 = vlaneseq
        %v2189 = vshrl.u32 %v2188, 7
        %v2190 = vsub.s32 0, %v2189
        %v2191 = vrot.slane %v2186, %v2190
        %v2209 = vunpack.c.l.b16 %v2170
        %v2210 = vunpack.c.l.b16 %v2171
        %v2211 = vunpack.c.l.b16 %v2172
        %v2212 = vunpack.c.l.b16 %v2173
        %v2213 = vunpack.c.l.b16 %v2174
        %v2214 = vunpack.c.l.b16 %v2175
        %v2215 = vunpack.c.l.b16 %v2176
        %v2216 = vunpack.c.l.b16 %v2177
        %v2217 = vunpack.c.l.b16 %v2178
        %v2218 = vunpack.c.l.b16 %v2179
        %v2219 = vunpack.c.l.b16 %v2180
        %v2220 = vunpack.c.l.b16 %v2181
        %v2221 = vunpack.c.l.b16 %v2182
        %v2222 = vunpack.c.l.b16 %v2183
        %v2223 = vunpack.c.l.b16 %v2184
        %v2224 = vunpack.c.l.b16 %v2185
        %v2225 = vpack.c.b16 %v2210, %v2209
        %v2226 = vpack.c.b16 %v2212, %v2211
        %v2227 = vpack.c.b16 %v2214, %v2213
        %v2228 = vpack.c.b16 %v2216, %v2215
        %v2229 = vpack.c.b16 %v2218, %v2217
        %v2230 = vpack.c.b16 %v2220, %v2219
        %v2231 = vpack.c.b16 %v2222, %v2221
        %v2232 = vpack.c.b16 %v2224, %v2223
        %2241 = vmatprep.subr.bf16.mxu0 0
        %2242 = vmatpush1.bf16.msra.mxu0 %v2232
        %2243 = vmatprep.subr.bf16.mxu0 0
        %2244 = vmatpush1.bf16.msra.mxu0 %v2231
        %2245 = vmatprep.subr.bf16.mxu0 0
        %2246 = vmatpush1.bf16.msra.mxu0 %v2230
        %2247 = vmatprep.subr.bf16.mxu0 0
        %2248 = vmatpush1.bf16.msra.mxu0 %v2229
        %2249 = vmatprep.subr.bf16.mxu0 0
        %2250 = vmatpush1.bf16.msra.mxu0 %v2228
        %2251 = vmatprep.subr.bf16.mxu0 0
        %2252 = vmatpush1.bf16.msra.mxu0 %v2227
        %2253 = vmatprep.subr.bf16.mxu0 0
        %2254 = vmatpush1.bf16.msra.mxu0 %v2226
        %2255 = vmatprep.subr.bf16.mxu0 0
        %2256 = vmatpush1.bf16.msra.mxu0 %v2225
        %2257 = vmatprep.subr.bf16.mxu0 0
        %2258 = vmatpush2.bf16.msra.mxu0 0
        %2259 = vmatprep.subr.bf16.mxu0 0
        %2260 = vmatpush2.bf16.msra.mxu0 0
        %2261 = vmatprep.subr.bf16.mxu0 0
        %2262 = vmatpush2.bf16.msra.mxu0 0
        %2263 = vmatprep.subr.bf16.mxu0 0
        %2264 = vmatpush2.bf16.msra.mxu0 0
        %2265 = vmatprep.subr.bf16.mxu0 0
        %2266 = vmatpush2.bf16.msra.mxu0 0
        %2267 = vmatprep.subr.bf16.mxu0 0
        %2268 = vmatpush2.bf16.msra.mxu0 0
        %2269 = vmatprep.subr.bf16.mxu0 0
        %2270 = vmatpush2.bf16.msra.mxu0 0
        %2271 = vmatprep.subr.bf16.mxu0 0
        %2272 = vmatpush2.bf16.msra.mxu0 0
        %2273 = vmatprep.mubr.bf16.mxu0 0
        %2274 = vmatmul.mubr.bf16.gmra.mxu0 %v2169
        %v2275 = vpop.f32.mrf.mxu0
        %v2276 = vadd.f32 %v2191, %v2275
        %v2277 = vpop.f32.mrf.mxu0
        %v2278 = vpop.f32.mrf.mxu0
        %v2279 = vpop.f32.mrf.mxu0
        %2280 = vdwg.mxu0
        %v2281 = vpack.c.bf16 %v2276, %v2276
        %2282 = vst [vmem:[%s406] sm:$0xf] %v2281
        %s2283 = sand.u32 %s230, 1
        %s2284 = scalar_lea.sflag [#allocation4], %s2283
        %s2285 = sand.u32 %s230, 1
        %s2286 = smul.addr %s2285, 4
        %s2287 = scalar_lea.vmem [#allocation11], %s2286
        // Predicated region
        $region77: #{tpu_custom_call.1} parent=55 // pred_check
          %p2288 = pneg %p240
        $region78: #{tpu_custom_call.1} parent=55 // pred_check_branch
          %2290 = sbr.rel (%p2288) target = $region80
        $region79: #{tpu_custom_call.1} parent=55 // pred_region
          %s2292 = ssub.s32 64, 64
          %2293 = vsyncadd %s2284, %s2292
          %s2294 = smul.addr %s28, 64
          %s2295 = scalar_lea.hbm %s9, %s2294
          %s2297 = sshll.u32 %s2287, 4
          %s2298 = int_to_ptr.vmem [resolvable:$true] %s2297
          %2300 = dma.vmem_to_hbm [thread:$0]  %s2298, 64, %s2295, %s2284
        $region80: #{tpu_custom_call.1} parent=55 // pred_fallthru
          _
      $region56: #{tpu_custom_call.1} parent=5 // pred_fallthru
        _
      %p2301 = scmp.le.s32.totalorder 2, %s23
      // Predicated region
      $region81: #{tpu_custom_call.1} parent=5 // pred_check
        %p2302 = pneg %p2301
      $region82: #{tpu_custom_call.1} parent=5 // pred_check_branch
        %2304 = sbr.rel (%p2302) target = $region84
      $region83: #{tpu_custom_call.1} parent=5 // pred_region
        %s2305 = ssub.s32 %s23, 2
        // Predicated region
        $region85: #{tpu_custom_call.1} parent=83 // pred_check
          %p2306 = pneg %p246
        $region86: #{tpu_custom_call.1} parent=83 // pred_check_branch
          %2308 = sbr.rel (%p2306) target = $region88
        $region87: #{tpu_custom_call.1} parent=83 // pred_region
          %s2309 = sand.u32 %s231, 1
          %s2310 = scalar_lea.sflag [#allocation4], %s2309
          %s2311 = sand.u32 %s231, 1
          %s2312 = smul.addr %s2311, 4
          %s2313 = scalar_lea.vmem [#allocation11], %s2312
          %2314 = dma.done %s2310, 64
        $region88: #{tpu_custom_call.1} parent=83 // pred_fallthru
          _
      $region84: #{tpu_custom_call.1} parent=5 // pred_fallthru
        _
    $region6: #{tpu_custom_call.1} parent=1 // loop_footer
      %s27 = sadd.s32 1, %s23
    $region7: #{tpu_custom_call.1} parent=1 // loop_footer_branch
      %22 = sbr.rel target = $region3
    $region8: #{tpu_custom_call.1} parent=1 // loop_exit
      _
    %2315 = vsyncpa [#allocation3], 1
    %s2316 = scalar_lea.sflag [#allocation3], 1
    %2317 = vsyncpa %s2316, 1
    %2318 = vsyncpa [#allocation6], 1
    %2319 = vsyncpa [#allocation9], 1
    %2320 = vsyncpa [#allocation4], 1
    %s2321 = scalar_lea.sflag [#allocation4], 1
    %2322 = vsyncpa %s2321, 1

// kernel: tpu_custom_call.1
$region0: #{tpu_custom_call.1}
  #allocation0 [shape = 'u32[]', space=smem, size = 0x4, offset = 0x4, fixed_abs, tag = 'smem constant byte address 0x4 - core index']
  #allocation1 [shape = 'u32[144,128]{1,0:T(1,128)}', space=vmem, size = 0x12000, scoped, tag = 'internal scratch']
  %s0 = inlined_call_operand.hbm [shape: bf16[16,256], index: 0, kind: input, shape index: {}]
  %s1 = inlined_call_operand.hbm [shape: bf16[256,1024], index: 1, kind: input, shape index: {}]
  %s2 = inlined_call_operand.vmem [shape: f32[1,256], index: 2, kind: input, shape index: {}]
  %s3 = inlined_call_operand.hbm [shape: bf16[256,512], index: 3, kind: input, shape index: {}]
  %s4 = inlined_call_operand.vmem [shape: f32[1,128], index: 4, kind: input, shape index: {}]
  %s5 = inlined_call_operand.hbm [shape: bf16[128,128], index: 5, kind: input, shape index: {}]
  %s6 = inlined_call_operand.vmem [shape: f32[1,128], index: 6, kind: input, shape index: {}]
  %s7 = inlined_call_operand.hbm [shape: bf16[128,128], index: 7, kind: input, shape index: {}]
  %s8 = inlined_call_operand.vmem [shape: f32[1,128], index: 8, kind: input, shape index: {}]
  %s9 = inlined_call_operand.hbm [shape: bf16[16,128], index: 9, kind: output, shape index: {}]
  %s10 = sld [smem:[#allocation0]]
  $region89: #{tpu_custom_call.1} parent=0
    _
  %s12 = ssub.s32 1, %s10
  %s13 = scalar_select 0, %s12, %s10
  $region1: #{tpu_custom_call.1} parent=0
    #allocation2 [shape = 'u8[8192]{0}', space=vmem, size = 0x2000, scoped, tag = 'input window, operand 0']
    #allocation3 [shape = 's32[2]{0}', space=sflag, size = 0x8, scoped, tag = 'scoped memory for tpu_custom_call.1']
    #allocation4 [shape = 's32[2]{0}', space=sflag, size = 0x8, scoped, tag = 'scoped memory for tpu_custom_call.1']
    #allocation5 [shape = 'u8[524288]{0}', space=vmem, size = 0x80000, scoped, tag = 'input window, operand 1, single buffered']
    #allocation6 [shape = 's32[1]{0}', space=sflag, size = 0x4, scoped, tag = 'scoped memory for tpu_custom_call.1']
    #allocation7 [shape = 'u8[262144]{0}', space=vmem, size = 0x40000, scoped, tag = 'input window, operand 3, single buffered']
    #allocation8 [shape = 'u8[32768]{0}', space=vmem, size = 0x8000, scoped, tag = 'input window, operand 5, single buffered']
    #allocation9 [shape = 's32[1]{0}', space=sflag, size = 0x4, scoped, tag = 'scoped memory for tpu_custom_call.1']
    #allocation10 [shape = 'u8[32768]{0}', space=vmem, size = 0x8000, scoped, tag = 'input window, operand 7, single buffered']
    #allocation11 [shape = 'u8[4096]{0}', space=vmem, size = 0x1000, scoped, tag = 'output window, operand 0']
    %14 = vsyncpa [#allocation3], 0
    %s15 = scalar_lea.sflag [#allocation3], 1
    %16 = vsyncpa %s15, 0
    %17 = vsyncpa [#allocation6], 0
    %18 = vsyncpa [#allocation9], 0
    %19 = vsyncpa [#allocation4], 0
    %s20 = scalar_lea.sflag [#allocation4], 1
    %21 = vsyncpa %s20, 0
    loop: start=0, step=1, limit=4
    $region2: #{tpu_custom_call.1} parent=1 // loop_pre_header
      _
    $region3: #{tpu_custom_call.1} parent=1 // loop_header
      %s23 = sphi 0, %s27
      %p24 = scmp.ge.s32.totalorder %s23, 4
      %s33 = sphi 0, %s35
      %s36 = sphi 0, %s33
      %s37 = sphi 0, %s36
      %s53 = sphi 0, %s37
      %s57 = sphi 0, %s57
      %s59 = sphi 0, %s57
      %s60 = sphi 0, %s59
      %s74 = sphi 0, %s60
      %s78 = sphi 0, %s78
      %s80 = sphi 0, %s78
      %s81 = sphi 0, %s80
      %s95 = sphi 0, %s81
      %s99 = sphi 0, %s99
      %s101 = sphi 0, %s99
      %s102 = sphi 0, %s101
      %s116 = sphi 0, %s102
      %s120 = sphi 0, %s120
      %s122 = sphi 0, %s120
      %s123 = sphi 0, %s122
      %s137 = sphi 0, %s123
      %s141 = sphi 0, %s141
      %s143 = sphi 0, %s141
      %s144 = sphi 0, %s143
      %s158 = sphi 0, %s144
      %s162 = sphi 0, %s162
      %s164 = sphi 0, %s162
      %s165 = sphi 0, %s164
      %s179 = sphi 0, %s165
      %s183 = sphi 0, %s183
      %s185 = sphi 0, %s183
      %s186 = sphi 0, %s185
      %s200 = sphi 0, %s186
      %s204 = sphi 0, %s204
      %s206 = sphi 0, %s204
      %s207 = sphi 0, %s206
      %s221 = sphi 0, %s207
      %s227 = sphi 0, %s229
      %s230 = sphi 0, %s227
      %s231 = sphi 0, %s230
      %s247 = sphi 0, %s231
    $region4: #{tpu_custom_call.1} parent=1 // loop_header_branch
      %26 = sbr.rel (%p24) target = $region8
    $region5: #{tpu_custom_call.1} parent=1 // loop_body
      %s28 = ssub.s32 %s23, 1
      %s29 = ssub.s32 %s23, 2
      %s30 = sadd.s32 %s23, 1
      %s31 = ssub.s32 %s23, %s30
      %p32 = scmp.eq.s32.totalorder %s31, 0
      %s34 = sadd.s32 %s33, 1
      %s35 = scalar_select %p32, %s33, %s34
      %p38 = pneg %p32
      %p39 = scmp.eq.s32.totalorder %s23, 1
      %p40 = por %p38, %p39
      %p41 = scmp.ne.s32.totalorder %s33, %s36
      %p42 = scmp.eq.s32.totalorder %s23, 0
      %p43 = por %p41, %p42
      %p44 = scmp.ne.s32.totalorder %s33, %s36
      %p45 = scmp.eq.s32.totalorder %s28, 1
      %p46 = por %p44, %p45
      %p47 = scmp.ne.s32.totalorder %s36, %s37
      %p48 = scmp.eq.s32.totalorder %s28, 0
      %p49 = por %p47, %p48
      %p50 = scmp.ne.s32.totalorder %s36, %s37
      %p51 = scmp.eq.s32.totalorder %s29, 1
      %p52 = por %p50, %p51
      %p54 = scmp.ne.s32.totalorder %s37, %s53
      %p55 = scmp.eq.s32.totalorder %s29, 0
      %p56 = por %p54, %p55
      %s58 = sadd.s32 %s57, 1
      %p61 = scmp.eq.s32.totalorder %s23, 1
      %p62 = scmp.ne.s32.totalorder %s57, %s59
      %p63 = scmp.eq.s32.totalorder %s23, 0
      %p64 = por %p62, %p63
      %p65 = scmp.ne.s32.totalorder %s57, %s59
      %p66 = scmp.eq.s32.totalorder %s28, 1
      %p67 = por %p65, %p66
      %p68 = scmp.ne.s32.totalorder %s59, %s60
      %p69 = scmp.eq.s32.totalorder %s28, 0
      %p70 = por %p68, %p69
      %p71 = scmp.ne.s32.totalorder %s59, %s60
      %p72 = scmp.eq.s32.totalorder %s29, 1
      %p73 = por %p71, %p72
      %p75 = scmp.ne.s32.totalorder %s60, %s74
      %p76 = scmp.eq.s32.totalorder %s29, 0
      %p77 = por %p75, %p76
      %s79 = sadd.s32 %s78, 1
      %p82 = scmp.eq.s32.totalorder %s23, 1
      %p83 = scmp.ne.s32.totalorder %s78, %s80
      %p84 = scmp.eq.s32.totalorder %s23, 0
      %p85 = por %p83, %p84
      %p86 = scmp.ne.s32.totalorder %s78, %s80
      %p87 = scmp.eq.s32.totalorder %s28, 1
      %p88 = por %p86, %p87
      %p89 = scmp.ne.s32.totalorder %s80, %s81
      %p90 = scmp.eq.s32.totalorder %s28, 0
      %p91 = por %p89, %p90
      %p92 = scmp.ne.s32.totalorder %s80, %s81
      %p93 = scmp.eq.s32.totalorder %s29, 1
      %p94 = por %p92, %p93
      %p96 = scmp.ne.s32.totalorder %s81, %s95
      %p97 = scmp.eq.s32.totalorder %s29, 0
      %p98 = por %p96, %p97
      %s100 = sadd.s32 %s99, 1
      %p103 = scmp.eq.s32.totalorder %s23, 1
      %p104 = scmp.ne.s32.totalorder %s99, %s101
      %p105 = scmp.eq.s32.totalorder %s23, 0
      %p106 = por %p104, %p105
      %p107 = scmp.ne.s32.totalorder %s99, %s101
      %p108 = scmp.eq.s32.totalorder %s28, 1
      %p109 = por %p107, %p108
      %p110 = scmp.ne.s32.totalorder %s101, %s102
      %p111 = scmp.eq.s32.totalorder %s28, 0
      %p112 = por %p110, %p111
      %p113 = scmp.ne.s32.totalorder %s101, %s102
      %p114 = scmp.eq.s32.totalorder %s29, 1
      %p115 = por %p113, %p114
      %p117 = scmp.ne.s32.totalorder %s102, %s116
      %p118 = scmp.eq.s32.totalorder %s29, 0
      %p119 = por %p117, %p118
      %s121 = sadd.s32 %s120, 1
      %p124 = scmp.eq.s32.totalorder %s23, 1
      %p125 = scmp.ne.s32.totalorder %s120, %s122
      %p126 = scmp.eq.s32.totalorder %s23, 0
      %p127 = por %p125, %p126
      %p128 = scmp.ne.s32.totalorder %s120, %s122
      %p129 = scmp.eq.s32.totalorder %s28, 1
      %p130 = por %p128, %p129
      %p131 = scmp.ne.s32.totalorder %s122, %s123
      %p132 = scmp.eq.s32.totalorder %s28, 0
      %p133 = por %p131, %p132
      %p134 = scmp.ne.s32.totalorder %s122, %s123
      %p135 = scmp.eq.s32.totalorder %s29, 1
      %p136 = por %p134, %p135
      %p138 = scmp.ne.s32.totalorder %s123, %s137
      %p139 = scmp.eq.s32.totalorder %s29, 0
      %p140 = por %p138, %p139
      %s142 = sadd.s32 %s141, 1
      %p145 = scmp.eq.s32.totalorder %s23, 1
      %p146 = scmp.ne.s32.totalorder %s141, %s143
      %p147 = scmp.eq.s32.totalorder %s23, 0
      %p148 = por %p146, %p147
      %p149 = scmp.ne.s32.totalorder %s141, %s143
      %p150 = scmp.eq.s32.totalorder %s28, 1
      %p151 = por %p149, %p150
      %p152 = scmp.ne.s32.totalorder %s143, %s144
      %p153 = scmp.eq.s32.totalorder %s28, 0
      %p154 = por %p152, %p153
      %p155 = scmp.ne.s32.totalorder %s143, %s144
      %p156 = scmp.eq.s32.totalorder %s29, 1
      %p157 = por %p155, %p156
      %p159 = scmp.ne.s32.totalorder %s144, %s158
      %p160 = scmp.eq.s32.totalorder %s29, 0
      %p161 = por %p159, %p160
      %s163 = sadd.s32 %s162, 1
      %p166 = scmp.eq.s32.totalorder %s23, 1
      %p167 = scmp.ne.s32.totalorder %s162, %s164
      %p168 = scmp.eq.s32.totalorder %s23, 0
      %p169 = por %p167, %p168
      %p170 = scmp.ne.s32.totalorder %s162, %s164
      %p171 = scmp.eq.s32.totalorder %s28, 1
      %p172 = por %p170, %p171
      %p173 = scmp.ne.s32.totalorder %s164, %s165
      %p174 = scmp.eq.s32.totalorder %s28, 0
      %p175 = por %p173, %p174
      %p176 = scmp.ne.s32.totalorder %s164, %s165
      %p177 = scmp.eq.s32.totalorder %s29, 1
      %p178 = por %p176, %p177
      %p180 = scmp.ne.s32.totalorder %s165, %s179
      %p181 = scmp.eq.s32.totalorder %s29, 0
      %p182 = por %p180, %p181
      %s184 = sadd.s32 %s183, 1
      %p187 = scmp.eq.s32.totalorder %s23, 1
      %p188 = scmp.ne.s32.totalorder %s183, %s185
      %p189 = scmp.eq.s32.totalorder %s23, 0
      %p190 = por %p188, %p189
      %p191 = scmp.ne.s32.totalorder %s183, %s185
      %p192 = scmp.eq.s32.totalorder %s28, 1
      %p193 = por %p191, %p192
      %p194 = scmp.ne.s32.totalorder %s185, %s186
      %p195 = scmp.eq.s32.totalorder %s28, 0
      %p196 = por %p194, %p195
      %p197 = scmp.ne.s32.totalorder %s185, %s186
      %p198 = scmp.eq.s32.totalorder %s29, 1
      %p199 = por %p197, %p198
      %p201 = scmp.ne.s32.totalorder %s186, %s200
      %p202 = scmp.eq.s32.totalorder %s29, 0
      %p203 = por %p201, %p202
      %s205 = sadd.s32 %s204, 1
      %p208 = scmp.eq.s32.totalorder %s23, 1
      %p209 = scmp.ne.s32.totalorder %s204, %s206
      %p210 = scmp.eq.s32.totalorder %s23, 0
      %p211 = por %p209, %p210
      %p212 = scmp.ne.s32.totalorder %s204, %s206
      %p213 = scmp.eq.s32.totalorder %s28, 1
      %p214 = por %p212, %p213
      %p215 = scmp.ne.s32.totalorder %s206, %s207
      %p216 = scmp.eq.s32.totalorder %s28, 0
      %p217 = por %p215, %p216
      %p218 = scmp.ne.s32.totalorder %s206, %s207
      %p219 = scmp.eq.s32.totalorder %s29, 1
      %p220 = por %p218, %p219
      %p222 = scmp.ne.s32.totalorder %s207, %s221
      %p223 = scmp.eq.s32.totalorder %s29, 0
      %p224 = por %p222, %p223
      %s225 = ssub.s32 %s23, %s30
      %p226 = scmp.eq.s32.totalorder %s225, 0
      %s228 = sadd.s32 %s227, 1
      %s229 = scalar_select %p226, %s227, %s228
      %p232 = pneg %p226
      %p233 = scmp.eq.s32.totalorder %s23, 1
      %p234 = por %p232, %p233
      %p235 = scmp.ne.s32.totalorder %s227, %s230
      %p236 = scmp.eq.s32.totalorder %s23, 0
      %p237 = por %p235, %p236
      %p238 = scmp.ne.s32.totalorder %s227, %s230
      %p239 = scmp.eq.s32.totalorder %s28, 1
      %p240 = por %p238, %p239
      %p241 = scmp.ne.s32.totalorder %s230, %s231
      %p242 = scmp.eq.s32.totalorder %s28, 0
      %p243 = por %p241, %p242
      %p244 = scmp.ne.s32.totalorder %s230, %s231
      %p245 = scmp.eq.s32.totalorder %s29, 1
      %p246 = por %p244, %p245
      %p248 = scmp.ne.s32.totalorder %s231, %s247
      %p249 = scmp.eq.s32.totalorder %s29, 0
      %p250 = por %p248, %p249
      %p251 = scmp.le.s32.totalorder 1, %s23
      %p252 = scmp.lt.s32.totalorder %s23, 3
      %p253 = pnand %p251, %p252
      %p254 = pneg %p253
      // Predicated region
      $region9: #{tpu_custom_call.1} parent=5 // pred_check
        _
      $region10: #{tpu_custom_call.1} parent=5 // pred_check_branch
        %256 = sbr.rel (%p253) target = $region12
      $region11: #{tpu_custom_call.1} parent=5 // pred_region
        %s257 = ssub.s32 %s23, 1
        // Predicated region
        $region13: #{tpu_custom_call.1} parent=11 // pred_check
          %p258 = pneg %p70
        $region14: #{tpu_custom_call.1} parent=11 // pred_check_branch
          %260 = sbr.rel (%p258) target = $region16
        $region15: #{tpu_custom_call.1} parent=11 // pred_region
          %s262 = ssub.s32 16384, 16384
          %263 = vsyncadd [#allocation6], %s262
          %s264 = sshll.u32 [#allocation5], 4
          %s265 = int_to_ptr.vmem [resolvable:$true] %s264
          %270 = dma.hbm_to_vmem [thread:$0]  %s1, 16384, %s265, [#allocation6], 512, 512, 32
        $region16: #{tpu_custom_call.1} parent=11 // pred_fallthru
          _
        // Predicated region
        $region17: #{tpu_custom_call.1} parent=11 // pred_check
          %p271 = pneg %p91
        $region18: #{tpu_custom_call.1} parent=11 // pred_check_branch
          %273 = sbr.rel (%p271) target = $region20
        $region19: #{tpu_custom_call.1} parent=11 // pred_region
          _
        $region20: #{tpu_custom_call.1} parent=11 // pred_fallthru
          _
        // Predicated region
        $region21: #{tpu_custom_call.1} parent=11 // pred_check
          %p274 = pneg %p112
        $region22: #{tpu_custom_call.1} parent=11 // pred_check_branch
          %276 = sbr.rel (%p274) target = $region24
        $region23: #{tpu_custom_call.1} parent=11 // pred_region
          %s278 = ssub.s32 8192, 8192
          %279 = vsyncadd [#allocation6], %s278
          %s280 = sshll.u32 [#allocation7], 4
          %s281 = int_to_ptr.vmem [resolvable:$true] %s280
          %286 = dma.hbm_to_vmem [thread:$0]  %s3, 8192, %s281, [#allocation6], 256, 256, 16
        $region24: #{tpu_custom_call.1} parent=11 // pred_fallthru
          _
        // Predicated region
        $region25: #{tpu_custom_call.1} parent=11 // pred_check
          %p287 = pneg %p133
        $region26: #{tpu_custom_call.1} parent=11 // pred_check_branch
          %289 = sbr.rel (%p287) target = $region28
        $region27: #{tpu_custom_call.1} parent=11 // pred_region
          _
        $region28: #{tpu_custom_call.1} parent=11 // pred_fallthru
          _
        // Predicated region
        $region29: #{tpu_custom_call.1} parent=11 // pred_check
          %p290 = pneg %p154
        $region30: #{tpu_custom_call.1} parent=11 // pred_check_branch
          %292 = sbr.rel (%p290) target = $region32
        $region31: #{tpu_custom_call.1} parent=11 // pred_region
          %s294 = ssub.s32 1024, 1024
          %295 = vsyncadd [#allocation9], %s294
          %s296 = sshll.u32 [#allocation8], 4
          %s297 = int_to_ptr.vmem [resolvable:$true] %s296
          %302 = dma.hbm_to_vmem [thread:$0]  %s5, 1024, %s297, [#allocation9], 64, 64, 4
        $region32: #{tpu_custom_call.1} parent=11 // pred_fallthru
          _
        // Predicated region
        $region33: #{tpu_custom_call.1} parent=11 // pred_check
          %p303 = pneg %p175
        $region34: #{tpu_custom_call.1} parent=11 // pred_check_branch
          %305 = sbr.rel (%p303) target = $region36
        $region35: #{tpu_custom_call.1} parent=11 // pred_region
          _
        $region36: #{tpu_custom_call.1} parent=11 // pred_fallthru
          _
        // Predicated region
        $region37: #{tpu_custom_call.1} parent=11 // pred_check
          %p306 = pneg %p196
        $region38: #{tpu_custom_call.1} parent=11 // pred_check_branch
          %308 = sbr.rel (%p306) target = $region40
        $region39: #{tpu_custom_call.1} parent=11 // pred_region
          %s310 = ssub.s32 1024, 1024
          %311 = vsyncadd [#allocation9], %s310
          %s312 = sshll.u32 [#allocation10], 4
          %s313 = int_to_ptr.vmem [resolvable:$true] %s312
          %318 = dma.hbm_to_vmem [thread:$0]  %s7, 1024, %s313, [#allocation9], 64, 64, 4
        $region40: #{tpu_custom_call.1} parent=11 // pred_fallthru
          _
        // Predicated region
        $region41: #{tpu_custom_call.1} parent=11 // pred_check
          %p319 = pneg %p217
        $region42: #{tpu_custom_call.1} parent=11 // pred_check_branch
          %321 = sbr.rel (%p319) target = $region44
        $region43: #{tpu_custom_call.1} parent=11 // pred_region
          _
        $region44: #{tpu_custom_call.1} parent=11 // pred_fallthru
          _
      $region12: #{tpu_custom_call.1} parent=5 // pred_fallthru
        _
      %p322 = scmp.lt.s32.totalorder %s23, 2
      // Predicated region
      $region45: #{tpu_custom_call.1} parent=5 // pred_check
        %p323 = pneg %p322
      $region46: #{tpu_custom_call.1} parent=5 // pred_check_branch
        %325 = sbr.rel (%p323) target = $region48
      $region47: #{tpu_custom_call.1} parent=5 // pred_region
        // Predicated region
        $region49: #{tpu_custom_call.1} parent=47 // pred_check
          %p326 = pneg %p43
        $region50: #{tpu_custom_call.1} parent=47 // pred_check_branch
          %328 = sbr.rel (%p326) target = $region52
        $region51: #{tpu_custom_call.1} parent=47 // pred_region
          %s329 = sand.u32 %s33, 1
          %s330 = scalar_lea.sflag [#allocation3], %s329
          %s331 = sand.u32 %s33, 1
          %s332 = smul.addr %s331, 8
          %s333 = scalar_lea.vmem [#allocation2], %s332
          %s335 = ssub.s32 128, 128
          %336 = vsyncadd %s330, %s335
          %s337 = smul.addr %s23, 2
          %s338 = smul.addr %s337, 64
          %s339 = scalar_lea.hbm %s0, %s338
          %s341 = sshll.u32 %s333, 4
          %s342 = int_to_ptr.vmem [resolvable:$true] %s341
          %344 = dma.hbm_to_vmem [thread:$0]  %s339, 128, %s342, %s330
        $region52: #{tpu_custom_call.1} parent=47 // pred_fallthru
          _
      $region48: #{tpu_custom_call.1} parent=5 // pred_fallthru
        _
      %p345 = scmp.le.s32.totalorder 1, %s23
      %p346 = scmp.lt.s32.totalorder %s23, 3
      %p347 = pnand %p345, %p346
      %p348 = pneg %p347
      // Predicated region
      $region53: #{tpu_custom_call.1} parent=5 // pred_check
        _
      $region54: #{tpu_custom_call.1} parent=5 // pred_check_branch
        %350 = sbr.rel (%p347) target = $region56
      $region55: #{tpu_custom_call.1} parent=5 // pred_region
        %s351 = ssub.s32 %s23, 1
        %s352 = sand.u32 %s36, 1
        %s353 = scalar_lea.sflag [#allocation3], %s352
        %s354 = sand.u32 %s36, 1
        %s355 = smul.addr %s354, 8
        %s356 = scalar_lea.vmem [#allocation2], %s355
        // Predicated region
        $region57: #{tpu_custom_call.1} parent=55 // pred_check
          %p357 = pneg %p49
        $region58: #{tpu_custom_call.1} parent=55 // pred_check_branch
          %359 = sbr.rel (%p357) target = $region60
        $region59: #{tpu_custom_call.1} parent=55 // pred_region
          %360 = dma.done %s353, 128
        $region60: #{tpu_custom_call.1} parent=55 // pred_fallthru
          _
        // Predicated region
        $region61: #{tpu_custom_call.1} parent=55 // pred_check
          %p361 = pneg %p70
        $region62: #{tpu_custom_call.1} parent=55 // pred_check_branch
          %363 = sbr.rel (%p361) target = $region64
        $region63: #{tpu_custom_call.1} parent=55 // pred_region
          %364 = dma.done [#allocation6], 16384
        $region64: #{tpu_custom_call.1} parent=55 // pred_fallthru
          _
        // Predicated region
        $region65: #{tpu_custom_call.1} parent=55 // pred_check
          %p365 = pneg %p112
        $region66: #{tpu_custom_call.1} parent=55 // pred_check_branch
          %367 = sbr.rel (%p365) target = $region68
        $region67: #{tpu_custom_call.1} parent=55 // pred_region
          %368 = dma.done [#allocation6], 8192
        $region68: #{tpu_custom_call.1} parent=55 // pred_fallthru
          _
        // Predicated region
        $region69: #{tpu_custom_call.1} parent=55 // pred_check
          %p369 = pneg %p154
        $region70: #{tpu_custom_call.1} parent=55 // pred_check_branch
          %371 = sbr.rel (%p369) target = $region72
        $region71: #{tpu_custom_call.1} parent=55 // pred_region
          %372 = dma.done [#allocation9], 1024
        $region72: #{tpu_custom_call.1} parent=55 // pred_fallthru
          _
        // Predicated region
        $region73: #{tpu_custom_call.1} parent=55 // pred_check
          %p373 = pneg %p196
        $region74: #{tpu_custom_call.1} parent=55 // pred_check_branch
          %375 = sbr.rel (%p373) target = $region76
        $region75: #{tpu_custom_call.1} parent=55 // pred_region
          %376 = dma.done [#allocation9], 1024
        $region76: #{tpu_custom_call.1} parent=55 // pred_fallthru
          _
        %s377 = sand.u32 %s36, 1
        %s378 = scalar_lea.sflag [#allocation3], %s377
        %s379 = sand.u32 %s36, 1
        %s380 = smul.addr %s379, 8
        %s381 = scalar_lea.vmem [#allocation2], %s380
        %p382 = pneg %p49
        %p383 = pneg %p46
        %p384 = pneg %p70
        %p385 = pneg %p67
        %p386 = pneg %p91
        %p387 = pneg %p88
        %p388 = pneg %p112
        %p389 = pneg %p109
        %p390 = pneg %p133
        %p391 = pneg %p130
        %p392 = pneg %p154
        %p393 = pneg %p151
        %p394 = pneg %p175
        %p395 = pneg %p172
        %p396 = pneg %p196
        %p397 = pneg %p193
        %p398 = pneg %p217
        %p399 = pneg %p214
        %p400 = pneg %p243
        %p401 = pneg %p240
        %s402 = sand.u32 %s230, 1
        %s403 = scalar_lea.sflag [#allocation4], %s402
        %s404 = sand.u32 %s230, 1
        %s405 = smul.addr %s404, 4
        %s406 = scalar_lea.vmem [#allocation11], %s405
        %v408 = vld [vmem:[%s356] sm:$0xff]
        %v409 = vld [vmem:[#allocation5] sm:$0xff]
        %v410 = vld [vmem:[#allocation5 + $0x20] sm:$0xff]
        %v411 = vld [vmem:[#allocation5 + $0x40] sm:$0xff]
        %v412 = vld [vmem:[#allocation5 + $0x60] sm:$0xff]
        %v413 = vld [vmem:[#allocation5 + $0x80] sm:$0xff]
        %v414 = vld [vmem:[#allocation5 + $0xa0] sm:$0xff]
        %v415 = vld [vmem:[#allocation5 + $0xc0] sm:$0xff]
        %v416 = vld [vmem:[#allocation5 + $0xe0] sm:$0xff]
        %v417 = vld [vmem:[#allocation5 + $0x100] sm:$0xff]
        %v418 = vld [vmem:[#allocation5 + $0x120] sm:$0xff]
        %v419 = vld [vmem:[#allocation5 + $0x140] sm:$0xff]
        %v420 = vld [vmem:[#allocation5 + $0x160] sm:$0xff]
        %v421 = vld [vmem:[#allocation5 + $0x180] sm:$0xff]
        %v422 = vld [vmem:[#allocation5 + $0x1a0] sm:$0xff]
        %v423 = vld [vmem:[#allocation5 + $0x1c0] sm:$0xff]
        %v424 = vld [vmem:[#allocation5 + $0x1e0] sm:$0xff]
        %v425 = vld [vmem:[#allocation5 + $0x200] sm:$0xff]
        %v426 = vld [vmem:[#allocation5 + $0x220] sm:$0xff]
        %v427 = vld [vmem:[#allocation5 + $0x240] sm:$0xff]
        %v428 = vld [vmem:[#allocation5 + $0x260] sm:$0xff]
        %v429 = vld [vmem:[#allocation5 + $0x280] sm:$0xff]
        %v430 = vld [vmem:[#allocation5 + $0x2a0] sm:$0xff]
        %v431 = vld [vmem:[#allocation5 + $0x2c0] sm:$0xff]
        %v432 = vld [vmem:[#allocation5 + $0x2e0] sm:$0xff]
        %v433 = vld [vmem:[#allocation5 + $0x300] sm:$0xff]
        %v434 = vld [vmem:[#allocation5 + $0x320] sm:$0xff]
        %v435 = vld [vmem:[#allocation5 + $0x340] sm:$0xff]
        %v436 = vld [vmem:[#allocation5 + $0x360] sm:$0xff]
        %v437 = vld [vmem:[#allocation5 + $0x380] sm:$0xff]
        %v438 = vld [vmem:[#allocation5 + $0x3a0] sm:$0xff]
        %v439 = vld [vmem:[#allocation5 + $0x3c0] sm:$0xff]
        %v440 = vld [vmem:[#allocation5 + $0x3e0] sm:$0xff]
        %v442 = vunpack.c.l.b16 %v408
        %v443 = vunpack.c.h.b16 %v408
        %v444 = vpack.c.b16 %v442, %v442
        %v445 = vpack.c.b16 %v443, %v443
        %v480 = vunpack.c.l.b16 %v409
        %v481 = vunpack.c.h.b16 %v409
        %v482 = vunpack.c.l.b16 %v410
        %v483 = vunpack.c.h.b16 %v410
        %v484 = vunpack.c.l.b16 %v411
        %v485 = vunpack.c.h.b16 %v411
        %v486 = vunpack.c.l.b16 %v412
        %v487 = vunpack.c.h.b16 %v412
        %v488 = vunpack.c.l.b16 %v413
        %v489 = vunpack.c.h.b16 %v413
        %v490 = vunpack.c.l.b16 %v414
        %v491 = vunpack.c.h.b16 %v414
        %v492 = vunpack.c.l.b16 %v415
        %v493 = vunpack.c.h.b16 %v415
        %v494 = vunpack.c.l.b16 %v416
        %v495 = vunpack.c.h.b16 %v416
        %v496 = vunpack.c.l.b16 %v417
        %v497 = vunpack.c.h.b16 %v417
        %v498 = vunpack.c.l.b16 %v418
        %v499 = vunpack.c.h.b16 %v418
        %v500 = vunpack.c.l.b16 %v419
        %v501 = vunpack.c.h.b16 %v419
        %v502 = vunpack.c.l.b16 %v420
        %v503 = vunpack.c.h.b16 %v420
        %v504 = vunpack.c.l.b16 %v421
        %v505 = vunpack.c.h.b16 %v421
        %v506 = vunpack.c.l.b16 %v422
        %v507 = vunpack.c.h.b16 %v422
        %v508 = vunpack.c.l.b16 %v423
        %v509 = vunpack.c.h.b16 %v423
        %v510 = vunpack.c.l.b16 %v424
        %v511 = vunpack.c.h.b16 %v424
        %v512 = vunpack.c.l.b16 %v425
        %v513 = vunpack.c.h.b16 %v425
        %v514 = vunpack.c.l.b16 %v426
        %v515 = vunpack.c.h.b16 %v426
        %v516 = vunpack.c.l.b16 %v427
        %v517 = vunpack.c.h.b16 %v427
        %v518 = vunpack.c.l.b16 %v428
        %v519 = vunpack.c.h.b16 %v428
        %v520 = vunpack.c.l.b16 %v429
        %v521 = vunpack.c.h.b16 %v429
        %v522 = vunpack.c.l.b16 %v430
        %v523 = vunpack.c.h.b16 %v430
        %v524 = vunpack.c.l.b16 %v431
        %v525 = vunpack.c.h.b16 %v431
        %v526 = vunpack.c.l.b16 %v432
        %v527 = vunpack.c.h.b16 %v432
        %v528 = vunpack.c.l.b16 %v433
        %v529 = vunpack.c.h.b16 %v433
        %v530 = vunpack.c.l.b16 %v434
        %v531 = vunpack.c.h.b16 %v434
        %v532 = vunpack.c.l.b16 %v435
        %v533 = vunpack.c.h.b16 %v435
        %v534 = vunpack.c.l.b16 %v436
        %v535 = vunpack.c.h.b16 %v436
        %v536 = vunpack.c.l.b16 %v437
        %v537 = vunpack.c.h.b16 %v437
        %v538 = vunpack.c.l.b16 %v438
        %v539 = vunpack.c.h.b16 %v438
        %v540 = vunpack.c.l.b16 %v439
        %v541 = vunpack.c.h.b16 %v439
        %v542 = vunpack.c.l.b16 %v440
        %v543 = vunpack.c.h.b16 %v440
        %v544 = vpack.c.b16 %v482, %v480
        %v545 = vpack.c.b16 %v483, %v481
        %v546 = vpack.c.b16 %v486, %v484
        %v547 = vpack.c.b16 %v487, %v485
        %v548 = vpack.c.b16 %v490, %v488
        %v549 = vpack.c.b16 %v491, %v489
        %v550 = vpack.c.b16 %v494, %v492
        %v551 = vpack.c.b16 %v495, %v493
        %v552 = vpack.c.b16 %v498, %v496
        %v553 = vpack.c.b16 %v499, %v497
        %v554 = vpack.c.b16 %v502, %v500
        %v555 = vpack.c.b16 %v503, %v501
        %v556 = vpack.c.b16 %v506, %v504
        %v557 = vpack.c.b16 %v507, %v505
        %v558 = vpack.c.b16 %v510, %v508
        %v559 = vpack.c.b16 %v511, %v509
        %v560 = vpack.c.b16 %v514, %v512
        %v561 = vpack.c.b16 %v515, %v513
        %v562 = vpack.c.b16 %v518, %v516
        %v563 = vpack.c.b16 %v519, %v517
        %v564 = vpack.c.b16 %v522, %v520
        %v565 = vpack.c.b16 %v523, %v521
        %v566 = vpack.c.b16 %v526, %v524
        %v567 = vpack.c.b16 %v527, %v525
        %v568 = vpack.c.b16 %v530, %v528
        %v569 = vpack.c.b16 %v531, %v529
        %v570 = vpack.c.b16 %v534, %v532
        %v571 = vpack.c.b16 %v535, %v533
        %v572 = vpack.c.b16 %v538, %v536
        %v573 = vpack.c.b16 %v539, %v537
        %v574 = vpack.c.b16 %v542, %v540
        %v575 = vpack.c.b16 %v543, %v541
        %608 = vmatprep.subr.bf16.mxu0 %v559
        %609 = vmatpush1.bf16.msra.mxu0 %v558
        %610 = vmatprep.subr.bf16.mxu0 %v557
        %611 = vmatpush1.bf16.msra.mxu0 %v556
        %612 = vmatprep.subr.bf16.mxu0 %v555
        %613 = vmatpush1.bf16.msra.mxu0 %v554
        %614 = vmatprep.subr.bf16.mxu0 %v553
        %615 = vmatpush1.bf16.msra.mxu0 %v552
        %616 = vmatprep.subr.bf16.mxu0 %v551
        %617 = vmatpush1.bf16.msra.mxu0 %v550
        %618 = vmatprep.subr.bf16.mxu0 %v549
        %619 = vmatpush1.bf16.msra.mxu0 %v548
        %620 = vmatprep.subr.bf16.mxu0 %v547
        %621 = vmatpush1.bf16.msra.mxu0 %v546
        %622 = vmatprep.subr.bf16.mxu0 %v545
        %623 = vmatpush1.bf16.msra.mxu0 %v544
        %624 = vmatprep.subr.bf16.mxu0 %v575
        %625 = vmatpush2.bf16.msra.mxu0 %v574
        %626 = vmatprep.subr.bf16.mxu0 %v573
        %627 = vmatpush2.bf16.msra.mxu0 %v572
        %628 = vmatprep.subr.bf16.mxu0 %v571
        %629 = vmatpush2.bf16.msra.mxu0 %v570
        %630 = vmatprep.subr.bf16.mxu0 %v569
        %631 = vmatpush2.bf16.msra.mxu0 %v568
        %632 = vmatprep.subr.bf16.mxu0 %v567
        %633 = vmatpush2.bf16.msra.mxu0 %v566
        %634 = vmatprep.subr.bf16.mxu0 %v565
        %635 = vmatpush2.bf16.msra.mxu0 %v564
        %636 = vmatprep.subr.bf16.mxu0 %v563
        %637 = vmatpush2.bf16.msra.mxu0 %v562
        %638 = vmatprep.subr.bf16.mxu0 %v561
        %639 = vmatpush2.bf16.msra.mxu0 %v560
        %640 = vmatprep.mubr.bf16.mxu0 %v445
        %641 = vmatmul.mubr.bf16.gmra.mxu0 %v444
        %v642 = vpop.f32.mrf.mxu0
        %v643 = vadd.f32 0.0, %v642
        %v644 = vpop.f32.mrf.mxu0
        %v645 = vadd.f32 0.0, %v644
        %v646 = vpop.f32.mrf.mxu0
        %v647 = vpop.f32.mrf.mxu0
        %648 = vdwg.mxu0
        %v649 = vld [vmem:[#allocation5 + $0x8] sm:$0xff]
        %v650 = vld [vmem:[#allocation5 + $0x28] sm:$0xff]
        %v651 = vld [vmem:[#allocation5 + $0x48] sm:$0xff]
        %v652 = vld [vmem:[#allocation5 + $0x68] sm:$0xff]
        %v653 = vld [vmem:[#allocation5 + $0x88] sm:$0xff]
        %v654 = vld [vmem:[#allocation5 + $0xa8] sm:$0xff]
        %v655 = vld [vmem:[#allocation5 + $0xc8] sm:$0xff]
        %v656 = vld [vmem:[#allocation5 + $0xe8] sm:$0xff]
        %v657 = vld [vmem:[#allocation5 + $0x108] sm:$0xff]
        %v658 = vld [vmem:[#allocation5 + $0x128] sm:$0xff]
        %v659 = vld [vmem:[#allocation5 + $0x148] sm:$0xff]
        %v660 = vld [vmem:[#allocation5 + $0x168] sm:$0xff]
        %v661 = vld [vmem:[#allocation5 + $0x188] sm:$0xff]
        %v662 = vld [vmem:[#allocation5 + $0x1a8] sm:$0xff]
        %v663 = vld [vmem:[#allocation5 + $0x1c8] sm:$0xff]
        %v664 = vld [vmem:[#allocation5 + $0x1e8] sm:$0xff]
        %v665 = vld [vmem:[#allocation5 + $0x208] sm:$0xff]
        %v666 = vld [vmem:[#allocation5 + $0x228] sm:$0xff]
        %v667 = vld [vmem:[#allocation5 + $0x248] sm:$0xff]
        %v668 = vld [vmem:[#allocation5 + $0x268] sm:$0xff]
        %v669 = vld [vmem:[#allocation5 + $0x288] sm:$0xff]
        %v670 = vld [vmem:[#allocation5 + $0x2a8] sm:$0xff]
        %v671 = vld [vmem:[#allocation5 + $0x2c8] sm:$0xff]
        %v672 = vld [vmem:[#allocation5 + $0x2e8] sm:$0xff]
        %v673 = vld [vmem:[#allocation5 + $0x308] sm:$0xff]
        %v674 = vld [vmem:[#allocation5 + $0x328] sm:$0xff]
        %v675 = vld [vmem:[#allocation5 + $0x348] sm:$0xff]
        %v676 = vld [vmem:[#allocation5 + $0x368] sm:$0xff]
        %v677 = vld [vmem:[#allocation5 + $0x388] sm:$0xff]
        %v678 = vld [vmem:[#allocation5 + $0x3a8] sm:$0xff]
        %v679 = vld [vmem:[#allocation5 + $0x3c8] sm:$0xff]
        %v680 = vld [vmem:[#allocation5 + $0x3e8] sm:$0xff]
        %v713 = vunpack.c.l.b16 %v649
        %v714 = vunpack.c.h.b16 %v649
        %v715 = vunpack.c.l.b16 %v650
        %v716 = vunpack.c.h.b16 %v650
        %v717 = vunpack.c.l.b16 %v651
        %v718 = vunpack.c.h.b16 %v651
        %v719 = vunpack.c.l.b16 %v652
        %v720 = vunpack.c.h.b16 %v652
        %v721 = vunpack.c.l.b16 %v653
        %v722 = vunpack.c.h.b16 %v653
        %v723 = vunpack.c.l.b16 %v654
        %v724 = vunpack.c.h.b16 %v654
        %v725 = vunpack.c.l.b16 %v655
        %v726 = vunpack.c.h.b16 %v655
        %v727 = vunpack.c.l.b16 %v656
        %v728 = vunpack.c.h.b16 %v656
        %v729 = vunpack.c.l.b16 %v657
        %v730 = vunpack.c.h.b16 %v657
        %v731 = vunpack.c.l.b16 %v658
        %v732 = vunpack.c.h.b16 %v658
        %v733 = vunpack.c.l.b16 %v659
        %v734 = vunpack.c.h.b16 %v659
        %v735 = vunpack.c.l.b16 %v660
        %v736 = vunpack.c.h.b16 %v660
        %v737 = vunpack.c.l.b16 %v661
        %v738 = vunpack.c.h.b16 %v661
        %v739 = vunpack.c.l.b16 %v662
        %v740 = vunpack.c.h.b16 %v662
        %v741 = vunpack.c.l.b16 %v663
        %v742 = vunpack.c.h.b16 %v663
        %v743 = vunpack.c.l.b16 %v664
        %v744 = vunpack.c.h.b16 %v664
        %v745 = vunpack.c.l.b16 %v665
        %v746 = vunpack.c.h.b16 %v665
        %v747 = vunpack.c.l.b16 %v666
        %v748 = vunpack.c.h.b16 %v666
        %v749 = vunpack.c.l.b16 %v667
        %v750 = vunpack.c.h.b16 %v667
        %v751 = vunpack.c.l.b16 %v668
        %v752 = vunpack.c.h.b16 %v668
        %v753 = vunpack.c.l.b16 %v669
        %v754 = vunpack.c.h.b16 %v669
        %v755 = vunpack.c.l.b16 %v670
        %v756 = vunpack.c.h.b16 %v670
        %v757 = vunpack.c.l.b16 %v671
        %v758 = vunpack.c.h.b16 %v671
        %v759 = vunpack.c.l.b16 %v672
        %v760 = vunpack.c.h.b16 %v672
        %v761 = vunpack.c.l.b16 %v673
        %v762 = vunpack.c.h.b16 %v673
        %v763 = vunpack.c.l.b16 %v674
        %v764 = vunpack.c.h.b16 %v674
        %v765 = vunpack.c.l.b16 %v675
        %v766 = vunpack.c.h.b16 %v675
        %v767 = vunpack.c.l.b16 %v676
        %v768 = vunpack.c.h.b16 %v676
        %v769 = vunpack.c.l.b16 %v677
        %v770 = vunpack.c.h.b16 %v677
        %v771 = vunpack.c.l.b16 %v678
        %v772 = vunpack.c.h.b16 %v678
        %v773 = vunpack.c.l.b16 %v679
        %v774 = vunpack.c.h.b16 %v679
        %v775 = vunpack.c.l.b16 %v680
        %v776 = vunpack.c.h.b16 %v680
        %v777 = vpack.c.b16 %v715, %v713
        %v778 = vpack.c.b16 %v716, %v714
        %v779 = vpack.c.b16 %v719, %v717
        %v780 = vpack.c.b16 %v720, %v718
        %v781 = vpack.c.b16 %v723, %v721
        %v782 = vpack.c.b16 %v724, %v722
        %v783 = vpack.c.b16 %v727, %v725
        %v784 = vpack.c.b16 %v728, %v726
        %v785 = vpack.c.b16 %v731, %v729
        %v786 = vpack.c.b16 %v732, %v730
        %v787 = vpack.c.b16 %v735, %v733
        %v788 = vpack.c.b16 %v736, %v734
        %v789 = vpack.c.b16 %v739, %v737
        %v790 = vpack.c.b16 %v740, %v738
        %v791 = vpack.c.b16 %v743, %v741
        %v792 = vpack.c.b16 %v744, %v742
        %v793 = vpack.c.b16 %v747, %v745
        %v794 = vpack.c.b16 %v748, %v746
        %v795 = vpack.c.b16 %v751, %v749
        %v796 = vpack.c.b16 %v752, %v750
        %v797 = vpack.c.b16 %v755, %v753
        %v798 = vpack.c.b16 %v756, %v754
        %v799 = vpack.c.b16 %v759, %v757
        %v800 = vpack.c.b16 %v760, %v758
        %v801 = vpack.c.b16 %v763, %v761
        %v802 = vpack.c.b16 %v764, %v762
        %v803 = vpack.c.b16 %v767, %v765
        %v804 = vpack.c.b16 %v768, %v766
        %v805 = vpack.c.b16 %v771, %v769
        %v806 = vpack.c.b16 %v772, %v770
        %v807 = vpack.c.b16 %v775, %v773
        %v808 = vpack.c.b16 %v776, %v774
        %841 = vmatprep.subr.bf16.mxu0 %v792
        %842 = vmatpush1.bf16.msra.mxu0 %v791
        %843 = vmatprep.subr.bf16.mxu0 %v790
        %844 = vmatpush1.bf16.msra.mxu0 %v789
        %845 = vmatprep.subr.bf16.mxu0 %v788
        %846 = vmatpush1.bf16.msra.mxu0 %v787
        %847 = vmatprep.subr.bf16.mxu0 %v786
        %848 = vmatpush1.bf16.msra.mxu0 %v785
        %849 = vmatprep.subr.bf16.mxu0 %v784
        %850 = vmatpush1.bf16.msra.mxu0 %v783
        %851 = vmatprep.subr.bf16.mxu0 %v782
        %852 = vmatpush1.bf16.msra.mxu0 %v781
        %853 = vmatprep.subr.bf16.mxu0 %v780
        %854 = vmatpush1.bf16.msra.mxu0 %v779
        %855 = vmatprep.subr.bf16.mxu0 %v778
        %856 = vmatpush1.bf16.msra.mxu0 %v777
        %857 = vmatprep.subr.bf16.mxu0 %v808
        %858 = vmatpush2.bf16.msra.mxu0 %v807
        %859 = vmatprep.subr.bf16.mxu0 %v806
        %860 = vmatpush2.bf16.msra.mxu0 %v805
        %861 = vmatprep.subr.bf16.mxu0 %v804
        %862 = vmatpush2.bf16.msra.mxu0 %v803
        %863 = vmatprep.subr.bf16.mxu0 %v802
        %864 = vmatpush2.bf16.msra.mxu0 %v801
        %865 = vmatprep.subr.bf16.mxu0 %v800
        %866 = vmatpush2.bf16.msra.mxu0 %v799
        %867 = vmatprep.subr.bf16.mxu0 %v798
        %868 = vmatpush2.bf16.msra.mxu0 %v797
        %869 = vmatprep.subr.bf16.mxu0 %v796
        %870 = vmatpush2.bf16.msra.mxu0 %v795
        %871 = vmatprep.subr.bf16.mxu0 %v794
        %872 = vmatpush2.bf16.msra.mxu0 %v793
        %873 = vmatprep.mubr.bf16.mxu0 %v445
        %874 = vmatmul.mubr.bf16.gmra.mxu0 %v444
        %v875 = vpop.f32.mrf.mxu0
        %v876 = vadd.f32 0.0, %v875
        %v877 = vpop.f32.mrf.mxu0
        %v878 = vadd.f32 0.0, %v877
        %v879 = vpop.f32.mrf.mxu0
        %v880 = vpop.f32.mrf.mxu0
        %881 = vdwg.mxu0
        %v882 = vmax.f32 %v643, %v876
        %v883 = vmax.f32 %v645, %v878
        %v884 = vld [vmem:[#allocation5 + $0x10] sm:$0xff]
        %v885 = vld [vmem:[#allocation5 + $0x30] sm:$0xff]
        %v886 = vld [vmem:[#allocation5 + $0x50] sm:$0xff]
        %v887 = vld [vmem:[#allocation5 + $0x70] sm:$0xff]
        %v888 = vld [vmem:[#allocation5 + $0x90] sm:$0xff]
        %v889 = vld [vmem:[#allocation5 + $0xb0] sm:$0xff]
        %v890 = vld [vmem:[#allocation5 + $0xd0] sm:$0xff]
        %v891 = vld [vmem:[#allocation5 + $0xf0] sm:$0xff]
        %v892 = vld [vmem:[#allocation5 + $0x110] sm:$0xff]
        %v893 = vld [vmem:[#allocation5 + $0x130] sm:$0xff]
        %v894 = vld [vmem:[#allocation5 + $0x150] sm:$0xff]
        %v895 = vld [vmem:[#allocation5 + $0x170] sm:$0xff]
        %v896 = vld [vmem:[#allocation5 + $0x190] sm:$0xff]
        %v897 = vld [vmem:[#allocation5 + $0x1b0] sm:$0xff]
        %v898 = vld [vmem:[#allocation5 + $0x1d0] sm:$0xff]
        %v899 = vld [vmem:[#allocation5 + $0x1f0] sm:$0xff]
        %v900 = vld [vmem:[#allocation5 + $0x210] sm:$0xff]
        %v901 = vld [vmem:[#allocation5 + $0x230] sm:$0xff]
        %v902 = vld [vmem:[#allocation5 + $0x250] sm:$0xff]
        %v903 = vld [vmem:[#allocation5 + $0x270] sm:$0xff]
        %v904 = vld [vmem:[#allocation5 + $0x290] sm:$0xff]
        %v905 = vld [vmem:[#allocation5 + $0x2b0] sm:$0xff]
        %v906 = vld [vmem:[#allocation5 + $0x2d0] sm:$0xff]
        %v907 = vld [vmem:[#allocation5 + $0x2f0] sm:$0xff]
        %v908 = vld [vmem:[#allocation5 + $0x310] sm:$0xff]
        %v909 = vld [vmem:[#allocation5 + $0x330] sm:$0xff]
        %v910 = vld [vmem:[#allocation5 + $0x350] sm:$0xff]
        %v911 = vld [vmem:[#allocation5 + $0x370] sm:$0xff]
        %v912 = vld [vmem:[#allocation5 + $0x390] sm:$0xff]
        %v913 = vld [vmem:[#allocation5 + $0x3b0] sm:$0xff]
        %v914 = vld [vmem:[#allocation5 + $0x3d0] sm:$0xff]
        %v915 = vld [vmem:[#allocation5 + $0x3f0] sm:$0xff]
        %v948 = vunpack.c.l.b16 %v884
        %v949 = vunpack.c.h.b16 %v884
        %v950 = vunpack.c.l.b16 %v885
        %v951 = vunpack.c.h.b16 %v885
        %v952 = vunpack.c.l.b16 %v886
        %v953 = vunpack.c.h.b16 %v886
        %v954 = vunpack.c.l.b16 %v887
        %v955 = vunpack.c.h.b16 %v887
        %v956 = vunpack.c.l.b16 %v888
        %v957 = vunpack.c.h.b16 %v888
        %v958 = vunpack.c.l.b16 %v889
        %v959 = vunpack.c.h.b16 %v889
        %v960 = vunpack.c.l.b16 %v890
        %v961 = vunpack.c.h.b16 %v890
        %v962 = vunpack.c.l.b16 %v891
        %v963 = vunpack.c.h.b16 %v891
        %v964 = vunpack.c.l.b16 %v892
        %v965 = vunpack.c.h.b16 %v892
        %v966 = vunpack.c.l.b16 %v893
        %v967 = vunpack.c.h.b16 %v893
        %v968 = vunpack.c.l.b16 %v894
        %v969 = vunpack.c.h.b16 %v894
        %v970 = vunpack.c.l.b16 %v895
        %v971 = vunpack.c.h.b16 %v895
        %v972 = vunpack.c.l.b16 %v896
        %v973 = vunpack.c.h.b16 %v896
        %v974 = vunpack.c.l.b16 %v897
        %v975 = vunpack.c.h.b16 %v897
        %v976 = vunpack.c.l.b16 %v898
        %v977 = vunpack.c.h.b16 %v898
        %v978 = vunpack.c.l.b16 %v899
        %v979 = vunpack.c.h.b16 %v899
        %v980 = vunpack.c.l.b16 %v900
        %v981 = vunpack.c.h.b16 %v900
        %v982 = vunpack.c.l.b16 %v901
        %v983 = vunpack.c.h.b16 %v901
        %v984 = vunpack.c.l.b16 %v902
        %v985 = vunpack.c.h.b16 %v902
        %v986 = vunpack.c.l.b16 %v903
        %v987 = vunpack.c.h.b16 %v903
        %v988 = vunpack.c.l.b16 %v904
        %v989 = vunpack.c.h.b16 %v904
        %v990 = vunpack.c.l.b16 %v905
        %v991 = vunpack.c.h.b16 %v905
        %v992 = vunpack.c.l.b16 %v906
        %v993 = vunpack.c.h.b16 %v906
        %v994 = vunpack.c.l.b16 %v907
        %v995 = vunpack.c.h.b16 %v907
        %v996 = vunpack.c.l.b16 %v908
        %v997 = vunpack.c.h.b16 %v908
        %v998 = vunpack.c.l.b16 %v909
        %v999 = vunpack.c.h.b16 %v909
        %v1000 = vunpack.c.l.b16 %v910
        %v1001 = vunpack.c.h.b16 %v910
        %v1002 = vunpack.c.l.b16 %v911
        %v1003 = vunpack.c.h.b16 %v911
        %v1004 = vunpack.c.l.b16 %v912
        %v1005 = vunpack.c.h.b16 %v912
        %v1006 = vunpack.c.l.b16 %v913
        %v1007 = vunpack.c.h.b16 %v913
        %v1008 = vunpack.c.l.b16 %v914
        %v1009 = vunpack.c.h.b16 %v914
        %v1010 = vunpack.c.l.b16 %v915
        %v1011 = vunpack.c.h.b16 %v915
        %v1012 = vpack.c.b16 %v950, %v948
        %v1013 = vpack.c.b16 %v951, %v949
        %v1014 = vpack.c.b16 %v954, %v952
        %v1015 = vpack.c.b16 %v955, %v953
        %v1016 = vpack.c.b16 %v958, %v956
        %v1017 = vpack.c.b16 %v959, %v957
        %v1018 = vpack.c.b16 %v962, %v960
        %v1019 = vpack.c.b16 %v963, %v961
        %v1020 = vpack.c.b16 %v966, %v964
        %v1021 = vpack.c.b16 %v967, %v965
        %v1022 = vpack.c.b16 %v970, %v968
        %v1023 = vpack.c.b16 %v971, %v969
        %v1024 = vpack.c.b16 %v974, %v972
        %v1025 = vpack.c.b16 %v975, %v973
        %v1026 = vpack.c.b16 %v978, %v976
        %v1027 = vpack.c.b16 %v979, %v977
        %v1028 = vpack.c.b16 %v982, %v980
        %v1029 = vpack.c.b16 %v983, %v981
        %v1030 = vpack.c.b16 %v986, %v984
        %v1031 = vpack.c.b16 %v987, %v985
        %v1032 = vpack.c.b16 %v990, %v988
        %v1033 = vpack.c.b16 %v991, %v989
        %v1034 = vpack.c.b16 %v994, %v992
        %v1035 = vpack.c.b16 %v995, %v993
        %v1036 = vpack.c.b16 %v998, %v996
        %v1037 = vpack.c.b16 %v999, %v997
        %v1038 = vpack.c.b16 %v1002, %v1000
        %v1039 = vpack.c.b16 %v1003, %v1001
        %v1040 = vpack.c.b16 %v1006, %v1004
        %v1041 = vpack.c.b16 %v1007, %v1005
        %v1042 = vpack.c.b16 %v1010, %v1008
        %v1043 = vpack.c.b16 %v1011, %v1009
        %1076 = vmatprep.subr.bf16.mxu0 %v1027
        %1077 = vmatpush1.bf16.msra.mxu0 %v1026
        %1078 = vmatprep.subr.bf16.mxu0 %v1025
        %1079 = vmatpush1.bf16.msra.mxu0 %v1024
        %1080 = vmatprep.subr.bf16.mxu0 %v1023
        %1081 = vmatpush1.bf16.msra.mxu0 %v1022
        %1082 = vmatprep.subr.bf16.mxu0 %v1021
        %1083 = vmatpush1.bf16.msra.mxu0 %v1020
        %1084 = vmatprep.subr.bf16.mxu0 %v1019
        %1085 = vmatpush1.bf16.msra.mxu0 %v1018
        %1086 = vmatprep.subr.bf16.mxu0 %v1017
        %1087 = vmatpush1.bf16.msra.mxu0 %v1016
        %1088 = vmatprep.subr.bf16.mxu0 %v1015
        %1089 = vmatpush1.bf16.msra.mxu0 %v1014
        %1090 = vmatprep.subr.bf16.mxu0 %v1013
        %1091 = vmatpush1.bf16.msra.mxu0 %v1012
        %1092 = vmatprep.subr.bf16.mxu0 %v1043
        %1093 = vmatpush2.bf16.msra.mxu0 %v1042
        %1094 = vmatprep.subr.bf16.mxu0 %v1041
        %1095 = vmatpush2.bf16.msra.mxu0 %v1040
        %1096 = vmatprep.subr.bf16.mxu0 %v1039
        %1097 = vmatpush2.bf16.msra.mxu0 %v1038
        %1098 = vmatprep.subr.bf16.mxu0 %v1037
        %1099 = vmatpush2.bf16.msra.mxu0 %v1036
        %1100 = vmatprep.subr.bf16.mxu0 %v1035
        %1101 = vmatpush2.bf16.msra.mxu0 %v1034
        %1102 = vmatprep.subr.bf16.mxu0 %v1033
        %1103 = vmatpush2.bf16.msra.mxu0 %v1032
        %1104 = vmatprep.subr.bf16.mxu0 %v1031
        %1105 = vmatpush2.bf16.msra.mxu0 %v1030
        %1106 = vmatprep.subr.bf16.mxu0 %v1029
        %1107 = vmatpush2.bf16.msra.mxu0 %v1028
        %1108 = vmatprep.mubr.bf16.mxu0 %v445
        %1109 = vmatmul.mubr.bf16.gmra.mxu0 %v444
        %v1110 = vpop.f32.mrf.mxu0
        %v1111 = vadd.f32 0.0, %v1110
        %v1112 = vpop.f32.mrf.mxu0
        %v1113 = vadd.f32 0.0, %v1112
        %v1114 = vpop.f32.mrf.mxu0
        %v1115 = vpop.f32.mrf.mxu0
        %1116 = vdwg.mxu0
        %v1117 = vld [vmem:[#allocation5 + $0x18] sm:$0xff]
        %v1118 = vld [vmem:[#allocation5 + $0x38] sm:$0xff]
        %v1119 = vld [vmem:[#allocation5 + $0x58] sm:$0xff]
        %v1120 = vld [vmem:[#allocation5 + $0x78] sm:$0xff]
        %v1121 = vld [vmem:[#allocation5 + $0x98] sm:$0xff]
        %v1122 = vld [vmem:[#allocation5 + $0xb8] sm:$0xff]
        %v1123 = vld [vmem:[#allocation5 + $0xd8] sm:$0xff]
        %v1124 = vld [vmem:[#allocation5 + $0xf8] sm:$0xff]
        %v1125 = vld [vmem:[#allocation5 + $0x118] sm:$0xff]
        %v1126 = vld [vmem:[#allocation5 + $0x138] sm:$0xff]
        %v1127 = vld [vmem:[#allocation5 + $0x158] sm:$0xff]
        %v1128 = vld [vmem:[#allocation5 + $0x178] sm:$0xff]
        %v1129 = vld [vmem:[#allocation5 + $0x198] sm:$0xff]
        %v1130 = vld [vmem:[#allocation5 + $0x1b8] sm:$0xff]
        %v1131 = vld [vmem:[#allocation5 + $0x1d8] sm:$0xff]
        %v1132 = vld [vmem:[#allocation5 + $0x1f8] sm:$0xff]
        %v1133 = vld [vmem:[#allocation5 + $0x218] sm:$0xff]
        %v1134 = vld [vmem:[#allocation5 + $0x238] sm:$0xff]
        %v1135 = vld [vmem:[#allocation5 + $0x258] sm:$0xff]
        %v1136 = vld [vmem:[#allocation5 + $0x278] sm:$0xff]
        %v1137 = vld [vmem:[#allocation5 + $0x298] sm:$0xff]
        %v1138 = vld [vmem:[#allocation5 + $0x2b8] sm:$0xff]
        %v1139 = vld [vmem:[#allocation5 + $0x2d8] sm:$0xff]
        %v1140 = vld [vmem:[#allocation5 + $0x2f8] sm:$0xff]
        %v1141 = vld [vmem:[#allocation5 + $0x318] sm:$0xff]
        %v1142 = vld [vmem:[#allocation5 + $0x338] sm:$0xff]
        %v1143 = vld [vmem:[#allocation5 + $0x358] sm:$0xff]
        %v1144 = vld [vmem:[#allocation5 + $0x378] sm:$0xff]
        %v1145 = vld [vmem:[#allocation5 + $0x398] sm:$0xff]
        %v1146 = vld [vmem:[#allocation5 + $0x3b8] sm:$0xff]
        %v1147 = vld [vmem:[#allocation5 + $0x3d8] sm:$0xff]
        %v1148 = vld [vmem:[#allocation5 + $0x3f8] sm:$0xff]
        %v1181 = vunpack.c.l.b16 %v1117
        %v1182 = vunpack.c.h.b16 %v1117
        %v1183 = vunpack.c.l.b16 %v1118
        %v1184 = vunpack.c.h.b16 %v1118
        %v1185 = vunpack.c.l.b16 %v1119
        %v1186 = vunpack.c.h.b16 %v1119
        %v1187 = vunpack.c.l.b16 %v1120
        %v1188 = vunpack.c.h.b16 %v1120
        %v1189 = vunpack.c.l.b16 %v1121
        %v1190 = vunpack.c.h.b16 %v1121
        %v1191 = vunpack.c.l.b16 %v1122
        %v1192 = vunpack.c.h.b16 %v1122
        %v1193 = vunpack.c.l.b16 %v1123
        %v1194 = vunpack.c.h.b16 %v1123
        %v1195 = vunpack.c.l.b16 %v1124
        %v1196 = vunpack.c.h.b16 %v1124
        %v1197 = vunpack.c.l.b16 %v1125
        %v1198 = vunpack.c.h.b16 %v1125
        %v1199 = vunpack.c.l.b16 %v1126
        %v1200 = vunpack.c.h.b16 %v1126
        %v1201 = vunpack.c.l.b16 %v1127
        %v1202 = vunpack.c.h.b16 %v1127
        %v1203 = vunpack.c.l.b16 %v1128
        %v1204 = vunpack.c.h.b16 %v1128
        %v1205 = vunpack.c.l.b16 %v1129
        %v1206 = vunpack.c.h.b16 %v1129
        %v1207 = vunpack.c.l.b16 %v1130
        %v1208 = vunpack.c.h.b16 %v1130
        %v1209 = vunpack.c.l.b16 %v1131
        %v1210 = vunpack.c.h.b16 %v1131
        %v1211 = vunpack.c.l.b16 %v1132
        %v1212 = vunpack.c.h.b16 %v1132
        %v1213 = vunpack.c.l.b16 %v1133
        %v1214 = vunpack.c.h.b16 %v1133
        %v1215 = vunpack.c.l.b16 %v1134
        %v1216 = vunpack.c.h.b16 %v1134
        %v1217 = vunpack.c.l.b16 %v1135
        %v1218 = vunpack.c.h.b16 %v1135
        %v1219 = vunpack.c.l.b16 %v1136
        %v1220 = vunpack.c.h.b16 %v1136
        %v1221 = vunpack.c.l.b16 %v1137
        %v1222 = vunpack.c.h.b16 %v1137
        %v1223 = vunpack.c.l.b16 %v1138
        %v1224 = vunpack.c.h.b16 %v1138
        %v1225 = vunpack.c.l.b16 %v1139
        %v1226 = vunpack.c.h.b16 %v1139
        %v1227 = vunpack.c.l.b16 %v1140
        %v1228 = vunpack.c.h.b16 %v1140
        %v1229 = vunpack.c.l.b16 %v1141
        %v1230 = vunpack.c.h.b16 %v1141
        %v1231 = vunpack.c.l.b16 %v1142
        %v1232 = vunpack.c.h.b16 %v1142
        %v1233 = vunpack.c.l.b16 %v1143
        %v1234 = vunpack.c.h.b16 %v1143
        %v1235 = vunpack.c.l.b16 %v1144
        %v1236 = vunpack.c.h.b16 %v1144
        %v1237 = vunpack.c.l.b16 %v1145
        %v1238 = vunpack.c.h.b16 %v1145
        %v1239 = vunpack.c.l.b16 %v1146
        %v1240 = vunpack.c.h.b16 %v1146
        %v1241 = vunpack.c.l.b16 %v1147
        %v1242 = vunpack.c.h.b16 %v1147
        %v1243 = vunpack.c.l.b16 %v1148
        %v1244 = vunpack.c.h.b16 %v1148
        %v1245 = vpack.c.b16 %v1183, %v1181
        %v1246 = vpack.c.b16 %v1184, %v1182
        %v1247 = vpack.c.b16 %v1187, %v1185
        %v1248 = vpack.c.b16 %v1188, %v1186
        %v1249 = vpack.c.b16 %v1191, %v1189
        %v1250 = vpack.c.b16 %v1192, %v1190
        %v1251 = vpack.c.b16 %v1195, %v1193
        %v1252 = vpack.c.b16 %v1196, %v1194
        %v1253 = vpack.c.b16 %v1199, %v1197
        %v1254 = vpack.c.b16 %v1200, %v1198
        %v1255 = vpack.c.b16 %v1203, %v1201
        %v1256 = vpack.c.b16 %v1204, %v1202
        %v1257 = vpack.c.b16 %v1207, %v1205
        %v1258 = vpack.c.b16 %v1208, %v1206
        %v1259 = vpack.c.b16 %v1211, %v1209
        %v1260 = vpack.c.b16 %v1212, %v1210
        %v1261 = vpack.c.b16 %v1215, %v1213
        %v1262 = vpack.c.b16 %v1216, %v1214
        %v1263 = vpack.c.b16 %v1219, %v1217
        %v1264 = vpack.c.b16 %v1220, %v1218
        %v1265 = vpack.c.b16 %v1223, %v1221
        %v1266 = vpack.c.b16 %v1224, %v1222
        %v1267 = vpack.c.b16 %v1227, %v1225
        %v1268 = vpack.c.b16 %v1228, %v1226
        %v1269 = vpack.c.b16 %v1231, %v1229
        %v1270 = vpack.c.b16 %v1232, %v1230
        %v1271 = vpack.c.b16 %v1235, %v1233
        %v1272 = vpack.c.b16 %v1236, %v1234
        %v1273 = vpack.c.b16 %v1239, %v1237
        %v1274 = vpack.c.b16 %v1240, %v1238
        %v1275 = vpack.c.b16 %v1243, %v1241
        %v1276 = vpack.c.b16 %v1244, %v1242
        %1309 = vmatprep.subr.bf16.mxu0 %v1260
        %1310 = vmatpush1.bf16.msra.mxu0 %v1259
        %1311 = vmatprep.subr.bf16.mxu0 %v1258
        %1312 = vmatpush1.bf16.msra.mxu0 %v1257
        %1313 = vmatprep.subr.bf16.mxu0 %v1256
        %1314 = vmatpush1.bf16.msra.mxu0 %v1255
        %1315 = vmatprep.subr.bf16.mxu0 %v1254
        %1316 = vmatpush1.bf16.msra.mxu0 %v1253
        %1317 = vmatprep.subr.bf16.mxu0 %v1252
        %1318 = vmatpush1.bf16.msra.mxu0 %v1251
        %1319 = vmatprep.subr.bf16.mxu0 %v1250
        %1320 = vmatpush1.bf16.msra.mxu0 %v1249
        %1321 = vmatprep.subr.bf16.mxu0 %v1248
        %1322 = vmatpush1.bf16.msra.mxu0 %v1247
        %1323 = vmatprep.subr.bf16.mxu0 %v1246
        %1324 = vmatpush1.bf16.msra.mxu0 %v1245
        %1325 = vmatprep.subr.bf16.mxu0 %v1276
        %1326 = vmatpush2.bf16.msra.mxu0 %v1275
        %1327 = vmatprep.subr.bf16.mxu0 %v1274
        %1328 = vmatpush2.bf16.msra.mxu0 %v1273
        %1329 = vmatprep.subr.bf16.mxu0 %v1272
        %1330 = vmatpush2.bf16.msra.mxu0 %v1271
        %1331 = vmatprep.subr.bf16.mxu0 %v1270
        %1332 = vmatpush2.bf16.msra.mxu0 %v1269
        %1333 = vmatprep.subr.bf16.mxu0 %v1268
        %1334 = vmatpush2.bf16.msra.mxu0 %v1267
        %1335 = vmatprep.subr.bf16.mxu0 %v1266
        %1336 = vmatpush2.bf16.msra.mxu0 %v1265
        %1337 = vmatprep.subr.bf16.mxu0 %v1264
        %1338 = vmatpush2.bf16.msra.mxu0 %v1263
        %1339 = vmatprep.subr.bf16.mxu0 %v1262
        %1340 = vmatpush2.bf16.msra.mxu0 %v1261
        %1341 = vmatprep.mubr.bf16.mxu0 %v445
        %1342 = vmatmul.mubr.bf16.gmra.mxu0 %v444
        %v1343 = vpop.f32.mrf.mxu0
        %v1344 = vadd.f32 0.0, %v1343
        %v1345 = vpop.f32.mrf.mxu0
        %v1346 = vadd.f32 0.0, %v1345
        %v1347 = vpop.f32.mrf.mxu0
        %v1348 = vpop.f32.mrf.mxu0
        %1349 = vdwg.mxu0
        %v1350 = vmax.f32 %v1111, %v1344
        %v1351 = vmax.f32 %v1113, %v1346
        %v1352 = vmax.f32 %v882, %v1350
        %v1353 = vmax.f32 %v883, %v1351
        %v1354 = vld [vmem:[%s2] sm:$0x3]
        %v1356 = vlaneseq
        %v1357 = vshrl.u32 %v1356, 7
        %v1358 = vsub.s32 0, %v1357
        %v1359 = vrot.slane %v1354, %v1358
        %v1360 = vlaneseq
        %v1361 = vshrl.u32 %v1360, 7
        %v1362 = vsub.s32 1, %v1361
        %v1363 = vrot.slane %v1354, %v1362
        %v1366 = vadd.f32 %v1352, %v1359
        %v1367 = vadd.f32 %v1353, %v1363
        %v1368 = vmax.f32 %v1366, 0.0
        %v1369 = vmax.f32 %v1367, 0.0
        %v1370 = vpack.c.bf16 %v1368, %v1368
        %v1371 = vpack.c.bf16 %v1369, %v1369
        %v1372 = vld [vmem:[#allocation7] sm:$0xf]
        %v1373 = vld [vmem:[#allocation7 + $0x10] sm:$0xf]
        %v1374 = vld [vmem:[#allocation7 + $0x20] sm:$0xf]
        %v1375 = vld [vmem:[#allocation7 + $0x30] sm:$0xf]
        %v1376 = vld [vmem:[#allocation7 + $0x40] sm:$0xf]
        %v1377 = vld [vmem:[#allocation7 + $0x50] sm:$0xf]
        %v1378 = vld [vmem:[#allocation7 + $0x60] sm:$0xf]
        %v1379 = vld [vmem:[#allocation7 + $0x70] sm:$0xf]
        %v1380 = vld [vmem:[#allocation7 + $0x80] sm:$0xf]
        %v1381 = vld [vmem:[#allocation7 + $0x90] sm:$0xf]
        %v1382 = vld [vmem:[#allocation7 + $0xa0] sm:$0xf]
        %v1383 = vld [vmem:[#allocation7 + $0xb0] sm:$0xf]
        %v1384 = vld [vmem:[#allocation7 + $0xc0] sm:$0xf]
        %v1385 = vld [vmem:[#allocation7 + $0xd0] sm:$0xf]
        %v1386 = vld [vmem:[#allocation7 + $0xe0] sm:$0xf]
        %v1387 = vld [vmem:[#allocation7 + $0xf0] sm:$0xf]
        %v1388 = vld [vmem:[#allocation7 + $0x100] sm:$0xf]
        %v1389 = vld [vmem:[#allocation7 + $0x110] sm:$0xf]
        %v1390 = vld [vmem:[#allocation7 + $0x120] sm:$0xf]
        %v1391 = vld [vmem:[#allocation7 + $0x130] sm:$0xf]
        %v1392 = vld [vmem:[#allocation7 + $0x140] sm:$0xf]
        %v1393 = vld [vmem:[#allocation7 + $0x150] sm:$0xf]
        %v1394 = vld [vmem:[#allocation7 + $0x160] sm:$0xf]
        %v1395 = vld [vmem:[#allocation7 + $0x170] sm:$0xf]
        %v1396 = vld [vmem:[#allocation7 + $0x180] sm:$0xf]
        %v1397 = vld [vmem:[#allocation7 + $0x190] sm:$0xf]
        %v1398 = vld [vmem:[#allocation7 + $0x1a0] sm:$0xf]
        %v1399 = vld [vmem:[#allocation7 + $0x1b0] sm:$0xf]
        %v1400 = vld [vmem:[#allocation7 + $0x1c0] sm:$0xf]
        %v1401 = vld [vmem:[#allocation7 + $0x1d0] sm:$0xf]
        %v1402 = vld [vmem:[#allocation7 + $0x1e0] sm:$0xf]
        %v1403 = vld [vmem:[#allocation7 + $0x1f0] sm:$0xf]
        %v1436 = vunpack.c.l.b16 %v1372
        %v1437 = vunpack.c.l.b16 %v1373
        %v1438 = vunpack.c.l.b16 %v1374
        %v1439 = vunpack.c.l.b16 %v1375
        %v1440 = vunpack.c.l.b16 %v1376
        %v1441 = vunpack.c.l.b16 %v1377
        %v1442 = vunpack.c.l.b16 %v1378
        %v1443 = vunpack.c.l.b16 %v1379
        %v1444 = vunpack.c.l.b16 %v1380
        %v1445 = vunpack.c.l.b16 %v1381
        %v1446 = vunpack.c.l.b16 %v1382
        %v1447 = vunpack.c.l.b16 %v1383
        %v1448 = vunpack.c.l.b16 %v1384
        %v1449 = vunpack.c.l.b16 %v1385
        %v1450 = vunpack.c.l.b16 %v1386
        %v1451 = vunpack.c.l.b16 %v1387
        %v1452 = vunpack.c.l.b16 %v1388
        %v1453 = vunpack.c.l.b16 %v1389
        %v1454 = vunpack.c.l.b16 %v1390
        %v1455 = vunpack.c.l.b16 %v1391
        %v1456 = vunpack.c.l.b16 %v1392
        %v1457 = vunpack.c.l.b16 %v1393
        %v1458 = vunpack.c.l.b16 %v1394
        %v1459 = vunpack.c.l.b16 %v1395
        %v1460 = vunpack.c.l.b16 %v1396
        %v1461 = vunpack.c.l.b16 %v1397
        %v1462 = vunpack.c.l.b16 %v1398
        %v1463 = vunpack.c.l.b16 %v1399
        %v1464 = vunpack.c.l.b16 %v1400
        %v1465 = vunpack.c.l.b16 %v1401
        %v1466 = vunpack.c.l.b16 %v1402
        %v1467 = vunpack.c.l.b16 %v1403
        %v1468 = vpack.c.b16 %v1437, %v1436
        %v1469 = vpack.c.b16 %v1439, %v1438
        %v1470 = vpack.c.b16 %v1441, %v1440
        %v1471 = vpack.c.b16 %v1443, %v1442
        %v1472 = vpack.c.b16 %v1445, %v1444
        %v1473 = vpack.c.b16 %v1447, %v1446
        %v1474 = vpack.c.b16 %v1449, %v1448
        %v1475 = vpack.c.b16 %v1451, %v1450
        %v1476 = vpack.c.b16 %v1453, %v1452
        %v1477 = vpack.c.b16 %v1455, %v1454
        %v1478 = vpack.c.b16 %v1457, %v1456
        %v1479 = vpack.c.b16 %v1459, %v1458
        %v1480 = vpack.c.b16 %v1461, %v1460
        %v1481 = vpack.c.b16 %v1463, %v1462
        %v1482 = vpack.c.b16 %v1465, %v1464
        %v1483 = vpack.c.b16 %v1467, %v1466
        %1500 = vmatprep.subr.bf16.mxu0 0
        %1501 = vmatpush1.bf16.msra.mxu0 %v1475
        %1502 = vmatprep.subr.bf16.mxu0 0
        %1503 = vmatpush1.bf16.msra.mxu0 %v1474
        %1504 = vmatprep.subr.bf16.mxu0 0
        %1505 = vmatpush1.bf16.msra.mxu0 %v1473
        %1506 = vmatprep.subr.bf16.mxu0 0
        %1507 = vmatpush1.bf16.msra.mxu0 %v1472
        %1508 = vmatprep.subr.bf16.mxu0 0
        %1509 = vmatpush1.bf16.msra.mxu0 %v1471
        %1510 = vmatprep.subr.bf16.mxu0 0
        %1511 = vmatpush1.bf16.msra.mxu0 %v1470
        %1512 = vmatprep.subr.bf16.mxu0 0
        %1513 = vmatpush1.bf16.msra.mxu0 %v1469
        %1514 = vmatprep.subr.bf16.mxu0 0
        %1515 = vmatpush1.bf16.msra.mxu0 %v1468
        %1516 = vmatprep.subr.bf16.mxu0 0
        %1517 = vmatpush2.bf16.msra.mxu0 %v1483
        %1518 = vmatprep.subr.bf16.mxu0 0
        %1519 = vmatpush2.bf16.msra.mxu0 %v1482
        %1520 = vmatprep.subr.bf16.mxu0 0
        %1521 = vmatpush2.bf16.msra.mxu0 %v1481
        %1522 = vmatprep.subr.bf16.mxu0 0
        %1523 = vmatpush2.bf16.msra.mxu0 %v1480
        %1524 = vmatprep.subr.bf16.mxu0 0
        %1525 = vmatpush2.bf16.msra.mxu0 %v1479
        %1526 = vmatprep.subr.bf16.mxu0 0
        %1527 = vmatpush2.bf16.msra.mxu0 %v1478
        %1528 = vmatprep.subr.bf16.mxu0 0
        %1529 = vmatpush2.bf16.msra.mxu0 %v1477
        %1530 = vmatprep.subr.bf16.mxu0 0
        %1531 = vmatpush2.bf16.msra.mxu0 %v1476
        %1532 = vmatprep.mubr.bf16.mxu0 %v1371
        %1533 = vmatmul.mubr.bf16.gmra.mxu0 %v1370
        %v1534 = vpop.f32.mrf.mxu0
        %v1535 = vadd.f32 0.0, %v1534
        %v1536 = vpop.f32.mrf.mxu0
        %v1537 = vpop.f32.mrf.mxu0
        %v1538 = vpop.f32.mrf.mxu0
        %1539 = vdwg.mxu0
        %v1540 = vld [vmem:[#allocation7 + $0x4] sm:$0xf]
        %v1541 = vld [vmem:[#allocation7 + $0x14] sm:$0xf]
        %v1542 = vld [vmem:[#allocation7 + $0x24] sm:$0xf]
        %v1543 = vld [vmem:[#allocation7 + $0x34] sm:$0xf]
        %v1544 = vld [vmem:[#allocation7 + $0x44] sm:$0xf]
        %v1545 = vld [vmem:[#allocation7 + $0x54] sm:$0xf]
        %v1546 = vld [vmem:[#allocation7 + $0x64] sm:$0xf]
        %v1547 = vld [vmem:[#allocation7 + $0x74] sm:$0xf]
        %v1548 = vld [vmem:[#allocation7 + $0x84] sm:$0xf]
        %v1549 = vld [vmem:[#allocation7 + $0x94] sm:$0xf]
        %v1550 = vld [vmem:[#allocation7 + $0xa4] sm:$0xf]
        %v1551 = vld [vmem:[#allocation7 + $0xb4] sm:$0xf]
        %v1552 = vld [vmem:[#allocation7 + $0xc4] sm:$0xf]
        %v1553 = vld [vmem:[#allocation7 + $0xd4] sm:$0xf]
        %v1554 = vld [vmem:[#allocation7 + $0xe4] sm:$0xf]
        %v1555 = vld [vmem:[#allocation7 + $0xf4] sm:$0xf]
        %v1556 = vld [vmem:[#allocation7 + $0x104] sm:$0xf]
        %v1557 = vld [vmem:[#allocation7 + $0x114] sm:$0xf]
        %v1558 = vld [vmem:[#allocation7 + $0x124] sm:$0xf]
        %v1559 = vld [vmem:[#allocation7 + $0x134] sm:$0xf]
        %v1560 = vld [vmem:[#allocation7 + $0x144] sm:$0xf]
        %v1561 = vld [vmem:[#allocation7 + $0x154] sm:$0xf]
        %v1562 = vld [vmem:[#allocation7 + $0x164] sm:$0xf]
        %v1563 = vld [vmem:[#allocation7 + $0x174] sm:$0xf]
        %v1564 = vld [vmem:[#allocation7 + $0x184] sm:$0xf]
        %v1565 = vld [vmem:[#allocation7 + $0x194] sm:$0xf]
        %v1566 = vld [vmem:[#allocation7 + $0x1a4] sm:$0xf]
        %v1567 = vld [vmem:[#allocation7 + $0x1b4] sm:$0xf]
        %v1568 = vld [vmem:[#allocation7 + $0x1c4] sm:$0xf]
        %v1569 = vld [vmem:[#allocation7 + $0x1d4] sm:$0xf]
        %v1570 = vld [vmem:[#allocation7 + $0x1e4] sm:$0xf]
        %v1571 = vld [vmem:[#allocation7 + $0x1f4] sm:$0xf]
        %v1604 = vunpack.c.l.b16 %v1540
        %v1605 = vunpack.c.l.b16 %v1541
        %v1606 = vunpack.c.l.b16 %v1542
        %v1607 = vunpack.c.l.b16 %v1543
        %v1608 = vunpack.c.l.b16 %v1544
        %v1609 = vunpack.c.l.b16 %v1545
        %v1610 = vunpack.c.l.b16 %v1546
        %v1611 = vunpack.c.l.b16 %v1547
        %v1612 = vunpack.c.l.b16 %v1548
        %v1613 = vunpack.c.l.b16 %v1549
        %v1614 = vunpack.c.l.b16 %v1550
        %v1615 = vunpack.c.l.b16 %v1551
        %v1616 = vunpack.c.l.b16 %v1552
        %v1617 = vunpack.c.l.b16 %v1553
        %v1618 = vunpack.c.l.b16 %v1554
        %v1619 = vunpack.c.l.b16 %v1555
        %v1620 = vunpack.c.l.b16 %v1556
        %v1621 = vunpack.c.l.b16 %v1557
        %v1622 = vunpack.c.l.b16 %v1558
        %v1623 = vunpack.c.l.b16 %v1559
        %v1624 = vunpack.c.l.b16 %v1560
        %v1625 = vunpack.c.l.b16 %v1561
        %v1626 = vunpack.c.l.b16 %v1562
        %v1627 = vunpack.c.l.b16 %v1563
        %v1628 = vunpack.c.l.b16 %v1564
        %v1629 = vunpack.c.l.b16 %v1565
        %v1630 = vunpack.c.l.b16 %v1566
        %v1631 = vunpack.c.l.b16 %v1567
        %v1632 = vunpack.c.l.b16 %v1568
        %v1633 = vunpack.c.l.b16 %v1569
        %v1634 = vunpack.c.l.b16 %v1570
        %v1635 = vunpack.c.l.b16 %v1571
        %v1636 = vpack.c.b16 %v1605, %v1604
        %v1637 = vpack.c.b16 %v1607, %v1606
        %v1638 = vpack.c.b16 %v1609, %v1608
        %v1639 = vpack.c.b16 %v1611, %v1610
        %v1640 = vpack.c.b16 %v1613, %v1612
        %v1641 = vpack.c.b16 %v1615, %v1614
        %v1642 = vpack.c.b16 %v1617, %v1616
        %v1643 = vpack.c.b16 %v1619, %v1618
        %v1644 = vpack.c.b16 %v1621, %v1620
        %v1645 = vpack.c.b16 %v1623, %v1622
        %v1646 = vpack.c.b16 %v1625, %v1624
        %v1647 = vpack.c.b16 %v1627, %v1626
        %v1648 = vpack.c.b16 %v1629, %v1628
        %v1649 = vpack.c.b16 %v1631, %v1630
        %v1650 = vpack.c.b16 %v1633, %v1632
        %v1651 = vpack.c.b16 %v1635, %v1634
        %1668 = vmatprep.subr.bf16.mxu0 0
        %1669 = vmatpush1.bf16.msra.mxu0 %v1643
        %1670 = vmatprep.subr.bf16.mxu0 0
        %1671 = vmatpush1.bf16.msra.mxu0 %v1642
        %1672 = vmatprep.subr.bf16.mxu0 0
        %1673 = vmatpush1.bf16.msra.mxu0 %v1641
        %1674 = vmatprep.subr.bf16.mxu0 0
        %1675 = vmatpush1.bf16.msra.mxu0 %v1640
        %1676 = vmatprep.subr.bf16.mxu0 0
        %1677 = vmatpush1.bf16.msra.mxu0 %v1639
        %1678 = vmatprep.subr.bf16.mxu0 0
        %1679 = vmatpush1.bf16.msra.mxu0 %v1638
        %1680 = vmatprep.subr.bf16.mxu0 0
        %1681 = vmatpush1.bf16.msra.mxu0 %v1637
        %1682 = vmatprep.subr.bf16.mxu0 0
        %1683 = vmatpush1.bf16.msra.mxu0 %v1636
        %1684 = vmatprep.subr.bf16.mxu0 0
        %1685 = vmatpush2.bf16.msra.mxu0 %v1651
        %1686 = vmatprep.subr.bf16.mxu0 0
        %1687 = vmatpush2.bf16.msra.mxu0 %v1650
        %1688 = vmatprep.subr.bf16.mxu0 0
        %1689 = vmatpush2.bf16.msra.mxu0 %v1649
        %1690 = vmatprep.subr.bf16.mxu0 0
        %1691 = vmatpush2.bf16.msra.mxu0 %v1648
        %1692 = vmatprep.subr.bf16.mxu0 0
        %1693 = vmatpush2.bf16.msra.mxu0 %v1647
        %1694 = vmatprep.subr.bf16.mxu0 0
        %1695 = vmatpush2.bf16.msra.mxu0 %v1646
        %1696 = vmatprep.subr.bf16.mxu0 0
        %1697 = vmatpush2.bf16.msra.mxu0 %v1645
        %1698 = vmatprep.subr.bf16.mxu0 0
        %1699 = vmatpush2.bf16.msra.mxu0 %v1644
        %1700 = vmatprep.mubr.bf16.mxu0 %v1371
        %1701 = vmatmul.mubr.bf16.gmra.mxu0 %v1370
        %v1702 = vpop.f32.mrf.mxu0
        %v1703 = vadd.f32 0.0, %v1702
        %v1704 = vpop.f32.mrf.mxu0
        %v1705 = vpop.f32.mrf.mxu0
        %v1706 = vpop.f32.mrf.mxu0
        %1707 = vdwg.mxu0
        %v1708 = vmax.f32 %v1535, %v1703
        %v1709 = vld [vmem:[#allocation7 + $0x8] sm:$0xf]
        %v1710 = vld [vmem:[#allocation7 + $0x18] sm:$0xf]
        %v1711 = vld [vmem:[#allocation7 + $0x28] sm:$0xf]
        %v1712 = vld [vmem:[#allocation7 + $0x38] sm:$0xf]
        %v1713 = vld [vmem:[#allocation7 + $0x48] sm:$0xf]
        %v1714 = vld [vmem:[#allocation7 + $0x58] sm:$0xf]
        %v1715 = vld [vmem:[#allocation7 + $0x68] sm:$0xf]
        %v1716 = vld [vmem:[#allocation7 + $0x78] sm:$0xf]
        %v1717 = vld [vmem:[#allocation7 + $0x88] sm:$0xf]
        %v1718 = vld [vmem:[#allocation7 + $0x98] sm:$0xf]
        %v1719 = vld [vmem:[#allocation7 + $0xa8] sm:$0xf]
        %v1720 = vld [vmem:[#allocation7 + $0xb8] sm:$0xf]
        %v1721 = vld [vmem:[#allocation7 + $0xc8] sm:$0xf]
        %v1722 = vld [vmem:[#allocation7 + $0xd8] sm:$0xf]
        %v1723 = vld [vmem:[#allocation7 + $0xe8] sm:$0xf]
        %v1724 = vld [vmem:[#allocation7 + $0xf8] sm:$0xf]
        %v1725 = vld [vmem:[#allocation7 + $0x108] sm:$0xf]
        %v1726 = vld [vmem:[#allocation7 + $0x118] sm:$0xf]
        %v1727 = vld [vmem:[#allocation7 + $0x128] sm:$0xf]
        %v1728 = vld [vmem:[#allocation7 + $0x138] sm:$0xf]
        %v1729 = vld [vmem:[#allocation7 + $0x148] sm:$0xf]
        %v1730 = vld [vmem:[#allocation7 + $0x158] sm:$0xf]
        %v1731 = vld [vmem:[#allocation7 + $0x168] sm:$0xf]
        %v1732 = vld [vmem:[#allocation7 + $0x178] sm:$0xf]
        %v1733 = vld [vmem:[#allocation7 + $0x188] sm:$0xf]
        %v1734 = vld [vmem:[#allocation7 + $0x198] sm:$0xf]
        %v1735 = vld [vmem:[#allocation7 + $0x1a8] sm:$0xf]
        %v1736 = vld [vmem:[#allocation7 + $0x1b8] sm:$0xf]
        %v1737 = vld [vmem:[#allocation7 + $0x1c8] sm:$0xf]
        %v1738 = vld [vmem:[#allocation7 + $0x1d8] sm:$0xf]
        %v1739 = vld [vmem:[#allocation7 + $0x1e8] sm:$0xf]
        %v1740 = vld [vmem:[#allocation7 + $0x1f8] sm:$0xf]
        %v1773 = vunpack.c.l.b16 %v1709
        %v1774 = vunpack.c.l.b16 %v1710
        %v1775 = vunpack.c.l.b16 %v1711
        %v1776 = vunpack.c.l.b16 %v1712
        %v1777 = vunpack.c.l.b16 %v1713
        %v1778 = vunpack.c.l.b16 %v1714
        %v1779 = vunpack.c.l.b16 %v1715
        %v1780 = vunpack.c.l.b16 %v1716
        %v1781 = vunpack.c.l.b16 %v1717
        %v1782 = vunpack.c.l.b16 %v1718
        %v1783 = vunpack.c.l.b16 %v1719
        %v1784 = vunpack.c.l.b16 %v1720
        %v1785 = vunpack.c.l.b16 %v1721
        %v1786 = vunpack.c.l.b16 %v1722
        %v1787 = vunpack.c.l.b16 %v1723
        %v1788 = vunpack.c.l.b16 %v1724
        %v1789 = vunpack.c.l.b16 %v1725
        %v1790 = vunpack.c.l.b16 %v1726
        %v1791 = vunpack.c.l.b16 %v1727
        %v1792 = vunpack.c.l.b16 %v1728
        %v1793 = vunpack.c.l.b16 %v1729
        %v1794 = vunpack.c.l.b16 %v1730
        %v1795 = vunpack.c.l.b16 %v1731
        %v1796 = vunpack.c.l.b16 %v1732
        %v1797 = vunpack.c.l.b16 %v1733
        %v1798 = vunpack.c.l.b16 %v1734
        %v1799 = vunpack.c.l.b16 %v1735
        %v1800 = vunpack.c.l.b16 %v1736
        %v1801 = vunpack.c.l.b16 %v1737
        %v1802 = vunpack.c.l.b16 %v1738
        %v1803 = vunpack.c.l.b16 %v1739
        %v1804 = vunpack.c.l.b16 %v1740
        %v1805 = vpack.c.b16 %v1774, %v1773
        %v1806 = vpack.c.b16 %v1776, %v1775
        %v1807 = vpack.c.b16 %v1778, %v1777
        %v1808 = vpack.c.b16 %v1780, %v1779
        %v1809 = vpack.c.b16 %v1782, %v1781
        %v1810 = vpack.c.b16 %v1784, %v1783
        %v1811 = vpack.c.b16 %v1786, %v1785
        %v1812 = vpack.c.b16 %v1788, %v1787
        %v1813 = vpack.c.b16 %v1790, %v1789
        %v1814 = vpack.c.b16 %v1792, %v1791
        %v1815 = vpack.c.b16 %v1794, %v1793
        %v1816 = vpack.c.b16 %v1796, %v1795
        %v1817 = vpack.c.b16 %v1798, %v1797
        %v1818 = vpack.c.b16 %v1800, %v1799
        %v1819 = vpack.c.b16 %v1802, %v1801
        %v1820 = vpack.c.b16 %v1804, %v1803
        %1837 = vmatprep.subr.bf16.mxu0 0
        %1838 = vmatpush1.bf16.msra.mxu0 %v1812
        %1839 = vmatprep.subr.bf16.mxu0 0
        %1840 = vmatpush1.bf16.msra.mxu0 %v1811
        %1841 = vmatprep.subr.bf16.mxu0 0
        %1842 = vmatpush1.bf16.msra.mxu0 %v1810
        %1843 = vmatprep.subr.bf16.mxu0 0
        %1844 = vmatpush1.bf16.msra.mxu0 %v1809
        %1845 = vmatprep.subr.bf16.mxu0 0
        %1846 = vmatpush1.bf16.msra.mxu0 %v1808
        %1847 = vmatprep.subr.bf16.mxu0 0
        %1848 = vmatpush1.bf16.msra.mxu0 %v1807
        %1849 = vmatprep.subr.bf16.mxu0 0
        %1850 = vmatpush1.bf16.msra.mxu0 %v1806
        %1851 = vmatprep.subr.bf16.mxu0 0
        %1852 = vmatpush1.bf16.msra.mxu0 %v1805
        %1853 = vmatprep.subr.bf16.mxu0 0
        %1854 = vmatpush2.bf16.msra.mxu0 %v1820
        %1855 = vmatprep.subr.bf16.mxu0 0
        %1856 = vmatpush2.bf16.msra.mxu0 %v1819
        %1857 = vmatprep.subr.bf16.mxu0 0
        %1858 = vmatpush2.bf16.msra.mxu0 %v1818
        %1859 = vmatprep.subr.bf16.mxu0 0
        %1860 = vmatpush2.bf16.msra.mxu0 %v1817
        %1861 = vmatprep.subr.bf16.mxu0 0
        %1862 = vmatpush2.bf16.msra.mxu0 %v1816
        %1863 = vmatprep.subr.bf16.mxu0 0
        %1864 = vmatpush2.bf16.msra.mxu0 %v1815
        %1865 = vmatprep.subr.bf16.mxu0 0
        %1866 = vmatpush2.bf16.msra.mxu0 %v1814
        %1867 = vmatprep.subr.bf16.mxu0 0
        %1868 = vmatpush2.bf16.msra.mxu0 %v1813
        %1869 = vmatprep.mubr.bf16.mxu0 %v1371
        %1870 = vmatmul.mubr.bf16.gmra.mxu0 %v1370
        %v1871 = vpop.f32.mrf.mxu0
        %v1872 = vadd.f32 0.0, %v1871
        %v1873 = vpop.f32.mrf.mxu0
        %v1874 = vpop.f32.mrf.mxu0
        %v1875 = vpop.f32.mrf.mxu0
        %1876 = vdwg.mxu0
        %v1877 = vld [vmem:[#allocation7 + $0xc] sm:$0xf]
        %v1878 = vld [vmem:[#allocation7 + $0x1c] sm:$0xf]
        %v1879 = vld [vmem:[#allocation7 + $0x2c] sm:$0xf]
        %v1880 = vld [vmem:[#allocation7 + $0x3c] sm:$0xf]
        %v1881 = vld [vmem:[#allocation7 + $0x4c] sm:$0xf]
        %v1882 = vld [vmem:[#allocation7 + $0x5c] sm:$0xf]
        %v1883 = vld [vmem:[#allocation7 + $0x6c] sm:$0xf]
        %v1884 = vld [vmem:[#allocation7 + $0x7c] sm:$0xf]
        %v1885 = vld [vmem:[#allocation7 + $0x8c] sm:$0xf]
        %v1886 = vld [vmem:[#allocation7 + $0x9c] sm:$0xf]
        %v1887 = vld [vmem:[#allocation7 + $0xac] sm:$0xf]
        %v1888 = vld [vmem:[#allocation7 + $0xbc] sm:$0xf]
        %v1889 = vld [vmem:[#allocation7 + $0xcc] sm:$0xf]
        %v1890 = vld [vmem:[#allocation7 + $0xdc] sm:$0xf]
        %v1891 = vld [vmem:[#allocation7 + $0xec] sm:$0xf]
        %v1892 = vld [vmem:[#allocation7 + $0xfc] sm:$0xf]
        %v1893 = vld [vmem:[#allocation7 + $0x10c] sm:$0xf]
        %v1894 = vld [vmem:[#allocation7 + $0x11c] sm:$0xf]
        %v1895 = vld [vmem:[#allocation7 + $0x12c] sm:$0xf]
        %v1896 = vld [vmem:[#allocation7 + $0x13c] sm:$0xf]
        %v1897 = vld [vmem:[#allocation7 + $0x14c] sm:$0xf]
        %v1898 = vld [vmem:[#allocation7 + $0x15c] sm:$0xf]
        %v1899 = vld [vmem:[#allocation7 + $0x16c] sm:$0xf]
        %v1900 = vld [vmem:[#allocation7 + $0x17c] sm:$0xf]
        %v1901 = vld [vmem:[#allocation7 + $0x18c] sm:$0xf]
        %v1902 = vld [vmem:[#allocation7 + $0x19c] sm:$0xf]
        %v1903 = vld [vmem:[#allocation7 + $0x1ac] sm:$0xf]
        %v1904 = vld [vmem:[#allocation7 + $0x1bc] sm:$0xf]
        %v1905 = vld [vmem:[#allocation7 + $0x1cc] sm:$0xf]
        %v1906 = vld [vmem:[#allocation7 + $0x1dc] sm:$0xf]
        %v1907 = vld [vmem:[#allocation7 + $0x1ec] sm:$0xf]
        %v1908 = vld [vmem:[#allocation7 + $0x1fc] sm:$0xf]
        %v1941 = vunpack.c.l.b16 %v1877
        %v1942 = vunpack.c.l.b16 %v1878
        %v1943 = vunpack.c.l.b16 %v1879
        %v1944 = vunpack.c.l.b16 %v1880
        %v1945 = vunpack.c.l.b16 %v1881
        %v1946 = vunpack.c.l.b16 %v1882
        %v1947 = vunpack.c.l.b16 %v1883
        %v1948 = vunpack.c.l.b16 %v1884
        %v1949 = vunpack.c.l.b16 %v1885
        %v1950 = vunpack.c.l.b16 %v1886
        %v1951 = vunpack.c.l.b16 %v1887
        %v1952 = vunpack.c.l.b16 %v1888
        %v1953 = vunpack.c.l.b16 %v1889
        %v1954 = vunpack.c.l.b16 %v1890
        %v1955 = vunpack.c.l.b16 %v1891
        %v1956 = vunpack.c.l.b16 %v1892
        %v1957 = vunpack.c.l.b16 %v1893
        %v1958 = vunpack.c.l.b16 %v1894
        %v1959 = vunpack.c.l.b16 %v1895
        %v1960 = vunpack.c.l.b16 %v1896
        %v1961 = vunpack.c.l.b16 %v1897
        %v1962 = vunpack.c.l.b16 %v1898
        %v1963 = vunpack.c.l.b16 %v1899
        %v1964 = vunpack.c.l.b16 %v1900
        %v1965 = vunpack.c.l.b16 %v1901
        %v1966 = vunpack.c.l.b16 %v1902
        %v1967 = vunpack.c.l.b16 %v1903
        %v1968 = vunpack.c.l.b16 %v1904
        %v1969 = vunpack.c.l.b16 %v1905
        %v1970 = vunpack.c.l.b16 %v1906
        %v1971 = vunpack.c.l.b16 %v1907
        %v1972 = vunpack.c.l.b16 %v1908
        %v1973 = vpack.c.b16 %v1942, %v1941
        %v1974 = vpack.c.b16 %v1944, %v1943
        %v1975 = vpack.c.b16 %v1946, %v1945
        %v1976 = vpack.c.b16 %v1948, %v1947
        %v1977 = vpack.c.b16 %v1950, %v1949
        %v1978 = vpack.c.b16 %v1952, %v1951
        %v1979 = vpack.c.b16 %v1954, %v1953
        %v1980 = vpack.c.b16 %v1956, %v1955
        %v1981 = vpack.c.b16 %v1958, %v1957
        %v1982 = vpack.c.b16 %v1960, %v1959
        %v1983 = vpack.c.b16 %v1962, %v1961
        %v1984 = vpack.c.b16 %v1964, %v1963
        %v1985 = vpack.c.b16 %v1966, %v1965
        %v1986 = vpack.c.b16 %v1968, %v1967
        %v1987 = vpack.c.b16 %v1970, %v1969
        %v1988 = vpack.c.b16 %v1972, %v1971
        %2005 = vmatprep.subr.bf16.mxu0 0
        %2006 = vmatpush1.bf16.msra.mxu0 %v1980
        %2007 = vmatprep.subr.bf16.mxu0 0
        %2008 = vmatpush1.bf16.msra.mxu0 %v1979
        %2009 = vmatprep.subr.bf16.mxu0 0
        %2010 = vmatpush1.bf16.msra.mxu0 %v1978
        %2011 = vmatprep.subr.bf16.mxu0 0
        %2012 = vmatpush1.bf16.msra.mxu0 %v1977
        %2013 = vmatprep.subr.bf16.mxu0 0
        %2014 = vmatpush1.bf16.msra.mxu0 %v1976
        %2015 = vmatprep.subr.bf16.mxu0 0
        %2016 = vmatpush1.bf16.msra.mxu0 %v1975
        %2017 = vmatprep.subr.bf16.mxu0 0
        %2018 = vmatpush1.bf16.msra.mxu0 %v1974
        %2019 = vmatprep.subr.bf16.mxu0 0
        %2020 = vmatpush1.bf16.msra.mxu0 %v1973
        %2021 = vmatprep.subr.bf16.mxu0 0
        %2022 = vmatpush2.bf16.msra.mxu0 %v1988
        %2023 = vmatprep.subr.bf16.mxu0 0
        %2024 = vmatpush2.bf16.msra.mxu0 %v1987
        %2025 = vmatprep.subr.bf16.mxu0 0
        %2026 = vmatpush2.bf16.msra.mxu0 %v1986
        %2027 = vmatprep.subr.bf16.mxu0 0
        %2028 = vmatpush2.bf16.msra.mxu0 %v1985
        %2029 = vmatprep.subr.bf16.mxu0 0
        %2030 = vmatpush2.bf16.msra.mxu0 %v1984
        %2031 = vmatprep.subr.bf16.mxu0 0
        %2032 = vmatpush2.bf16.msra.mxu0 %v1983
        %2033 = vmatprep.subr.bf16.mxu0 0
        %2034 = vmatpush2.bf16.msra.mxu0 %v1982
        %2035 = vmatprep.subr.bf16.mxu0 0
        %2036 = vmatpush2.bf16.msra.mxu0 %v1981
        %2037 = vmatprep.mubr.bf16.mxu0 %v1371
        %2038 = vmatmul.mubr.bf16.gmra.mxu0 %v1370
        %v2039 = vpop.f32.mrf.mxu0
        %v2040 = vadd.f32 0.0, %v2039
        %v2041 = vpop.f32.mrf.mxu0
        %v2042 = vpop.f32.mrf.mxu0
        %v2043 = vpop.f32.mrf.mxu0
        %2044 = vdwg.mxu0
        %v2045 = vmax.f32 %v1872, %v2040
        %v2046 = vmax.f32 %v1708, %v2045
        %v2047 = vld [vmem:[%s4] sm:$0x1]
        %v2049 = vlaneseq
        %v2050 = vshrl.u32 %v2049, 7
        %v2051 = vsub.s32 0, %v2050
        %v2052 = vrot.slane %v2047, %v2051
        %v2054 = vadd.f32 %v2046, %v2052
        %v2055 = vmax.f32 %v2054, 0.0
        %v2056 = vpack.c.bf16 %v2055, %v2055
        %v2057 = vld [vmem:[#allocation8] sm:$0xf]
        %v2058 = vld [vmem:[#allocation8 + $0x4] sm:$0xf]
        %v2059 = vld [vmem:[#allocation8 + $0x8] sm:$0xf]
        %v2060 = vld [vmem:[#allocation8 + $0xc] sm:$0xf]
        %v2061 = vld [vmem:[#allocation8 + $0x10] sm:$0xf]
        %v2062 = vld [vmem:[#allocation8 + $0x14] sm:$0xf]
        %v2063 = vld [vmem:[#allocation8 + $0x18] sm:$0xf]
        %v2064 = vld [vmem:[#allocation8 + $0x1c] sm:$0xf]
        %v2065 = vld [vmem:[#allocation8 + $0x20] sm:$0xf]
        %v2066 = vld [vmem:[#allocation8 + $0x24] sm:$0xf]
        %v2067 = vld [vmem:[#allocation8 + $0x28] sm:$0xf]
        %v2068 = vld [vmem:[#allocation8 + $0x2c] sm:$0xf]
        %v2069 = vld [vmem:[#allocation8 + $0x30] sm:$0xf]
        %v2070 = vld [vmem:[#allocation8 + $0x34] sm:$0xf]
        %v2071 = vld [vmem:[#allocation8 + $0x38] sm:$0xf]
        %v2072 = vld [vmem:[#allocation8 + $0x3c] sm:$0xf]
        %v2073 = vld [vmem:[%s6] sm:$0x1]
        %v2075 = vlaneseq
        %v2076 = vshrl.u32 %v2075, 7
        %v2077 = vsub.s32 0, %v2076
        %v2078 = vrot.slane %v2073, %v2077
        %v2096 = vunpack.c.l.b16 %v2057
        %v2097 = vunpack.c.l.b16 %v2058
        %v2098 = vunpack.c.l.b16 %v2059
        %v2099 = vunpack.c.l.b16 %v2060
        %v2100 = vunpack.c.l.b16 %v2061
        %v2101 = vunpack.c.l.b16 %v2062
        %v2102 = vunpack.c.l.b16 %v2063
        %v2103 = vunpack.c.l.b16 %v2064
        %v2104 = vunpack.c.l.b16 %v2065
        %v2105 = vunpack.c.l.b16 %v2066
        %v2106 = vunpack.c.l.b16 %v2067
        %v2107 = vunpack.c.l.b16 %v2068
        %v2108 = vunpack.c.l.b16 %v2069
        %v2109 = vunpack.c.l.b16 %v2070
        %v2110 = vunpack.c.l.b16 %v2071
        %v2111 = vunpack.c.l.b16 %v2072
        %v2112 = vpack.c.b16 %v2097, %v2096
        %v2113 = vpack.c.b16 %v2099, %v2098
        %v2114 = vpack.c.b16 %v2101, %v2100
        %v2115 = vpack.c.b16 %v2103, %v2102
        %v2116 = vpack.c.b16 %v2105, %v2104
        %v2117 = vpack.c.b16 %v2107, %v2106
        %v2118 = vpack.c.b16 %v2109, %v2108
        %v2119 = vpack.c.b16 %v2111, %v2110
        %2128 = vmatprep.subr.bf16.mxu0 0
        %2129 = vmatpush1.bf16.msra.mxu0 %v2119
        %2130 = vmatprep.subr.bf16.mxu0 0
        %2131 = vmatpush1.bf16.msra.mxu0 %v2118
        %2132 = vmatprep.subr.bf16.mxu0 0
        %2133 = vmatpush1.bf16.msra.mxu0 %v2117
        %2134 = vmatprep.subr.bf16.mxu0 0
        %2135 = vmatpush1.bf16.msra.mxu0 %v2116
        %2136 = vmatprep.subr.bf16.mxu0 0
        %2137 = vmatpush1.bf16.msra.mxu0 %v2115
        %2138 = vmatprep.subr.bf16.mxu0 0
        %2139 = vmatpush1.bf16.msra.mxu0 %v2114
        %2140 = vmatprep.subr.bf16.mxu0 0
        %2141 = vmatpush1.bf16.msra.mxu0 %v2113
        %2142 = vmatprep.subr.bf16.mxu0 0
        %2143 = vmatpush1.bf16.msra.mxu0 %v2112
        %2144 = vmatprep.subr.bf16.mxu0 0
        %2145 = vmatpush2.bf16.msra.mxu0 0
        %2146 = vmatprep.subr.bf16.mxu0 0
        %2147 = vmatpush2.bf16.msra.mxu0 0
        %2148 = vmatprep.subr.bf16.mxu0 0
        %2149 = vmatpush2.bf16.msra.mxu0 0
        %2150 = vmatprep.subr.bf16.mxu0 0
        %2151 = vmatpush2.bf16.msra.mxu0 0
        %2152 = vmatprep.subr.bf16.mxu0 0
        %2153 = vmatpush2.bf16.msra.mxu0 0
        %2154 = vmatprep.subr.bf16.mxu0 0
        %2155 = vmatpush2.bf16.msra.mxu0 0
        %2156 = vmatprep.subr.bf16.mxu0 0
        %2157 = vmatpush2.bf16.msra.mxu0 0
        %2158 = vmatprep.subr.bf16.mxu0 0
        %2159 = vmatpush2.bf16.msra.mxu0 0
        %2160 = vmatprep.mubr.bf16.mxu0 0
        %2161 = vmatmul.mubr.bf16.gmra.mxu0 %v2056
        %v2162 = vpop.f32.mrf.mxu0
        %v2163 = vadd.f32 %v2078, %v2162
        %v2164 = vpop.f32.mrf.mxu0
        %v2165 = vpop.f32.mrf.mxu0
        %v2166 = vpop.f32.mrf.mxu0
        %2167 = vdwg.mxu0
        %v2168 = vmax.f32 %v2163, 0.0
        %v2169 = vpack.c.bf16 %v2168, %v2168
        %v2170 = vld [vmem:[#allocation10] sm:$0xf]
        %v2171 = vld [vmem:[#allocation10 + $0x4] sm:$0xf]
        %v2172 = vld [vmem:[#allocation10 + $0x8] sm:$0xf]
        %v2173 = vld [vmem:[#allocation10 + $0xc] sm:$0xf]
        %v2174 = vld [vmem:[#allocation10 + $0x10] sm:$0xf]
        %v2175 = vld [vmem:[#allocation10 + $0x14] sm:$0xf]
        %v2176 = vld [vmem:[#allocation10 + $0x18] sm:$0xf]
        %v2177 = vld [vmem:[#allocation10 + $0x1c] sm:$0xf]
        %v2178 = vld [vmem:[#allocation10 + $0x20] sm:$0xf]
        %v2179 = vld [vmem:[#allocation10 + $0x24] sm:$0xf]
        %v2180 = vld [vmem:[#allocation10 + $0x28] sm:$0xf]
        %v2181 = vld [vmem:[#allocation10 + $0x2c] sm:$0xf]
        %v2182 = vld [vmem:[#allocation10 + $0x30] sm:$0xf]
        %v2183 = vld [vmem:[#allocation10 + $0x34] sm:$0xf]
        %v2184 = vld [vmem:[#allocation10 + $0x38] sm:$0xf]
        %v2185 = vld [vmem:[#allocation10 + $0x3c] sm:$0xf]
        %v2186 = vld [vmem:[%s8] sm:$0x1]
        %v2188 = vlaneseq
        %v2189 = vshrl.u32 %v2188, 7
        %v2190 = vsub.s32 0, %v2189
        %v2191 = vrot.slane %v2186, %v2190
        %v2209 = vunpack.c.l.b16 %v2170
        %v2210 = vunpack.c.l.b16 %v2171
        %v2211 = vunpack.c.l.b16 %v2172
        %v2212 = vunpack.c.l.b16 %v2173
        %v2213 = vunpack.c.l.b16 %v2174
        %v2214 = vunpack.c.l.b16 %v2175
        %v2215 = vunpack.c.l.b16 %v2176
        %v2216 = vunpack.c.l.b16 %v2177
        %v2217 = vunpack.c.l.b16 %v2178
        %v2218 = vunpack.c.l.b16 %v2179
        %v2219 = vunpack.c.l.b16 %v2180
        %v2220 = vunpack.c.l.b16 %v2181
        %v2221 = vunpack.c.l.b16 %v2182
        %v2222 = vunpack.c.l.b16 %v2183
        %v2223 = vunpack.c.l.b16 %v2184
        %v2224 = vunpack.c.l.b16 %v2185
        %v2225 = vpack.c.b16 %v2210, %v2209
        %v2226 = vpack.c.b16 %v2212, %v2211
        %v2227 = vpack.c.b16 %v2214, %v2213
        %v2228 = vpack.c.b16 %v2216, %v2215
        %v2229 = vpack.c.b16 %v2218, %v2217
        %v2230 = vpack.c.b16 %v2220, %v2219
        %v2231 = vpack.c.b16 %v2222, %v2221
        %v2232 = vpack.c.b16 %v2224, %v2223
        %2241 = vmatprep.subr.bf16.mxu0 0
        %2242 = vmatpush1.bf16.msra.mxu0 %v2232
        %2243 = vmatprep.subr.bf16.mxu0 0
        %2244 = vmatpush1.bf16.msra.mxu0 %v2231
        %2245 = vmatprep.subr.bf16.mxu0 0
        %2246 = vmatpush1.bf16.msra.mxu0 %v2230
        %2247 = vmatprep.subr.bf16.mxu0 0
        %2248 = vmatpush1.bf16.msra.mxu0 %v2229
        %2249 = vmatprep.subr.bf16.mxu0 0
        %2250 = vmatpush1.bf16.msra.mxu0 %v2228
        %2251 = vmatprep.subr.bf16.mxu0 0
        %2252 = vmatpush1.bf16.msra.mxu0 %v2227
        %2253 = vmatprep.subr.bf16.mxu0 0
        %2254 = vmatpush1.bf16.msra.mxu0 %v2226
        %2255 = vmatprep.subr.bf16.mxu0 0
        %2256 = vmatpush1.bf16.msra.mxu0 %v2225
        %2257 = vmatprep.subr.bf16.mxu0 0
        %2258 = vmatpush2.bf16.msra.mxu0 0
        %2259 = vmatprep.subr.bf16.mxu0 0
        %2260 = vmatpush2.bf16.msra.mxu0 0
        %2261 = vmatprep.subr.bf16.mxu0 0
        %2262 = vmatpush2.bf16.msra.mxu0 0
        %2263 = vmatprep.subr.bf16.mxu0 0
        %2264 = vmatpush2.bf16.msra.mxu0 0
        %2265 = vmatprep.subr.bf16.mxu0 0
        %2266 = vmatpush2.bf16.msra.mxu0 0
        %2267 = vmatprep.subr.bf16.mxu0 0
        %2268 = vmatpush2.bf16.msra.mxu0 0
        %2269 = vmatprep.subr.bf16.mxu0 0
        %2270 = vmatpush2.bf16.msra.mxu0 0
        %2271 = vmatprep.subr.bf16.mxu0 0
        %2272 = vmatpush2.bf16.msra.mxu0 0
        %2273 = vmatprep.mubr.bf16.mxu0 0
        %2274 = vmatmul.mubr.bf16.gmra.mxu0 %v2169
        %v2275 = vpop.f32.mrf.mxu0
        %v2276 = vadd.f32 %v2191, %v2275
        %v2277 = vpop.f32.mrf.mxu0
        %v2278 = vpop.f32.mrf.mxu0
        %v2279 = vpop.f32.mrf.mxu0
        %2280 = vdwg.mxu0
        %v2281 = vpack.c.bf16 %v2276, %v2276
        %2282 = vst [vmem:[%s406] sm:$0xf] %v2281
        %s2283 = sand.u32 %s230, 1
        %s2284 = scalar_lea.sflag [#allocation4], %s2283
        %s2285 = sand.u32 %s230, 1
        %s2286 = smul.addr %s2285, 4
        %s2287 = scalar_lea.vmem [#allocation11], %s2286
        // Predicated region
        $region77: #{tpu_custom_call.1} parent=55 // pred_check
          %p2288 = pneg %p240
        $region78: #{tpu_custom_call.1} parent=55 // pred_check_branch
          %2290 = sbr.rel (%p2288) target = $region80
        $region79: #{tpu_custom_call.1} parent=55 // pred_region
          %s2292 = ssub.s32 64, 64
          %2293 = vsyncadd %s2284, %s2292
          %s2294 = smul.addr %s28, 64
          %s2295 = scalar_lea.hbm %s9, %s2294
          %s2297 = sshll.u32 %s2287, 4
          %s2298 = int_to_ptr.vmem [resolvable:$true] %s2297
          %2300 = dma.vmem_to_hbm [thread:$0]  %s2298, 64, %s2295, %s2284
        $region80: #{tpu_custom_call.1} parent=55 // pred_fallthru
          _
      $region56: #{tpu_custom_call.1} parent=5 // pred_fallthru
        _
      %p2301 = scmp.le.s32.totalorder 2, %s23
      // Predicated region
      $region81: #{tpu_custom_call.1} parent=5 // pred_check
        %p2302 = pneg %p2301
      $region82: #{tpu_custom_call.1} parent=5 // pred_check_branch
        %2304 = sbr.rel (%p2302) target = $region84
      $region83: #{tpu_custom_call.1} parent=5 // pred_region
        %s2305 = ssub.s32 %s23, 2
        // Predicated region
        $region85: #{tpu_custom_call.1} parent=83 // pred_check
          %p2306 = pneg %p246
        $region86: #{tpu_custom_call.1} parent=83 // pred_check_branch
          %2308 = sbr.rel (%p2306) target = $region88
        $region87: #{tpu_custom_call.1} parent=83 // pred_region
          %s2309 = sand.u32 %s231, 1
          %s2310 = scalar_lea.sflag [#allocation4], %s2309
          %s2311 = sand.u32 %s231, 1
          %s2312 = smul.addr %s2311, 4
          %s2313 = scalar_lea.vmem [#allocation11], %s2312
          %2314 = dma.done %s2310, 64
        $region88: #{tpu_custom_call.1} parent=83 // pred_fallthru
          _
      $region84: #{tpu_custom_call.1} parent=5 // pred_fallthru
        _
    $region6: #{tpu_custom_call.1} parent=1 // loop_footer
      %s27 = sadd.s32 1, %s23
    $region7: #{tpu_custom_call.1} parent=1 // loop_footer_branch
      %22 = sbr.rel target = $region3
    $region8: #{tpu_custom_call.1} parent=1 // loop_exit
      _
    %2315 = vsyncpa [#allocation3], 1
    %s2316 = scalar_lea.sflag [#allocation3], 1
    %2317 = vsyncpa %s2316, 1
    %2318 = vsyncpa [#allocation6], 1
    %2319 = vsyncpa [#allocation9], 1
    %2320 = vsyncpa [#allocation4], 1
    %s2321 = scalar_lea.sflag [#allocation4], 1
    %2322 = vsyncpa %s2321, 1

</llo_original>
